<compile_context>
chip_gen: v6e
topology: v6e:2x2x1
jax: 0.10.0
libtpu: 0.0.40
codegen_flags: <defaults>
</compile_context>

<pallas_src>
import numpy as np
import jax
import jax.numpy as jnp
from jax import lax
from jax.experimental import pallas as pl
from jax.experimental.pallas import tpu as pltpu


def _interp_matrix(n_in, n_out):
    """(n_out, n_in) interpolation matrix: bilinear, align_corners=True."""
    a = np.zeros((n_out, n_in), dtype=np.float32)
    for i in range(n_out):
        src = 0.0 if n_out == 1 else i * (n_in - 1) / (n_out - 1)
        i0 = min(int(np.floor(src)), n_in - 1)
        i1 = min(i0 + 1, n_in - 1)
        frac = src - i0
        a[i, i0] += 1.0 - frac
        a[i, i1] += frac
    return a


@jax.jit
def up_forward(x1, x2,
               conv1_w, conv1_b, bn1_gamma, bn1_beta, bn1_mean, bn1_var, alpha1,
               conv2_w, conv2_b, bn2_gamma, bn2_beta, bn2_mean, bn2_var, alpha2):
    eps = 1e-5
    n, c1, h1, w1 = x1.shape
    n2, c2, h2, w2 = x2.shape
    assert n == n2
    c_in = c1 + c2
    c_mid = conv1_w.shape[0]
    c_out = conv2_w.shape[0]
    assert conv1_w.shape == (c_mid, c_in, 3, 3)
    assert conv2_w.shape == (c_out, c_mid, 3, 3)

    h1u, w1u = 2 * h1, 2 * w1
    diff_y, diff_x = h2 - h1u, w2 - w1u
    assert diff_y >= 0 and diff_x >= 0
    pad_t, pad_l = diff_y // 2, diff_x // 2

    # ---- fold inference-mode BatchNorm into the conv weights / biases ----
    s1 = bn1_gamma / jnp.sqrt(bn1_var + eps)
    w1_eff = (conv1_w * s1[:, None, None, None]).astype(jnp.float32)
    b1_eff = ((conv1_b - bn1_mean) * s1 + bn1_beta).astype(jnp.float32)
    s2 = bn2_gamma / jnp.sqrt(bn2_var + eps)
    w2_eff = (conv2_w * s2[:, None, None, None]).astype(jnp.float32)
    b2_eff = ((conv2_b - bn2_mean) * s2 + bn2_beta).astype(jnp.float32)

    w1_flat = w1_eff.reshape(-1)          # (c_mid*c_in*9,)  -> SMEM
    w2_flat = w2_eff.reshape(-1)          # (c_out*c_mid*9,) -> SMEM
    a1 = alpha1.reshape(-1).astype(jnp.float32)
    a2 = alpha2.reshape(-1).astype(jnp.float32)

    # Constant bilinear interpolation matrices (align_corners=True, factor 2).
    up_h = jnp.asarray(_interp_matrix(h1, h1u))       # (h1u, h1)
    up_w = jnp.asarray(_interp_matrix(w1, w1u).T)     # (w1, w1u)

    def kernel(x1_ref, x2_ref, uh_ref, uw_ref,
               w1_ref, b1_ref, a1_ref, w2_ref, b2_ref, a2_ref,
               o_ref, xcat, hbuf):
        # Zeroed padded planes provide both the F.pad border and conv pad=1.
        xcat[...] = jnp.zeros_like(xcat)
        hbuf[...] = jnp.zeros_like(hbuf)

        # --- channel concat: x2 goes first (torch.cat([x2, x1], dim=1)) ---
        for c in range(c2):
            xcat[c, 1:1 + h2, 1:1 + w2] = x2_ref[0, c]

        # --- bilinear x2 upsample of x1 (pure VPU outer-product form) ---
        uh = uh_ref[...]                               # (h1u, h1)
        uw = uw_ref[...]                               # (w1, w1u)
        for c in range(c1):
            xc = x1_ref[0, c]                          # (h1, w1)
            t = uh[:, 0:1] * xc[0:1, :]                # (h1u, w1)
            for h in range(1, h1):
                t = t + uh[:, h:h + 1] * xc[h:h + 1, :]
            u = t[:, 0:1] * uw[0:1, :]                 # (h1u, w1u)
            for w in range(1, w1):
                u = u + t[:, w:w + 1] * uw[w:w + 1, :]
            xcat[c2 + c,
                 1 + pad_t:1 + pad_t + h1u,
                 1 + pad_l:1 + pad_l + w1u] = u

        al1 = a1_ref[0]
        al2 = a2_ref[0]
        zeros_hw = jnp.zeros((h2, w2), jnp.float32)

        # --- conv1 3x3 (pad=1) + folded BN + PReLU (VPU broadcast-FMA) ---
        win1 = [[[xcat[ci, dy:dy + h2, dx:dx + w2] for dx in range(3)]
                 for dy in range(3)] for ci in range(c_in)]
        for co in range(c_mid):
            acc = zeros_hw + b1_ref[co]
            for ci in range(c_in):
                for dy in range(3):
                    for dx in range(3):
                        wv = w1_ref[((co * c_in + ci) * 3 + dy) * 3 + dx]
                        acc = acc + wv * win1[ci][dy][dx]
            acc = jnp.where(acc >= 0.0, acc, al1 * acc)
            hbuf[co, 1:1 + h2, 1:1 + w2] = acc

        # --- conv2 3x3 (pad=1) + folded BN + PReLU ---
        win2 = [[[hbuf[ci, dy:dy + h2, dx:dx + w2] for dx in range(3)]
                 for dy in range(3)] for ci in range(c_mid)]
        for co in range(c_out):
            acc = zeros_hw + b2_ref[co]
            for ci in range(c_mid):
                for dy in range(3):
                    for dx in range(3):
                        wv = w2_ref[((co * c_mid + ci) * 3 + dy) * 3 + dx]
                        acc = acc + wv * win2[ci][dy][dx]
            acc = jnp.where(acc >= 0.0, acc, al2 * acc)
            o_ref[0, co] = acc.astype(o_ref.dtype)

    smem = pl.BlockSpec(memory_space=pltpu.MemorySpace.SMEM)
    flops = 2 * n * h2 * w2 * 9 * (c_in * c_mid + c_mid * c_out)
    bytes_accessed = 4 * (x1.size + x2.size + n * c_out * h2 * w2)

    return pl.pallas_call(
        kernel,
        out_shape=jax.ShapeDtypeStruct((n, c_out, h2, w2), jnp.float32),
        grid_spec=pltpu.PrefetchScalarGridSpec(
            num_scalar_prefetch=0,
            grid=(n,),
            in_specs=[
                pl.BlockSpec((1, c1, h1, w1), lambda i: (i, 0, 0, 0)),
                pl.BlockSpec((1, c2, h2, w2), lambda i: (i, 0, 0, 0)),
                pl.BlockSpec((h1u, h1), lambda i: (0, 0)),
                pl.BlockSpec((w1, w1u), lambda i: (0, 0)),
                smem, smem, smem, smem, smem, smem,
            ],
            out_specs=pl.BlockSpec((1, c_out, h2, w2), lambda i: (i, 0, 0, 0)),
            scratch_shapes=[
                pltpu.VMEM((c_in, h2 + 2, w2 + 2), jnp.float32),
                pltpu.VMEM((c_mid, h2 + 2, w2 + 2), jnp.float32),
            ],
        ),
        compiler_params=pltpu.CompilerParams(
            dimension_semantics=("parallel",),
        ),
        cost_estimate=pl.CostEstimate(
            flops=flops, transcendentals=0, bytes_accessed=bytes_accessed),
    )(x1.astype(jnp.float32), x2.astype(jnp.float32), up_h, up_w,
      w1_flat, b1_eff, a1, w2_flat, b2_eff, a2)


if __name__ == "__main__":
    # Up(in_channels=4, out_channels=4, bilinear=True):
    #   x1: (N, 2, 8, 8)  --bilinear x2--> (N, 2, 16, 16)
    #   x2: (N, 2, 16, 16);  concat -> (N, 4, 16, 16) -> DoubleConv(4, 4)
    N, C1, C2 = 2, 2, 2
    H1 = W1 = 8
    H2 = W2 = 16
    C_IN = C1 + C2
    C_OUT = 4
    EPS = 1e-5

    key = jax.random.PRNGKey(0)
    ks = jax.random.split(key, 14)

    x1 = jax.random.normal(ks[0], (N, C1, H1, W1), jnp.float32)
    x2 = jax.random.normal(ks[1], (N, C2, H2, W2), jnp.float32)

    conv1_w = jax.random.normal(ks[2], (C_OUT, C_IN, 3, 3), jnp.float32) * 0.2
    conv1_b = jax.random.normal(ks[3], (C_OUT,), jnp.float32) * 0.1
    bn1_gamma = 1.0 + 0.1 * jax.random.normal(ks[4], (C_OUT,), jnp.float32)
    bn1_beta = 0.1 * jax.random.normal(ks[5], (C_OUT,), jnp.float32)
    bn1_mean = 0.1 * jax.random.normal(ks[6], (C_OUT,), jnp.float32)
    bn1_var = 0.5 + jax.random.uniform(ks[7], (C_OUT,), jnp.float32)
    alpha1 = jnp.array([0.25], jnp.float32)   # nn.PReLU() default init

    conv2_w = jax.random.normal(ks[8], (C_OUT, C_OUT, 3, 3), jnp.float32) * 0.2
    conv2_b = jax.random.normal(ks[9], (C_OUT,), jnp.float32) * 0.1
    bn2_gamma = 1.0 + 0.1 * jax.random.normal(ks[10], (C_OUT,), jnp.float32)
    bn2_beta = 0.1 * jax.random.normal(ks[11], (C_OUT,), jnp.float32)
    bn2_mean = 0.1 * jax.random.normal(ks[12], (C_OUT,), jnp.float32)
    bn2_var = 0.5 + jax.random.uniform(ks[13], (C_OUT,), jnp.float32)
    alpha2 = jnp.array([0.25], jnp.float32)

    out = up_forward(x1, x2,
                     conv1_w, conv1_b, bn1_gamma, bn1_beta, bn1_mean, bn1_var, alpha1,
                     conv2_w, conv2_b, bn2_gamma, bn2_beta, bn2_mean, bn2_var, alpha2)
    jax.block_until_ready(out)

    # ---- plain-JAX reference (same math as the PyTorch module in eval mode) ----
    up_h = jnp.asarray(_interp_matrix(H1, 2 * H1))          # (2H1, H1)
    up_w = jnp.asarray(_interp_matrix(W1, 2 * W1))          # (2W1, W1)
    x1u = jnp.einsum("oh,nchw,pw->ncop", up_h, x1, up_w,
                     precision=lax.Precision.HIGHEST)
    dy_, dx_ = H2 - x1u.shape[2], W2 - x1u.shape[3]
    x1u = jnp.pad(x1u, ((0, 0), (0, 0),
                        (dy_ // 2, dy_ - dy_ // 2),
                        (dx_ // 2, dx_ - dx_ // 2)))
    xcat = jnp.concatenate([x2, x1u], axis=1)

    def conv_bn_prelu(x, w, b, g, beta, mean, var, a):
        y = lax.conv_general_dilated(
            x, w, window_strides=(1, 1), padding="SAME",
            dimension_numbers=("NCHW", "OIHW", "NCHW"),
            precision=lax.Precision.HIGHEST)
        y = y + b[None, :, None, None]
        y = (y - mean[None, :, None, None]) / jnp.sqrt(var[None, :, None, None] + EPS)
        y = y * g[None, :, None, None] + beta[None, :, None, None]
        return jnp.where(y >= 0, y, a * y)

    ref = conv_bn_prelu(xcat, conv1_w, conv1_b, bn1_gamma, bn1_beta,
                        bn1_mean, bn1_var, alpha1[0])
    ref = conv_bn_prelu(ref, conv2_w, conv2_b, bn2_gamma, bn2_beta,
                        bn2_mean, bn2_var, alpha2[0])

    assert out.shape == (N, C_OUT, H2, W2)
    max_err = float(jnp.max(jnp.abs(out - ref)))
    assert max_err < 1e-3, f"max_err={max_err}"

    print("KERNEL_OK")
</pallas_src>

<mosaic_0001>
module attributes {stable_mosaic.version = 11 : i64} {
  func.func @kernel(%arg0: i32, %arg1: memref<1x2x8x8xf32, #tpu.memory_space<vmem>>, %arg2: memref<1x2x16x16xf32, #tpu.memory_space<vmem>>, %arg3: memref<16x8xf32, #tpu.memory_space<vmem>>, %arg4: memref<8x16xf32, #tpu.memory_space<vmem>>, %arg5: memref<144xf32, #tpu.memory_space<smem>>, %arg6: memref<4xf32, #tpu.memory_space<smem>>, %arg7: memref<1xf32, #tpu.memory_space<smem>>, %arg8: memref<144xf32, #tpu.memory_space<smem>>, %arg9: memref<4xf32, #tpu.memory_space<smem>>, %arg10: memref<1xf32, #tpu.memory_space<smem>>, %arg11: memref<1x4x16x16xf32, #tpu.memory_space<vmem>>, %arg12: memref<4x18x18xf32, #tpu.memory_space<vmem>>, %arg13: memref<4x18x18xf32, #tpu.memory_space<vmem>>) attributes {dimension_semantics = [#tpu.dimension_semantics<parallel>], iteration_bounds = array<i64: 2>, scalar_prefetch = 0 : i64, scratch_operands = 2 : i64, tpu.core_type = #tpu.core_type<tc>, window_params = [{transform_indices = @transform_0, window_bounds = array<i64: 1, 2, 8, 8>}, {transform_indices = @transform_1, window_bounds = array<i64: 1, 2, 16, 16>}, {pipeline_mode = #tpu.pipeline_mode<synchronous>, transform_indices = @transform_2, window_bounds = array<i64: 16, 8>}, {pipeline_mode = #tpu.pipeline_mode<synchronous>, transform_indices = @transform_3, window_bounds = array<i64: 8, 16>}, {transform_indices = @transform_4, window_bounds = array<i64: 144>}, {transform_indices = @transform_5, window_bounds = array<i64: 4>}, {transform_indices = @transform_6, window_bounds = array<i64: 1>}, {transform_indices = @transform_7, window_bounds = array<i64: 144>}, {transform_indices = @transform_8, window_bounds = array<i64: 4>}, {transform_indices = @transform_9, window_bounds = array<i64: 1>}, {transform_indices = @transform_10, window_bounds = array<i64: 1, 4, 16, 16>}]} {
    %cst = arith.constant 0.000000e+00 : f32
    %0 = vector.broadcast %cst : f32 to vector<4x18x18xf32>
    %c0 = arith.constant 0 : index
    %c0_0 = arith.constant 0 : index
    %c0_1 = arith.constant 0 : index
    %1 = vector.load %arg12[%c0, %c0_0, %c0_1] : memref<4x18x18xf32, #tpu.memory_space<vmem>>, vector<4x18x18xf32>
    tpu.vector_store %arg12[%c0, %c0_0, %c0_1], %0 {strides = array<i32>} : memref<4x18x18xf32, #tpu.memory_space<vmem>>, vector<4x18x18xf32>,
    %cst_2 = arith.constant 0.000000e+00 : f32
    %2 = vector.broadcast %cst_2 : f32 to vector<4x18x18xf32>
    %c0_3 = arith.constant 0 : index
    %c0_4 = arith.constant 0 : index
    %c0_5 = arith.constant 0 : index
    %3 = vector.load %arg13[%c0_3, %c0_4, %c0_5] : memref<4x18x18xf32, #tpu.memory_space<vmem>>, vector<4x18x18xf32>
    tpu.vector_store %arg13[%c0_3, %c0_4, %c0_5], %2 {strides = array<i32>} : memref<4x18x18xf32, #tpu.memory_space<vmem>>, vector<4x18x18xf32>,
    %c0_6 = arith.constant 0 : index
    %c0_7 = arith.constant 0 : index
    %c0_8 = arith.constant 0 : index
    %c0_9 = arith.constant 0 : index
    %4 = vector.load %arg2[%c0_6, %c0_7, %c0_8, %c0_9] : memref<1x2x16x16xf32, #tpu.memory_space<vmem>>, vector<1x1x16x16xf32>
    %5 = vector.shape_cast %4 : vector<1x1x16x16xf32> to vector<16x16xf32>
    %c0_10 = arith.constant 0 : index
    %c1 = arith.constant 1 : index
    %c1_11 = arith.constant 1 : index
    %6 = vector.load %arg12[%c0_10, %c1, %c1_11] : memref<4x18x18xf32, #tpu.memory_space<vmem>>, vector<1x16x16xf32>
    %7 = vector.shape_cast %6 : vector<1x16x16xf32> to vector<16x16xf32>
    %8 = vector.shape_cast %5 : vector<16x16xf32> to vector<1x16x16xf32>
    tpu.vector_store %arg12[%c0_10, %c1, %c1_11], %8 {strides = array<i32>} : memref<4x18x18xf32, #tpu.memory_space<vmem>>, vector<1x16x16xf32>,
    %c0_12 = arith.constant 0 : index
    %c1_13 = arith.constant 1 : index
    %c0_14 = arith.constant 0 : index
    %c0_15 = arith.constant 0 : index
    %9 = vector.load %arg2[%c0_12, %c1_13, %c0_14, %c0_15] : memref<1x2x16x16xf32, #tpu.memory_space<vmem>>, vector<1x1x16x16xf32>
    %10 = vector.shape_cast %9 : vector<1x1x16x16xf32> to vector<16x16xf32>
    %c1_16 = arith.constant 1 : index
    %c1_17 = arith.constant 1 : index
    %c1_18 = arith.constant 1 : index
    %11 = vector.load %arg12[%c1_16, %c1_17, %c1_18] : memref<4x18x18xf32, #tpu.memory_space<vmem>>, vector<1x16x16xf32>
    %12 = vector.shape_cast %11 : vector<1x16x16xf32> to vector<16x16xf32>
    %13 = vector.shape_cast %10 : vector<16x16xf32> to vector<1x16x16xf32>
    tpu.vector_store %arg12[%c1_16, %c1_17, %c1_18], %13 {strides = array<i32>} : memref<4x18x18xf32, #tpu.memory_space<vmem>>, vector<1x16x16xf32>,
    %c0_19 = arith.constant 0 : index
    %c0_20 = arith.constant 0 : index
    %14 = vector.load %arg3[%c0_19, %c0_20] : memref<16x8xf32, #tpu.memory_space<vmem>>, vector<16x8xf32>
    %c0_21 = arith.constant 0 : index
    %c0_22 = arith.constant 0 : index
    %15 = vector.load %arg4[%c0_21, %c0_22] : memref<8x16xf32, #tpu.memory_space<vmem>>, vector<8x16xf32>
    %c0_23 = arith.constant 0 : index
    %c0_24 = arith.constant 0 : index
    %c0_25 = arith.constant 0 : index
    %c0_26 = arith.constant 0 : index
    %16 = vector.load %arg1[%c0_23, %c0_24, %c0_25, %c0_26] : memref<1x2x8x8xf32, #tpu.memory_space<vmem>>, vector<1x1x8x8xf32>
    %17 = vector.shape_cast %16 : vector<1x1x8x8xf32> to vector<8x8xf32>
    %18 = vector.extract_strided_slice %14 {offsets = [0, 0], sizes = [16, 1], strides = [1, 1]} : vector<16x8xf32> to vector<16x1xf32>
    %19 = vector.extract_strided_slice %17 {offsets = [0, 0], sizes = [1, 8], strides = [1, 1]} : vector<8x8xf32> to vector<1x8xf32>
    %20 = vector.broadcast %18 : vector<16x1xf32> to vector<16x8xf32>
    %21 = vector.broadcast %19 : vector<1x8xf32> to vector<16x8xf32>
    %22 = arith.mulf %20, %21 : vector<16x8xf32>
    %23 = vector.extract_strided_slice %14 {offsets = [0, 1], sizes = [16, 1], strides = [1, 1]} : vector<16x8xf32> to vector<16x1xf32>
    %24 = vector.extract_strided_slice %17 {offsets = [1, 0], sizes = [1, 8], strides = [1, 1]} : vector<8x8xf32> to vector<1x8xf32>
    %25 = vector.broadcast %23 : vector<16x1xf32> to vector<16x8xf32>
    %26 = vector.broadcast %24 : vector<1x8xf32> to vector<16x8xf32>
    %27 = arith.mulf %25, %26 : vector<16x8xf32>
    %28 = arith.addf %22, %27 : vector<16x8xf32>
    %29 = vector.extract_strided_slice %14 {offsets = [0, 2], sizes = [16, 1], strides = [1, 1]} : vector<16x8xf32> to vector<16x1xf32>
    %30 = vector.extract_strided_slice %17 {offsets = [2, 0], sizes = [1, 8], strides = [1, 1]} : vector<8x8xf32> to vector<1x8xf32>
    %31 = vector.broadcast %29 : vector<16x1xf32> to vector<16x8xf32>
    %32 = vector.broadcast %30 : vector<1x8xf32> to vector<16x8xf32>
    %33 = arith.mulf %31, %32 : vector<16x8xf32>
    %34 = arith.addf %28, %33 : vector<16x8xf32>
    %35 = vector.extract_strided_slice %14 {offsets = [0, 3], sizes = [16, 1], strides = [1, 1]} : vector<16x8xf32> to vector<16x1xf32>
    %36 = vector.extract_strided_slice %17 {offsets = [3, 0], sizes = [1, 8], strides = [1, 1]} : vector<8x8xf32> to vector<1x8xf32>
    %37 = vector.broadcast %35 : vector<16x1xf32> to vector<16x8xf32>
    %38 = vector.broadcast %36 : vector<1x8xf32> to vector<16x8xf32>
    %39 = arith.mulf %37, %38 : vector<16x8xf32>
    %40 = arith.addf %34, %39 : vector<16x8xf32>
    %41 = vector.extract_strided_slice %14 {offsets = [0, 4], sizes = [16, 1], strides = [1, 1]} : vector<16x8xf32> to vector<16x1xf32>
    %42 = vector.extract_strided_slice %17 {offsets = [4, 0], sizes = [1, 8], strides = [1, 1]} : vector<8x8xf32> to vector<1x8xf32>
    %43 = vector.broadcast %41 : vector<16x1xf32> to vector<16x8xf32>
    %44 = vector.broadcast %42 : vector<1x8xf32> to vector<16x8xf32>
    %45 = arith.mulf %43, %44 : vector<16x8xf32>
    %46 = arith.addf %40, %45 : vector<16x8xf32>
    %47 = vector.extract_strided_slice %14 {offsets = [0, 5], sizes = [16, 1], strides = [1, 1]} : vector<16x8xf32> to vector<16x1xf32>
    %48 = vector.extract_strided_slice %17 {offsets = [5, 0], sizes = [1, 8], strides = [1, 1]} : vector<8x8xf32> to vector<1x8xf32>
    %49 = vector.broadcast %47 : vector<16x1xf32> to vector<16x8xf32>
    %50 = vector.broadcast %48 : vector<1x8xf32> to vector<16x8xf32>
    %51 = arith.mulf %49, %50 : vector<16x8xf32>
    %52 = arith.addf %46, %51 : vector<16x8xf32>
    %53 = vector.extract_strided_slice %14 {offsets = [0, 6], sizes = [16, 1], strides = [1, 1]} : vector<16x8xf32> to vector<16x1xf32>
    %54 = vector.extract_strided_slice %17 {offsets = [6, 0], sizes = [1, 8], strides = [1, 1]} : vector<8x8xf32> to vector<1x8xf32>
    %55 = vector.broadcast %53 : vector<16x1xf32> to vector<16x8xf32>
    %56 = vector.broadcast %54 : vector<1x8xf32> to vector<16x8xf32>
    %57 = arith.mulf %55, %56 : vector<16x8xf32>
    %58 = arith.addf %52, %57 : vector<16x8xf32>
    %59 = vector.extract_strided_slice %14 {offsets = [0, 7], sizes = [16, 1], strides = [1, 1]} : vector<16x8xf32> to vector<16x1xf32>
    %60 = vector.extract_strided_slice %17 {offsets = [7, 0], sizes = [1, 8], strides = [1, 1]} : vector<8x8xf32> to vector<1x8xf32>
    %61 = vector.broadcast %59 : vector<16x1xf32> to vector<16x8xf32>
    %62 = vector.broadcast %60 : vector<1x8xf32> to vector<16x8xf32>
    %63 = arith.mulf %61, %62 : vector<16x8xf32>
    %64 = arith.addf %58, %63 : vector<16x8xf32>
    %65 = vector.extract_strided_slice %64 {offsets = [0, 0], sizes = [16, 1], strides = [1, 1]} : vector<16x8xf32> to vector<16x1xf32>
    %66 = vector.extract_strided_slice %15 {offsets = [0, 0], sizes = [1, 16], strides = [1, 1]} : vector<8x16xf32> to vector<1x16xf32>
    %67 = vector.broadcast %65 : vector<16x1xf32> to vector<16x16xf32>
    %68 = vector.broadcast %66 : vector<1x16xf32> to vector<16x16xf32>
    %69 = arith.mulf %67, %68 : vector<16x16xf32>
    %70 = vector.extract_strided_slice %64 {offsets = [0, 1], sizes = [16, 1], strides = [1, 1]} : vector<16x8xf32> to vector<16x1xf32>
    %71 = vector.extract_strided_slice %15 {offsets = [1, 0], sizes = [1, 16], strides = [1, 1]} : vector<8x16xf32> to vector<1x16xf32>
    %72 = vector.broadcast %70 : vector<16x1xf32> to vector<16x16xf32>
    %73 = vector.broadcast %71 : vector<1x16xf32> to vector<16x16xf32>
    %74 = arith.mulf %72, %73 : vector<16x16xf32>
    %75 = arith.addf %69, %74 : vector<16x16xf32>
    %76 = vector.extract_strided_slice %64 {offsets = [0, 2], sizes = [16, 1], strides = [1, 1]} : vector<16x8xf32> to vector<16x1xf32>
    %77 = vector.extract_strided_slice %15 {offsets = [2, 0], sizes = [1, 16], strides = [1, 1]} : vector<8x16xf32> to vector<1x16xf32>
    %78 = vector.broadcast %76 : vector<16x1xf32> to vector<16x16xf32>
    %79 = vector.broadcast %77 : vector<1x16xf32> to vector<16x16xf32>
    %80 = arith.mulf %78, %79 : vector<16x16xf32>
    %81 = arith.addf %75, %80 : vector<16x16xf32>
    %82 = vector.extract_strided_slice %64 {offsets = [0, 3], sizes = [16, 1], strides = [1, 1]} : vector<16x8xf32> to vector<16x1xf32>
    %83 = vector.extract_strided_slice %15 {offsets = [3, 0], sizes = [1, 16], strides = [1, 1]} : vector<8x16xf32> to vector<1x16xf32>
    %84 = vector.broadcast %82 : vector<16x1xf32> to vector<16x16xf32>
    %85 = vector.broadcast %83 : vector<1x16xf32> to vector<16x16xf32>
    %86 = arith.mulf %84, %85 : vector<16x16xf32>
    %87 = arith.addf %81, %86 : vector<16x16xf32>
    %88 = vector.extract_strided_slice %64 {offsets = [0, 4], sizes = [16, 1], strides = [1, 1]} : vector<16x8xf32> to vector<16x1xf32>
    %89 = vector.extract_strided_slice %15 {offsets = [4, 0], sizes = [1, 16], strides = [1, 1]} : vector<8x16xf32> to vector<1x16xf32>
    %90 = vector.broadcast %88 : vector<16x1xf32> to vector<16x16xf32>
    %91 = vector.broadcast %89 : vector<1x16xf32> to vector<16x16xf32>
    %92 = arith.mulf %90, %91 : vector<16x16xf32>
    %93 = arith.addf %87, %92 : vector<16x16xf32>
    %94 = vector.extract_strided_slice %64 {offsets = [0, 5], sizes = [16, 1], strides = [1, 1]} : vector<16x8xf32> to vector<16x1xf32>
    %95 = vector.extract_strided_slice %15 {offsets = [5, 0], sizes = [1, 16], strides = [1, 1]} : vector<8x16xf32> to vector<1x16xf32>
    %96 = vector.broadcast %94 : vector<16x1xf32> to vector<16x16xf32>
    %97 = vector.broadcast %95 : vector<1x16xf32> to vector<16x16xf32>
    %98 = arith.mulf %96, %97 : vector<16x16xf32>
    %99 = arith.addf %93, %98 : vector<16x16xf32>
    %100 = vector.extract_strided_slice %64 {offsets = [0, 6], sizes = [16, 1], strides = [1, 1]} : vector<16x8xf32> to vector<16x1xf32>
    %101 = vector.extract_strided_slice %15 {offsets = [6, 0], sizes = [1, 16], strides = [1, 1]} : vector<8x16xf32> to vector<1x16xf32>
    %102 = vector.broadcast %100 : vector<16x1xf32> to vector<16x16xf32>
    %103 = vector.broadcast %101 : vector<1x16xf32> to vector<16x16xf32>
    %104 = arith.mulf %102, %103 : vector<16x16xf32>
    %105 = arith.addf %99, %104 : vector<16x16xf32>
    %106 = vector.extract_strided_slice %64 {offsets = [0, 7], sizes = [16, 1], strides = [1, 1]} : vector<16x8xf32> to vector<16x1xf32>
    %107 = vector.extract_strided_slice %15 {offsets = [7, 0], sizes = [1, 16], strides = [1, 1]} : vector<8x16xf32> to vector<1x16xf32>
    %108 = vector.broadcast %106 : vector<16x1xf32> to vector<16x16xf32>
    %109 = vector.broadcast %107 : vector<1x16xf32> to vector<16x16xf32>
    %110 = arith.mulf %108, %109 : vector<16x16xf32>
    %111 = arith.addf %105, %110 : vector<16x16xf32>
    %c2 = arith.constant 2 : index
    %c1_27 = arith.constant 1 : index
    %c1_28 = arith.constant 1 : index
    %112 = vector.load %arg12[%c2, %c1_27, %c1_28] : memref<4x18x18xf32, #tpu.memory_space<vmem>>, vector<1x16x16xf32>
    %113 = vector.shape_cast %112 : vector<1x16x16xf32> to vector<16x16xf32>
    %114 = vector.shape_cast %111 : vector<16x16xf32> to vector<1x16x16xf32>
    tpu.vector_store %arg12[%c2, %c1_27, %c1_28], %114 {strides = array<i32>} : memref<4x18x18xf32, #tpu.memory_space<vmem>>, vector<1x16x16xf32>,
    %c0_29 = arith.constant 0 : index
    %c1_30 = arith.constant 1 : index
    %c0_31 = arith.constant 0 : index
    %c0_32 = arith.constant 0 : index
    %115 = vector.load %arg1[%c0_29, %c1_30, %c0_31, %c0_32] : memref<1x2x8x8xf32, #tpu.memory_space<vmem>>, vector<1x1x8x8xf32>
    %116 = vector.shape_cast %115 : vector<1x1x8x8xf32> to vector<8x8xf32>
    %117 = vector.extract_strided_slice %14 {offsets = [0, 0], sizes = [16, 1], strides = [1, 1]} : vector<16x8xf32> to vector<16x1xf32>
    %118 = vector.extract_strided_slice %116 {offsets = [0, 0], sizes = [1, 8], strides = [1, 1]} : vector<8x8xf32> to vector<1x8xf32>
    %119 = vector.broadcast %117 : vector<16x1xf32> to vector<16x8xf32>
    %120 = vector.broadcast %118 : vector<1x8xf32> to vector<16x8xf32>
    %121 = arith.mulf %119, %120 : vector<16x8xf32>
    %122 = vector.extract_strided_slice %14 {offsets = [0, 1], sizes = [16, 1], strides = [1, 1]} : vector<16x8xf32> to vector<16x1xf32>
    %123 = vector.extract_strided_slice %116 {offsets = [1, 0], sizes = [1, 8], strides = [1, 1]} : vector<8x8xf32> to vector<1x8xf32>
    %124 = vector.broadcast %122 : vector<16x1xf32> to vector<16x8xf32>
    %125 = vector.broadcast %123 : vector<1x8xf32> to vector<16x8xf32>
    %126 = arith.mulf %124, %125 : vector<16x8xf32>
    %127 = arith.addf %121, %126 : vector<16x8xf32>
    %128 = vector.extract_strided_slice %14 {offsets = [0, 2], sizes = [16, 1], strides = [1, 1]} : vector<16x8xf32> to vector<16x1xf32>
    %129 = vector.extract_strided_slice %116 {offsets = [2, 0], sizes = [1, 8], strides = [1, 1]} : vector<8x8xf32> to vector<1x8xf32>
    %130 = vector.broadcast %128 : vector<16x1xf32> to vector<16x8xf32>
    %131 = vector.broadcast %129 : vector<1x8xf32> to vector<16x8xf32>
    %132 = arith.mulf %130, %131 : vector<16x8xf32>
    %133 = arith.addf %127, %132 : vector<16x8xf32>
    %134 = vector.extract_strided_slice %14 {offsets = [0, 3], sizes = [16, 1], strides = [1, 1]} : vector<16x8xf32> to vector<16x1xf32>
    %135 = vector.extract_strided_slice %116 {offsets = [3, 0], sizes = [1, 8], strides = [1, 1]} : vector<8x8xf32> to vector<1x8xf32>
    %136 = vector.broadcast %134 : vector<16x1xf32> to vector<16x8xf32>
    %137 = vector.broadcast %135 : vector<1x8xf32> to vector<16x8xf32>
    %138 = arith.mulf %136, %137 : vector<16x8xf32>
    %139 = arith.addf %133, %138 : vector<16x8xf32>
    %140 = vector.extract_strided_slice %14 {offsets = [0, 4], sizes = [16, 1], strides = [1, 1]} : vector<16x8xf32> to vector<16x1xf32>
    %141 = vector.extract_strided_slice %116 {offsets = [4, 0], sizes = [1, 8], strides = [1, 1]} : vector<8x8xf32> to vector<1x8xf32>
    %142 = vector.broadcast %140 : vector<16x1xf32> to vector<16x8xf32>
    %143 = vector.broadcast %141 : vector<1x8xf32> to vector<16x8xf32>
    %144 = arith.mulf %142, %143 : vector<16x8xf32>
    %145 = arith.addf %139, %144 : vector<16x8xf32>
    %146 = vector.extract_strided_slice %14 {offsets = [0, 5], sizes = [16, 1], strides = [1, 1]} : vector<16x8xf32> to vector<16x1xf32>
    %147 = vector.extract_strided_slice %116 {offsets = [5, 0], sizes = [1, 8], strides = [1, 1]} : vector<8x8xf32> to vector<1x8xf32>
    %148 = vector.broadcast %146 : vector<16x1xf32> to vector<16x8xf32>
    %149 = vector.broadcast %147 : vector<1x8xf32> to vector<16x8xf32>
    %150 = arith.mulf %148, %149 : vector<16x8xf32>
    %151 = arith.addf %145, %150 : vector<16x8xf32>
    %152 = vector.extract_strided_slice %14 {offsets = [0, 6], sizes = [16, 1], strides = [1, 1]} : vector<16x8xf32> to vector<16x1xf32>
    %153 = vector.extract_strided_slice %116 {offsets = [6, 0], sizes = [1, 8], strides = [1, 1]} : vector<8x8xf32> to vector<1x8xf32>
    %154 = vector.broadcast %152 : vector<16x1xf32> to vector<16x8xf32>
    %155 = vector.broadcast %153 : vector<1x8xf32> to vector<16x8xf32>
    %156 = arith.mulf %154, %155 : vector<16x8xf32>
    %157 = arith.addf %151, %156 : vector<16x8xf32>
    %158 = vector.extract_strided_slice %14 {offsets = [0, 7], sizes = [16, 1], strides = [1, 1]} : vector<16x8xf32> to vector<16x1xf32>
    %159 = vector.extract_strided_slice %116 {offsets = [7, 0], sizes = [1, 8], strides = [1, 1]} : vector<8x8xf32> to vector<1x8xf32>
    %160 = vector.broadcast %158 : vector<16x1xf32> to vector<16x8xf32>
    %161 = vector.broadcast %159 : vector<1x8xf32> to vector<16x8xf32>
    %162 = arith.mulf %160, %161 : vector<16x8xf32>
    %163 = arith.addf %157, %162 : vector<16x8xf32>
    %164 = vector.extract_strided_slice %163 {offsets = [0, 0], sizes = [16, 1], strides = [1, 1]} : vector<16x8xf32> to vector<16x1xf32>
    %165 = vector.extract_strided_slice %15 {offsets = [0, 0], sizes = [1, 16], strides = [1, 1]} : vector<8x16xf32> to vector<1x16xf32>
    %166 = vector.broadcast %164 : vector<16x1xf32> to vector<16x16xf32>
    %167 = vector.broadcast %165 : vector<1x16xf32> to vector<16x16xf32>
    %168 = arith.mulf %166, %167 : vector<16x16xf32>
    %169 = vector.extract_strided_slice %163 {offsets = [0, 1], sizes = [16, 1], strides = [1, 1]} : vector<16x8xf32> to vector<16x1xf32>
    %170 = vector.extract_strided_slice %15 {offsets = [1, 0], sizes = [1, 16], strides = [1, 1]} : vector<8x16xf32> to vector<1x16xf32>
    %171 = vector.broadcast %169 : vector<16x1xf32> to vector<16x16xf32>
    %172 = vector.broadcast %170 : vector<1x16xf32> to vector<16x16xf32>
    %173 = arith.mulf %171, %172 : vector<16x16xf32>
    %174 = arith.addf %168, %173 : vector<16x16xf32>
    %175 = vector.extract_strided_slice %163 {offsets = [0, 2], sizes = [16, 1], strides = [1, 1]} : vector<16x8xf32> to vector<16x1xf32>
    %176 = vector.extract_strided_slice %15 {offsets = [2, 0], sizes = [1, 16], strides = [1, 1]} : vector<8x16xf32> to vector<1x16xf32>
    %177 = vector.broadcast %175 : vector<16x1xf32> to vector<16x16xf32>
    %178 = vector.broadcast %176 : vector<1x16xf32> to vector<16x16xf32>
    %179 = arith.mulf %177, %178 : vector<16x16xf32>
    %180 = arith.addf %174, %179 : vector<16x16xf32>
    %181 = vector.extract_strided_slice %163 {offsets = [0, 3], sizes = [16, 1], strides = [1, 1]} : vector<16x8xf32> to vector<16x1xf32>
    %182 = vector.extract_strided_slice %15 {offsets = [3, 0], sizes = [1, 16], strides = [1, 1]} : vector<8x16xf32> to vector<1x16xf32>
    %183 = vector.broadcast %181 : vector<16x1xf32> to vector<16x16xf32>
    %184 = vector.broadcast %182 : vector<1x16xf32> to vector<16x16xf32>
    %185 = arith.mulf %183, %184 : vector<16x16xf32>
    %186 = arith.addf %180, %185 : vector<16x16xf32>
    %187 = vector.extract_strided_slice %163 {offsets = [0, 4], sizes = [16, 1], strides = [1, 1]} : vector<16x8xf32> to vector<16x1xf32>
    %188 = vector.extract_strided_slice %15 {offsets = [4, 0], sizes = [1, 16], strides = [1, 1]} : vector<8x16xf32> to vector<1x16xf32>
    %189 = vector.broadcast %187 : vector<16x1xf32> to vector<16x16xf32>
    %190 = vector.broadcast %188 : vector<1x16xf32> to vector<16x16xf32>
    %191 = arith.mulf %189, %190 : vector<16x16xf32>
    %192 = arith.addf %186, %191 : vector<16x16xf32>
    %193 = vector.extract_strided_slice %163 {offsets = [0, 5], sizes = [16, 1], strides = [1, 1]} : vector<16x8xf32> to vector<16x1xf32>
    %194 = vector.extract_strided_slice %15 {offsets = [5, 0], sizes = [1, 16], strides = [1, 1]} : vector<8x16xf32> to vector<1x16xf32>
    %195 = vector.broadcast %193 : vector<16x1xf32> to vector<16x16xf32>
    %196 = vector.broadcast %194 : vector<1x16xf32> to vector<16x16xf32>
    %197 = arith.mulf %195, %196 : vector<16x16xf32>
    %198 = arith.addf %192, %197 : vector<16x16xf32>
    %199 = vector.extract_strided_slice %163 {offsets = [0, 6], sizes = [16, 1], strides = [1, 1]} : vector<16x8xf32> to vector<16x1xf32>
    %200 = vector.extract_strided_slice %15 {offsets = [6, 0], sizes = [1, 16], strides = [1, 1]} : vector<8x16xf32> to vector<1x16xf32>
    %201 = vector.broadcast %199 : vector<16x1xf32> to vector<16x16xf32>
    %202 = vector.broadcast %200 : vector<1x16xf32> to vector<16x16xf32>
    %203 = arith.mulf %201, %202 : vector<16x16xf32>
    %204 = arith.addf %198, %203 : vector<16x16xf32>
    %205 = vector.extract_strided_slice %163 {offsets = [0, 7], sizes = [16, 1], strides = [1, 1]} : vector<16x8xf32> to vector<16x1xf32>
    %206 = vector.extract_strided_slice %15 {offsets = [7, 0], sizes = [1, 16], strides = [1, 1]} : vector<8x16xf32> to vector<1x16xf32>
    %207 = vector.broadcast %205 : vector<16x1xf32> to vector<16x16xf32>
    %208 = vector.broadcast %206 : vector<1x16xf32> to vector<16x16xf32>
    %209 = arith.mulf %207, %208 : vector<16x16xf32>
    %210 = arith.addf %204, %209 : vector<16x16xf32>
    %c3 = arith.constant 3 : index
    %c1_33 = arith.constant 1 : index
    %c1_34 = arith.constant 1 : index
    %211 = vector.load %arg12[%c3, %c1_33, %c1_34] : memref<4x18x18xf32, #tpu.memory_space<vmem>>, vector<1x16x16xf32>
    %212 = vector.shape_cast %211 : vector<1x16x16xf32> to vector<16x16xf32>
    %213 = vector.shape_cast %210 : vector<16x16xf32> to vector<1x16x16xf32>
    tpu.vector_store %arg12[%c3, %c1_33, %c1_34], %213 {strides = array<i32>} : memref<4x18x18xf32, #tpu.memory_space<vmem>>, vector<1x16x16xf32>,
    %c0_35 = arith.constant 0 : index
    %214 = memref.load %arg7[%c0_35] : memref<1xf32, #tpu.memory_space<smem>>
    %c0_36 = arith.constant 0 : index
    %215 = memref.load %arg10[%c0_36] : memref<1xf32, #tpu.memory_space<smem>>
    %cst_37 = arith.constant 0.000000e+00 : f32
    %216 = vector.broadcast %cst_37 : f32 to vector<16x16xf32>
    %c0_38 = arith.constant 0 : index
    %c0_39 = arith.constant 0 : index
    %c0_40 = arith.constant 0 : index
    %217 = vector.load %arg12[%c0_38, %c0_39, %c0_40] : memref<4x18x18xf32, #tpu.memory_space<vmem>>, vector<1x16x16xf32>
    %218 = vector.shape_cast %217 : vector<1x16x16xf32> to vector<16x16xf32>
    %c0_41 = arith.constant 0 : index
    %c0_42 = arith.constant 0 : index
    %c1_43 = arith.constant 1 : index
    %219 = vector.load %arg12[%c0_41, %c0_42, %c1_43] : memref<4x18x18xf32, #tpu.memory_space<vmem>>, vector<1x16x16xf32>
    %220 = vector.shape_cast %219 : vector<1x16x16xf32> to vector<16x16xf32>
    %c0_44 = arith.constant 0 : index
    %c0_45 = arith.constant 0 : index
    %c2_46 = arith.constant 2 : index
    %221 = vector.load %arg12[%c0_44, %c0_45, %c2_46] : memref<4x18x18xf32, #tpu.memory_space<vmem>>, vector<1x16x16xf32>
    %222 = vector.shape_cast %221 : vector<1x16x16xf32> to vector<16x16xf32>
    %c0_47 = arith.constant 0 : index
    %c1_48 = arith.constant 1 : index
    %c0_49 = arith.constant 0 : index
    %223 = vector.load %arg12[%c0_47, %c1_48, %c0_49] : memref<4x18x18xf32, #tpu.memory_space<vmem>>, vector<1x16x16xf32>
    %224 = vector.shape_cast %223 : vector<1x16x16xf32> to vector<16x16xf32>
    %c0_50 = arith.constant 0 : index
    %c1_51 = arith.constant 1 : index
    %c1_52 = arith.constant 1 : index
    %225 = vector.load %arg12[%c0_50, %c1_51, %c1_52] : memref<4x18x18xf32, #tpu.memory_space<vmem>>, vector<1x16x16xf32>
    %226 = vector.shape_cast %225 : vector<1x16x16xf32> to vector<16x16xf32>
    %c0_53 = arith.constant 0 : index
    %c1_54 = arith.constant 1 : index
    %c2_55 = arith.constant 2 : index
    %227 = vector.load %arg12[%c0_53, %c1_54, %c2_55] : memref<4x18x18xf32, #tpu.memory_space<vmem>>, vector<1x16x16xf32>
    %228 = vector.shape_cast %227 : vector<1x16x16xf32> to vector<16x16xf32>
    %c0_56 = arith.constant 0 : index
    %c2_57 = arith.constant 2 : index
    %c0_58 = arith.constant 0 : index
    %229 = vector.load %arg12[%c0_56, %c2_57, %c0_58] : memref<4x18x18xf32, #tpu.memory_space<vmem>>, vector<1x16x16xf32>
    %230 = vector.shape_cast %229 : vector<1x16x16xf32> to vector<16x16xf32>
    %c0_59 = arith.constant 0 : index
    %c2_60 = arith.constant 2 : index
    %c1_61 = arith.constant 1 : index
    %231 = vector.load %arg12[%c0_59, %c2_60, %c1_61] : memref<4x18x18xf32, #tpu.memory_space<vmem>>, vector<1x16x16xf32>
    %232 = vector.shape_cast %231 : vector<1x16x16xf32> to vector<16x16xf32>
    %c0_62 = arith.constant 0 : index
    %c2_63 = arith.constant 2 : index
    %c2_64 = arith.constant 2 : index
    %233 = vector.load %arg12[%c0_62, %c2_63, %c2_64] : memref<4x18x18xf32, #tpu.memory_space<vmem>>, vector<1x16x16xf32>
    %234 = vector.shape_cast %233 : vector<1x16x16xf32> to vector<16x16xf32>
    %c1_65 = arith.constant 1 : index
    %c0_66 = arith.constant 0 : index
    %c0_67 = arith.constant 0 : index
    %235 = vector.load %arg12[%c1_65, %c0_66, %c0_67] : memref<4x18x18xf32, #tpu.memory_space<vmem>>, vector<1x16x16xf32>
    %236 = vector.shape_cast %235 : vector<1x16x16xf32> to vector<16x16xf32>
    %c1_68 = arith.constant 1 : index
    %c0_69 = arith.constant 0 : index
    %c1_70 = arith.constant 1 : index
    %237 = vector.load %arg12[%c1_68, %c0_69, %c1_70] : memref<4x18x18xf32, #tpu.memory_space<vmem>>, vector<1x16x16xf32>
    %238 = vector.shape_cast %237 : vector<1x16x16xf32> to vector<16x16xf32>
    %c1_71 = arith.constant 1 : index
    %c0_72 = arith.constant 0 : index
    %c2_73 = arith.constant 2 : index
    %239 = vector.load %arg12[%c1_71, %c0_72, %c2_73] : memref<4x18x18xf32, #tpu.memory_space<vmem>>, vector<1x16x16xf32>
    %240 = vector.shape_cast %239 : vector<1x16x16xf32> to vector<16x16xf32>
    %c1_74 = arith.constant 1 : index
    %c1_75 = arith.constant 1 : index
    %c0_76 = arith.constant 0 : index
    %241 = vector.load %arg12[%c1_74, %c1_75, %c0_76] : memref<4x18x18xf32, #tpu.memory_space<vmem>>, vector<1x16x16xf32>
    %242 = vector.shape_cast %241 : vector<1x16x16xf32> to vector<16x16xf32>
    %c1_77 = arith.constant 1 : index
    %c1_78 = arith.constant 1 : index
    %c1_79 = arith.constant 1 : index
    %243 = vector.load %arg12[%c1_77, %c1_78, %c1_79] : memref<4x18x18xf32, #tpu.memory_space<vmem>>, vector<1x16x16xf32>
    %244 = vector.shape_cast %243 : vector<1x16x16xf32> to vector<16x16xf32>
    %c1_80 = arith.constant 1 : index
    %c1_81 = arith.constant 1 : index
    %c2_82 = arith.constant 2 : index
    %245 = vector.load %arg12[%c1_80, %c1_81, %c2_82] : memref<4x18x18xf32, #tpu.memory_space<vmem>>, vector<1x16x16xf32>
    %246 = vector.shape_cast %245 : vector<1x16x16xf32> to vector<16x16xf32>
    %c1_83 = arith.constant 1 : index
    %c2_84 = arith.constant 2 : index
    %c0_85 = arith.constant 0 : index
    %247 = vector.load %arg12[%c1_83, %c2_84, %c0_85] : memref<4x18x18xf32, #tpu.memory_space<vmem>>, vector<1x16x16xf32>
    %248 = vector.shape_cast %247 : vector<1x16x16xf32> to vector<16x16xf32>
    %c1_86 = arith.constant 1 : index
    %c2_87 = arith.constant 2 : index
    %c1_88 = arith.constant 1 : index
    %249 = vector.load %arg12[%c1_86, %c2_87, %c1_88] : memref<4x18x18xf32, #tpu.memory_space<vmem>>, vector<1x16x16xf32>
    %250 = vector.shape_cast %249 : vector<1x16x16xf32> to vector<16x16xf32>
    %c1_89 = arith.constant 1 : index
    %c2_90 = arith.constant 2 : index
    %c2_91 = arith.constant 2 : index
    %251 = vector.load %arg12[%c1_89, %c2_90, %c2_91] : memref<4x18x18xf32, #tpu.memory_space<vmem>>, vector<1x16x16xf32>
    %252 = vector.shape_cast %251 : vector<1x16x16xf32> to vector<16x16xf32>
    %c2_92 = arith.constant 2 : index
    %c0_93 = arith.constant 0 : index
    %c0_94 = arith.constant 0 : index
    %253 = vector.load %arg12[%c2_92, %c0_93, %c0_94] : memref<4x18x18xf32, #tpu.memory_space<vmem>>, vector<1x16x16xf32>
    %254 = vector.shape_cast %253 : vector<1x16x16xf32> to vector<16x16xf32>
    %c2_95 = arith.constant 2 : index
    %c0_96 = arith.constant 0 : index
    %c1_97 = arith.constant 1 : index
    %255 = vector.load %arg12[%c2_95, %c0_96, %c1_97] : memref<4x18x18xf32, #tpu.memory_space<vmem>>, vector<1x16x16xf32>
    %256 = vector.shape_cast %255 : vector<1x16x16xf32> to vector<16x16xf32>
    %c2_98 = arith.constant 2 : index
    %c0_99 = arith.constant 0 : index
    %c2_100 = arith.constant 2 : index
    %257 = vector.load %arg12[%c2_98, %c0_99, %c2_100] : memref<4x18x18xf32, #tpu.memory_space<vmem>>, vector<1x16x16xf32>
    %258 = vector.shape_cast %257 : vector<1x16x16xf32> to vector<16x16xf32>
    %c2_101 = arith.constant 2 : index
    %c1_102 = arith.constant 1 : index
    %c0_103 = arith.constant 0 : index
    %259 = vector.load %arg12[%c2_101, %c1_102, %c0_103] : memref<4x18x18xf32, #tpu.memory_space<vmem>>, vector<1x16x16xf32>
    %260 = vector.shape_cast %259 : vector<1x16x16xf32> to vector<16x16xf32>
    %c2_104 = arith.constant 2 : index
    %c1_105 = arith.constant 1 : index
    %c1_106 = arith.constant 1 : index
    %261 = vector.load %arg12[%c2_104, %c1_105, %c1_106] : memref<4x18x18xf32, #tpu.memory_space<vmem>>, vector<1x16x16xf32>
    %262 = vector.shape_cast %261 : vector<1x16x16xf32> to vector<16x16xf32>
    %c2_107 = arith.constant 2 : index
    %c1_108 = arith.constant 1 : index
    %c2_109 = arith.constant 2 : index
    %263 = vector.load %arg12[%c2_107, %c1_108, %c2_109] : memref<4x18x18xf32, #tpu.memory_space<vmem>>, vector<1x16x16xf32>
    %264 = vector.shape_cast %263 : vector<1x16x16xf32> to vector<16x16xf32>
    %c2_110 = arith.constant 2 : index
    %c2_111 = arith.constant 2 : index
    %c0_112 = arith.constant 0 : index
    %265 = vector.load %arg12[%c2_110, %c2_111, %c0_112] : memref<4x18x18xf32, #tpu.memory_space<vmem>>, vector<1x16x16xf32>
    %266 = vector.shape_cast %265 : vector<1x16x16xf32> to vector<16x16xf32>
    %c2_113 = arith.constant 2 : index
    %c2_114 = arith.constant 2 : index
    %c1_115 = arith.constant 1 : index
    %267 = vector.load %arg12[%c2_113, %c2_114, %c1_115] : memref<4x18x18xf32, #tpu.memory_space<vmem>>, vector<1x16x16xf32>
    %268 = vector.shape_cast %267 : vector<1x16x16xf32> to vector<16x16xf32>
    %c2_116 = arith.constant 2 : index
    %c2_117 = arith.constant 2 : index
    %c2_118 = arith.constant 2 : index
    %269 = vector.load %arg12[%c2_116, %c2_117, %c2_118] : memref<4x18x18xf32, #tpu.memory_space<vmem>>, vector<1x16x16xf32>
    %270 = vector.shape_cast %269 : vector<1x16x16xf32> to vector<16x16xf32>
    %c3_119 = arith.constant 3 : index
    %c0_120 = arith.constant 0 : index
    %c0_121 = arith.constant 0 : index
    %271 = vector.load %arg12[%c3_119, %c0_120, %c0_121] : memref<4x18x18xf32, #tpu.memory_space<vmem>>, vector<1x16x16xf32>
    %272 = vector.shape_cast %271 : vector<1x16x16xf32> to vector<16x16xf32>
    %c3_122 = arith.constant 3 : index
    %c0_123 = arith.constant 0 : index
    %c1_124 = arith.constant 1 : index
    %273 = vector.load %arg12[%c3_122, %c0_123, %c1_124] : memref<4x18x18xf32, #tpu.memory_space<vmem>>, vector<1x16x16xf32>
    %274 = vector.shape_cast %273 : vector<1x16x16xf32> to vector<16x16xf32>
    %c3_125 = arith.constant 3 : index
    %c0_126 = arith.constant 0 : index
    %c2_127 = arith.constant 2 : index
    %275 = vector.load %arg12[%c3_125, %c0_126, %c2_127] : memref<4x18x18xf32, #tpu.memory_space<vmem>>, vector<1x16x16xf32>
    %276 = vector.shape_cast %275 : vector<1x16x16xf32> to vector<16x16xf32>
    %c3_128 = arith.constant 3 : index
    %c1_129 = arith.constant 1 : index
    %c0_130 = arith.constant 0 : index
    %277 = vector.load %arg12[%c3_128, %c1_129, %c0_130] : memref<4x18x18xf32, #tpu.memory_space<vmem>>, vector<1x16x16xf32>
    %278 = vector.shape_cast %277 : vector<1x16x16xf32> to vector<16x16xf32>
    %c3_131 = arith.constant 3 : index
    %c1_132 = arith.constant 1 : index
    %c1_133 = arith.constant 1 : index
    %279 = vector.load %arg12[%c3_131, %c1_132, %c1_133] : memref<4x18x18xf32, #tpu.memory_space<vmem>>, vector<1x16x16xf32>
    %280 = vector.shape_cast %279 : vector<1x16x16xf32> to vector<16x16xf32>
    %c3_134 = arith.constant 3 : index
    %c1_135 = arith.constant 1 : index
    %c2_136 = arith.constant 2 : index
    %281 = vector.load %arg12[%c3_134, %c1_135, %c2_136] : memref<4x18x18xf32, #tpu.memory_space<vmem>>, vector<1x16x16xf32>
    %282 = vector.shape_cast %281 : vector<1x16x16xf32> to vector<16x16xf32>
    %c3_137 = arith.constant 3 : index
    %c2_138 = arith.constant 2 : index
    %c0_139 = arith.constant 0 : index
    %283 = vector.load %arg12[%c3_137, %c2_138, %c0_139] : memref<4x18x18xf32, #tpu.memory_space<vmem>>, vector<1x16x16xf32>
    %284 = vector.shape_cast %283 : vector<1x16x16xf32> to vector<16x16xf32>
    %c3_140 = arith.constant 3 : index
    %c2_141 = arith.constant 2 : index
    %c1_142 = arith.constant 1 : index
    %285 = vector.load %arg12[%c3_140, %c2_141, %c1_142] : memref<4x18x18xf32, #tpu.memory_space<vmem>>, vector<1x16x16xf32>
    %286 = vector.shape_cast %285 : vector<1x16x16xf32> to vector<16x16xf32>
    %c3_143 = arith.constant 3 : index
    %c2_144 = arith.constant 2 : index
    %c2_145 = arith.constant 2 : index
    %287 = vector.load %arg12[%c3_143, %c2_144, %c2_145] : memref<4x18x18xf32, #tpu.memory_space<vmem>>, vector<1x16x16xf32>
    %288 = vector.shape_cast %287 : vector<1x16x16xf32> to vector<16x16xf32>
    %c0_146 = arith.constant 0 : index
    %289 = memref.load %arg6[%c0_146] : memref<4xf32, #tpu.memory_space<smem>>
    %290 = vector.broadcast %289 : f32 to vector<16x16xf32>
    %291 = arith.addf %216, %290 : vector<16x16xf32>
    %c0_147 = arith.constant 0 : index
    %292 = memref.load %arg5[%c0_147] : memref<144xf32, #tpu.memory_space<smem>>
    %293 = vector.broadcast %292 : f32 to vector<16x16xf32>
    %294 = arith.mulf %293, %218 : vector<16x16xf32>
    %295 = arith.addf %291, %294 : vector<16x16xf32>
    %c1_148 = arith.constant 1 : index
    %296 = memref.load %arg5[%c1_148] : memref<144xf32, #tpu.memory_space<smem>>
    %297 = vector.broadcast %296 : f32 to vector<16x16xf32>
    %298 = arith.mulf %297, %220 : vector<16x16xf32>
    %299 = arith.addf %295, %298 : vector<16x16xf32>
    %c2_149 = arith.constant 2 : index
    %300 = memref.load %arg5[%c2_149] : memref<144xf32, #tpu.memory_space<smem>>
    %301 = vector.broadcast %300 : f32 to vector<16x16xf32>
    %302 = arith.mulf %301, %222 : vector<16x16xf32>
    %303 = arith.addf %299, %302 : vector<16x16xf32>
    %c3_150 = arith.constant 3 : index
    %304 = memref.load %arg5[%c3_150] : memref<144xf32, #tpu.memory_space<smem>>
    %305 = vector.broadcast %304 : f32 to vector<16x16xf32>
    %306 = arith.mulf %305, %224 : vector<16x16xf32>
    %307 = arith.addf %303, %306 : vector<16x16xf32>
    %c4 = arith.constant 4 : index
    %308 = memref.load %arg5[%c4] : memref<144xf32, #tpu.memory_space<smem>>
    %309 = vector.broadcast %308 : f32 to vector<16x16xf32>
    %310 = arith.mulf %309, %226 : vector<16x16xf32>
    %311 = arith.addf %307, %310 : vector<16x16xf32>
    %c5 = arith.constant 5 : index
    %312 = memref.load %arg5[%c5] : memref<144xf32, #tpu.memory_space<smem>>
    %313 = vector.broadcast %312 : f32 to vector<16x16xf32>
    %314 = arith.mulf %313, %228 : vector<16x16xf32>
    %315 = arith.addf %311, %314 : vector<16x16xf32>
    %c6 = arith.constant 6 : index
    %316 = memref.load %arg5[%c6] : memref<144xf32, #tpu.memory_space<smem>>
    %317 = vector.broadcast %316 : f32 to vector<16x16xf32>
    %318 = arith.mulf %317, %230 : vector<16x16xf32>
    %319 = arith.addf %315, %318 : vector<16x16xf32>
    %c7 = arith.constant 7 : index
    %320 = memref.load %arg5[%c7] : memref<144xf32, #tpu.memory_space<smem>>
    %321 = vector.broadcast %320 : f32 to vector<16x16xf32>
    %322 = arith.mulf %321, %232 : vector<16x16xf32>
    %323 = arith.addf %319, %322 : vector<16x16xf32>
    %c8 = arith.constant 8 : index
    %324 = memref.load %arg5[%c8] : memref<144xf32, #tpu.memory_space<smem>>
    %325 = vector.broadcast %324 : f32 to vector<16x16xf32>
    %326 = arith.mulf %325, %234 : vector<16x16xf32>
    %327 = arith.addf %323, %326 : vector<16x16xf32>
    %c9 = arith.constant 9 : index
    %328 = memref.load %arg5[%c9] : memref<144xf32, #tpu.memory_space<smem>>
    %329 = vector.broadcast %328 : f32 to vector<16x16xf32>
    %330 = arith.mulf %329, %236 : vector<16x16xf32>
    %331 = arith.addf %327, %330 : vector<16x16xf32>
    %c10 = arith.constant 10 : index
    %332 = memref.load %arg5[%c10] : memref<144xf32, #tpu.memory_space<smem>>
    %333 = vector.broadcast %332 : f32 to vector<16x16xf32>
    %334 = arith.mulf %333, %238 : vector<16x16xf32>
    %335 = arith.addf %331, %334 : vector<16x16xf32>
    %c11 = arith.constant 11 : index
    %336 = memref.load %arg5[%c11] : memref<144xf32, #tpu.memory_space<smem>>
    %337 = vector.broadcast %336 : f32 to vector<16x16xf32>
    %338 = arith.mulf %337, %240 : vector<16x16xf32>
    %339 = arith.addf %335, %338 : vector<16x16xf32>
    %c12 = arith.constant 12 : index
    %340 = memref.load %arg5[%c12] : memref<144xf32, #tpu.memory_space<smem>>
    %341 = vector.broadcast %340 : f32 to vector<16x16xf32>
    %342 = arith.mulf %341, %242 : vector<16x16xf32>
    %343 = arith.addf %339, %342 : vector<16x16xf32>
    %c13 = arith.constant 13 : index
    %344 = memref.load %arg5[%c13] : memref<144xf32, #tpu.memory_space<smem>>
    %345 = vector.broadcast %344 : f32 to vector<16x16xf32>
    %346 = arith.mulf %345, %244 : vector<16x16xf32>
    %347 = arith.addf %343, %346 : vector<16x16xf32>
    %c14 = arith.constant 14 : index
    %348 = memref.load %arg5[%c14] : memref<144xf32, #tpu.memory_space<smem>>
    %349 = vector.broadcast %348 : f32 to vector<16x16xf32>
    %350 = arith.mulf %349, %246 : vector<16x16xf32>
    %351 = arith.addf %347, %350 : vector<16x16xf32>
    %c15 = arith.constant 15 : index
    %352 = memref.load %arg5[%c15] : memref<144xf32, #tpu.memory_space<smem>>
    %353 = vector.broadcast %352 : f32 to vector<16x16xf32>
    %354 = arith.mulf %353, %248 : vector<16x16xf32>
    %355 = arith.addf %351, %354 : vector<16x16xf32>
    %c16 = arith.constant 16 : index
    %356 = memref.load %arg5[%c16] : memref<144xf32, #tpu.memory_space<smem>>
    %357 = vector.broadcast %356 : f32 to vector<16x16xf32>
    %358 = arith.mulf %357, %250 : vector<16x16xf32>
    %359 = arith.addf %355, %358 : vector<16x16xf32>
    %c17 = arith.constant 17 : index
    %360 = memref.load %arg5[%c17] : memref<144xf32, #tpu.memory_space<smem>>
    %361 = vector.broadcast %360 : f32 to vector<16x16xf32>
    %362 = arith.mulf %361, %252 : vector<16x16xf32>
    %363 = arith.addf %359, %362 : vector<16x16xf32>
    %c18 = arith.constant 18 : index
    %364 = memref.load %arg5[%c18] : memref<144xf32, #tpu.memory_space<smem>>
    %365 = vector.broadcast %364 : f32 to vector<16x16xf32>
    %366 = arith.mulf %365, %254 : vector<16x16xf32>
    %367 = arith.addf %363, %366 : vector<16x16xf32>
    %c19 = arith.constant 19 : index
    %368 = memref.load %arg5[%c19] : memref<144xf32, #tpu.memory_space<smem>>
    %369 = vector.broadcast %368 : f32 to vector<16x16xf32>
    %370 = arith.mulf %369, %256 : vector<16x16xf32>
    %371 = arith.addf %367, %370 : vector<16x16xf32>
    %c20 = arith.constant 20 : index
    %372 = memref.load %arg5[%c20] : memref<144xf32, #tpu.memory_space<smem>>
    %373 = vector.broadcast %372 : f32 to vector<16x16xf32>
    %374 = arith.mulf %373, %258 : vector<16x16xf32>
    %375 = arith.addf %371, %374 : vector<16x16xf32>
    %c21 = arith.constant 21 : index
    %376 = memref.load %arg5[%c21] : memref<144xf32, #tpu.memory_space<smem>>
    %377 = vector.broadcast %376 : f32 to vector<16x16xf32>
    %378 = arith.mulf %377, %260 : vector<16x16xf32>
    %379 = arith.addf %375, %378 : vector<16x16xf32>
    %c22 = arith.constant 22 : index
    %380 = memref.load %arg5[%c22] : memref<144xf32, #tpu.memory_space<smem>>
    %381 = vector.broadcast %380 : f32 to vector<16x16xf32>
    %382 = arith.mulf %381, %262 : vector<16x16xf32>
    %383 = arith.addf %379, %382 : vector<16x16xf32>
    %c23 = arith.constant 23 : index
    %384 = memref.load %arg5[%c23] : memref<144xf32, #tpu.memory_space<smem>>
    %385 = vector.broadcast %384 : f32 to vector<16x16xf32>
    %386 = arith.mulf %385, %264 : vector<16x16xf32>
    %387 = arith.addf %383, %386 : vector<16x16xf32>
    %c24 = arith.constant 24 : index
    %388 = memref.load %arg5[%c24] : memref<144xf32, #tpu.memory_space<smem>>
    %389 = vector.broadcast %388 : f32 to vector<16x16xf32>
    %390 = arith.mulf %389, %266 : vector<16x16xf32>
    %391 = arith.addf %387, %390 : vector<16x16xf32>
    %c25 = arith.constant 25 : index
    %392 = memref.load %arg5[%c25] : memref<144xf32, #tpu.memory_space<smem>>
    %393 = vector.broadcast %392 : f32 to vector<16x16xf32>
    %394 = arith.mulf %393, %268 : vector<16x16xf32>
    %395 = arith.addf %391, %394 : vector<16x16xf32>
    %c26 = arith.constant 26 : index
    %396 = memref.load %arg5[%c26] : memref<144xf32, #tpu.memory_space<smem>>
    %397 = vector.broadcast %396 : f32 to vector<16x16xf32>
    %398 = arith.mulf %397, %270 : vector<16x16xf32>
    %399 = arith.addf %395, %398 : vector<16x16xf32>
    %c27 = arith.constant 27 : index
    %400 = memref.load %arg5[%c27] : memref<144xf32, #tpu.memory_space<smem>>
    %401 = vector.broadcast %400 : f32 to vector<16x16xf32>
    %402 = arith.mulf %401, %272 : vector<16x16xf32>
    %403 = arith.addf %399, %402 : vector<16x16xf32>
    %c28 = arith.constant 28 : index
    %404 = memref.load %arg5[%c28] : memref<144xf32, #tpu.memory_space<smem>>
    %405 = vector.broadcast %404 : f32 to vector<16x16xf32>
    %406 = arith.mulf %405, %274 : vector<16x16xf32>
    %407 = arith.addf %403, %406 : vector<16x16xf32>
    %c29 = arith.constant 29 : index
    %408 = memref.load %arg5[%c29] : memref<144xf32, #tpu.memory_space<smem>>
    %409 = vector.broadcast %408 : f32 to vector<16x16xf32>
    %410 = arith.mulf %409, %276 : vector<16x16xf32>
    %411 = arith.addf %407, %410 : vector<16x16xf32>
    %c30 = arith.constant 30 : index
    %412 = memref.load %arg5[%c30] : memref<144xf32, #tpu.memory_space<smem>>
    %413 = vector.broadcast %412 : f32 to vector<16x16xf32>
    %414 = arith.mulf %413, %278 : vector<16x16xf32>
    %415 = arith.addf %411, %414 : vector<16x16xf32>
    %c31 = arith.constant 31 : index
    %416 = memref.load %arg5[%c31] : memref<144xf32, #tpu.memory_space<smem>>
    %417 = vector.broadcast %416 : f32 to vector<16x16xf32>
    %418 = arith.mulf %417, %280 : vector<16x16xf32>
    %419 = arith.addf %415, %418 : vector<16x16xf32>
    %c32 = arith.constant 32 : index
    %420 = memref.load %arg5[%c32] : memref<144xf32, #tpu.memory_space<smem>>
    %421 = vector.broadcast %420 : f32 to vector<16x16xf32>
    %422 = arith.mulf %421, %282 : vector<16x16xf32>
    %423 = arith.addf %419, %422 : vector<16x16xf32>
    %c33 = arith.constant 33 : index
    %424 = memref.load %arg5[%c33] : memref<144xf32, #tpu.memory_space<smem>>
    %425 = vector.broadcast %424 : f32 to vector<16x16xf32>
    %426 = arith.mulf %425, %284 : vector<16x16xf32>
    %427 = arith.addf %423, %426 : vector<16x16xf32>
    %c34 = arith.constant 34 : index
    %428 = memref.load %arg5[%c34] : memref<144xf32, #tpu.memory_space<smem>>
    %429 = vector.broadcast %428 : f32 to vector<16x16xf32>
    %430 = arith.mulf %429, %286 : vector<16x16xf32>
    %431 = arith.addf %427, %430 : vector<16x16xf32>
    %c35 = arith.constant 35 : index
    %432 = memref.load %arg5[%c35] : memref<144xf32, #tpu.memory_space<smem>>
    %433 = vector.broadcast %432 : f32 to vector<16x16xf32>
    %434 = arith.mulf %433, %288 : vector<16x16xf32>
    %435 = arith.addf %431, %434 : vector<16x16xf32>
    %cst_151 = arith.constant 0.000000e+00 : f32
    %436 = vector.broadcast %cst_151 : f32 to vector<16x16xf32>
    %437 = arith.cmpf oge, %435, %436 : vector<16x16xf32>
    %438 = vector.broadcast %214 : f32 to vector<16x16xf32>
    %439 = arith.mulf %438, %435 : vector<16x16xf32>
    %440 = arith.select %437, %435, %439 : vector<16x16xi1>, vector<16x16xf32>
    %c0_152 = arith.constant 0 : index
    %c1_153 = arith.constant 1 : index
    %c1_154 = arith.constant 1 : index
    %441 = vector.load %arg13[%c0_152, %c1_153, %c1_154] : memref<4x18x18xf32, #tpu.memory_space<vmem>>, vector<1x16x16xf32>
    %442 = vector.shape_cast %441 : vector<1x16x16xf32> to vector<16x16xf32>
    %443 = vector.shape_cast %440 : vector<16x16xf32> to vector<1x16x16xf32>
    tpu.vector_store %arg13[%c0_152, %c1_153, %c1_154], %443 {strides = array<i32>} : memref<4x18x18xf32, #tpu.memory_space<vmem>>, vector<1x16x16xf32>,
    %c1_155 = arith.constant 1 : index
    %444 = memref.load %arg6[%c1_155] : memref<4xf32, #tpu.memory_space<smem>>
    %445 = vector.broadcast %444 : f32 to vector<16x16xf32>
    %446 = arith.addf %216, %445 : vector<16x16xf32>
    %c36 = arith.constant 36 : index
    %447 = memref.load %arg5[%c36] : memref<144xf32, #tpu.memory_space<smem>>
    %448 = vector.broadcast %447 : f32 to vector<16x16xf32>
    %449 = arith.mulf %448, %218 : vector<16x16xf32>
    %450 = arith.addf %446, %449 : vector<16x16xf32>
    %c37 = arith.constant 37 : index
    %451 = memref.load %arg5[%c37] : memref<144xf32, #tpu.memory_space<smem>>
    %452 = vector.broadcast %451 : f32 to vector<16x16xf32>
    %453 = arith.mulf %452, %220 : vector<16x16xf32>
    %454 = arith.addf %450, %453 : vector<16x16xf32>
    %c38 = arith.constant 38 : index
    %455 = memref.load %arg5[%c38] : memref<144xf32, #tpu.memory_space<smem>>
    %456 = vector.broadcast %455 : f32 to vector<16x16xf32>
    %457 = arith.mulf %456, %222 : vector<16x16xf32>
    %458 = arith.addf %454, %457 : vector<16x16xf32>
    %c39 = arith.constant 39 : index
    %459 = memref.load %arg5[%c39] : memref<144xf32, #tpu.memory_space<smem>>
    %460 = vector.broadcast %459 : f32 to vector<16x16xf32>
    %461 = arith.mulf %460, %224 : vector<16x16xf32>
    %462 = arith.addf %458, %461 : vector<16x16xf32>
    %c40 = arith.constant 40 : index
    %463 = memref.load %arg5[%c40] : memref<144xf32, #tpu.memory_space<smem>>
    %464 = vector.broadcast %463 : f32 to vector<16x16xf32>
    %465 = arith.mulf %464, %226 : vector<16x16xf32>
    %466 = arith.addf %462, %465 : vector<16x16xf32>
    %c41 = arith.constant 41 : index
    %467 = memref.load %arg5[%c41] : memref<144xf32, #tpu.memory_space<smem>>
    %468 = vector.broadcast %467 : f32 to vector<16x16xf32>
    %469 = arith.mulf %468, %228 : vector<16x16xf32>
    %470 = arith.addf %466, %469 : vector<16x16xf32>
    %c42 = arith.constant 42 : index
    %471 = memref.load %arg5[%c42] : memref<144xf32, #tpu.memory_space<smem>>
    %472 = vector.broadcast %471 : f32 to vector<16x16xf32>
    %473 = arith.mulf %472, %230 : vector<16x16xf32>
    %474 = arith.addf %470, %473 : vector<16x16xf32>
    %c43 = arith.constant 43 : index
    %475 = memref.load %arg5[%c43] : memref<144xf32, #tpu.memory_space<smem>>
    %476 = vector.broadcast %475 : f32 to vector<16x16xf32>
    %477 = arith.mulf %476, %232 : vector<16x16xf32>
    %478 = arith.addf %474, %477 : vector<16x16xf32>
    %c44 = arith.constant 44 : index
    %479 = memref.load %arg5[%c44] : memref<144xf32, #tpu.memory_space<smem>>
    %480 = vector.broadcast %479 : f32 to vector<16x16xf32>
    %481 = arith.mulf %480, %234 : vector<16x16xf32>
    %482 = arith.addf %478, %481 : vector<16x16xf32>
    %c45 = arith.constant 45 : index
    %483 = memref.load %arg5[%c45] : memref<144xf32, #tpu.memory_space<smem>>
    %484 = vector.broadcast %483 : f32 to vector<16x16xf32>
    %485 = arith.mulf %484, %236 : vector<16x16xf32>
    %486 = arith.addf %482, %485 : vector<16x16xf32>
    %c46 = arith.constant 46 : index
    %487 = memref.load %arg5[%c46] : memref<144xf32, #tpu.memory_space<smem>>
    %488 = vector.broadcast %487 : f32 to vector<16x16xf32>
    %489 = arith.mulf %488, %238 : vector<16x16xf32>
    %490 = arith.addf %486, %489 : vector<16x16xf32>
    %c47 = arith.constant 47 : index
    %491 = memref.load %arg5[%c47] : memref<144xf32, #tpu.memory_space<smem>>
    %492 = vector.broadcast %491 : f32 to vector<16x16xf32>
    %493 = arith.mulf %492, %240 : vector<16x16xf32>
    %494 = arith.addf %490, %493 : vector<16x16xf32>
    %c48 = arith.constant 48 : index
    %495 = memref.load %arg5[%c48] : memref<144xf32, #tpu.memory_space<smem>>
    %496 = vector.broadcast %495 : f32 to vector<16x16xf32>
    %497 = arith.mulf %496, %242 : vector<16x16xf32>
    %498 = arith.addf %494, %497 : vector<16x16xf32>
    %c49 = arith.constant 49 : index
    %499 = memref.load %arg5[%c49] : memref<144xf32, #tpu.memory_space<smem>>
    %500 = vector.broadcast %499 : f32 to vector<16x16xf32>
    %501 = arith.mulf %500, %244 : vector<16x16xf32>
    %502 = arith.addf %498, %501 : vector<16x16xf32>
    %c50 = arith.constant 50 : index
    %503 = memref.load %arg5[%c50] : memref<144xf32, #tpu.memory_space<smem>>
    %504 = vector.broadcast %503 : f32 to vector<16x16xf32>
    %505 = arith.mulf %504, %246 : vector<16x16xf32>
    %506 = arith.addf %502, %505 : vector<16x16xf32>
    %c51 = arith.constant 51 : index
    %507 = memref.load %arg5[%c51] : memref<144xf32, #tpu.memory_space<smem>>
    %508 = vector.broadcast %507 : f32 to vector<16x16xf32>
    %509 = arith.mulf %508, %248 : vector<16x16xf32>
    %510 = arith.addf %506, %509 : vector<16x16xf32>
    %c52 = arith.constant 52 : index
    %511 = memref.load %arg5[%c52] : memref<144xf32, #tpu.memory_space<smem>>
    %512 = vector.broadcast %511 : f32 to vector<16x16xf32>
    %513 = arith.mulf %512, %250 : vector<16x16xf32>
    %514 = arith.addf %510, %513 : vector<16x16xf32>
    %c53 = arith.constant 53 : index
    %515 = memref.load %arg5[%c53] : memref<144xf32, #tpu.memory_space<smem>>
    %516 = vector.broadcast %515 : f32 to vector<16x16xf32>
    %517 = arith.mulf %516, %252 : vector<16x16xf32>
    %518 = arith.addf %514, %517 : vector<16x16xf32>
    %c54 = arith.constant 54 : index
    %519 = memref.load %arg5[%c54] : memref<144xf32, #tpu.memory_space<smem>>
    %520 = vector.broadcast %519 : f32 to vector<16x16xf32>
    %521 = arith.mulf %520, %254 : vector<16x16xf32>
    %522 = arith.addf %518, %521 : vector<16x16xf32>
    %c55 = arith.constant 55 : index
    %523 = memref.load %arg5[%c55] : memref<144xf32, #tpu.memory_space<smem>>
    %524 = vector.broadcast %523 : f32 to vector<16x16xf32>
    %525 = arith.mulf %524, %256 : vector<16x16xf32>
    %526 = arith.addf %522, %525 : vector<16x16xf32>
    %c56 = arith.constant 56 : index
    %527 = memref.load %arg5[%c56] : memref<144xf32, #tpu.memory_space<smem>>
    %528 = vector.broadcast %527 : f32 to vector<16x16xf32>
    %529 = arith.mulf %528, %258 : vector<16x16xf32>
    %530 = arith.addf %526, %529 : vector<16x16xf32>
    %c57 = arith.constant 57 : index
    %531 = memref.load %arg5[%c57] : memref<144xf32, #tpu.memory_space<smem>>
    %532 = vector.broadcast %531 : f32 to vector<16x16xf32>
    %533 = arith.mulf %532, %260 : vector<16x16xf32>
    %534 = arith.addf %530, %533 : vector<16x16xf32>
    %c58 = arith.constant 58 : index
    %535 = memref.load %arg5[%c58] : memref<144xf32, #tpu.memory_space<smem>>
    %536 = vector.broadcast %535 : f32 to vector<16x16xf32>
    %537 = arith.mulf %536, %262 : vector<16x16xf32>
    %538 = arith.addf %534, %537 : vector<16x16xf32>
    %c59 = arith.constant 59 : index
    %539 = memref.load %arg5[%c59] : memref<144xf32, #tpu.memory_space<smem>>
    %540 = vector.broadcast %539 : f32 to vector<16x16xf32>
    %541 = arith.mulf %540, %264 : vector<16x16xf32>
    %542 = arith.addf %538, %541 : vector<16x16xf32>
    %c60 = arith.constant 60 : index
    %543 = memref.load %arg5[%c60] : memref<144xf32, #tpu.memory_space<smem>>
    %544 = vector.broadcast %543 : f32 to vector<16x16xf32>
    %545 = arith.mulf %544, %266 : vector<16x16xf32>
    %546 = arith.addf %542, %545 : vector<16x16xf32>
    %c61 = arith.constant 61 : index
    %547 = memref.load %arg5[%c61] : memref<144xf32, #tpu.memory_space<smem>>
    %548 = vector.broadcast %547 : f32 to vector<16x16xf32>
    %549 = arith.mulf %548, %268 : vector<16x16xf32>
    %550 = arith.addf %546, %549 : vector<16x16xf32>
    %c62 = arith.constant 62 : index
    %551 = memref.load %arg5[%c62] : memref<144xf32, #tpu.memory_space<smem>>
    %552 = vector.broadcast %551 : f32 to vector<16x16xf32>
    %553 = arith.mulf %552, %270 : vector<16x16xf32>
    %554 = arith.addf %550, %553 : vector<16x16xf32>
    %c63 = arith.constant 63 : index
    %555 = memref.load %arg5[%c63] : memref<144xf32, #tpu.memory_space<smem>>
    %556 = vector.broadcast %555 : f32 to vector<16x16xf32>
    %557 = arith.mulf %556, %272 : vector<16x16xf32>
    %558 = arith.addf %554, %557 : vector<16x16xf32>
    %c64 = arith.constant 64 : index
    %559 = memref.load %arg5[%c64] : memref<144xf32, #tpu.memory_space<smem>>
    %560 = vector.broadcast %559 : f32 to vector<16x16xf32>
    %561 = arith.mulf %560, %274 : vector<16x16xf32>
    %562 = arith.addf %558, %561 : vector<16x16xf32>
    %c65 = arith.constant 65 : index
    %563 = memref.load %arg5[%c65] : memref<144xf32, #tpu.memory_space<smem>>
    %564 = vector.broadcast %563 : f32 to vector<16x16xf32>
    %565 = arith.mulf %564, %276 : vector<16x16xf32>
    %566 = arith.addf %562, %565 : vector<16x16xf32>
    %c66 = arith.constant 66 : index
    %567 = memref.load %arg5[%c66] : memref<144xf32, #tpu.memory_space<smem>>
    %568 = vector.broadcast %567 : f32 to vector<16x16xf32>
    %569 = arith.mulf %568, %278 : vector<16x16xf32>
    %570 = arith.addf %566, %569 : vector<16x16xf32>
    %c67 = arith.constant 67 : index
    %571 = memref.load %arg5[%c67] : memref<144xf32, #tpu.memory_space<smem>>
    %572 = vector.broadcast %571 : f32 to vector<16x16xf32>
    %573 = arith.mulf %572, %280 : vector<16x16xf32>
    %574 = arith.addf %570, %573 : vector<16x16xf32>
    %c68 = arith.constant 68 : index
    %575 = memref.load %arg5[%c68] : memref<144xf32, #tpu.memory_space<smem>>
    %576 = vector.broadcast %575 : f32 to vector<16x16xf32>
    %577 = arith.mulf %576, %282 : vector<16x16xf32>
    %578 = arith.addf %574, %577 : vector<16x16xf32>
    %c69 = arith.constant 69 : index
    %579 = memref.load %arg5[%c69] : memref<144xf32, #tpu.memory_space<smem>>
    %580 = vector.broadcast %579 : f32 to vector<16x16xf32>
    %581 = arith.mulf %580, %284 : vector<16x16xf32>
    %582 = arith.addf %578, %581 : vector<16x16xf32>
    %c70 = arith.constant 70 : index
    %583 = memref.load %arg5[%c70] : memref<144xf32, #tpu.memory_space<smem>>
    %584 = vector.broadcast %583 : f32 to vector<16x16xf32>
    %585 = arith.mulf %584, %286 : vector<16x16xf32>
    %586 = arith.addf %582, %585 : vector<16x16xf32>
    %c71 = arith.constant 71 : index
    %587 = memref.load %arg5[%c71] : memref<144xf32, #tpu.memory_space<smem>>
    %588 = vector.broadcast %587 : f32 to vector<16x16xf32>
    %589 = arith.mulf %588, %288 : vector<16x16xf32>
    %590 = arith.addf %586, %589 : vector<16x16xf32>
    %cst_156 = arith.constant 0.000000e+00 : f32
    %591 = vector.broadcast %cst_156 : f32 to vector<16x16xf32>
    %592 = arith.cmpf oge, %590, %591 : vector<16x16xf32>
    %593 = vector.broadcast %214 : f32 to vector<16x16xf32>
    %594 = arith.mulf %593, %590 : vector<16x16xf32>
    %595 = arith.select %592, %590, %594 : vector<16x16xi1>, vector<16x16xf32>
    %c1_157 = arith.constant 1 : index
    %c1_158 = arith.constant 1 : index
    %c1_159 = arith.constant 1 : index
    %596 = vector.load %arg13[%c1_157, %c1_158, %c1_159] : memref<4x18x18xf32, #tpu.memory_space<vmem>>, vector<1x16x16xf32>
    %597 = vector.shape_cast %596 : vector<1x16x16xf32> to vector<16x16xf32>
    %598 = vector.shape_cast %595 : vector<16x16xf32> to vector<1x16x16xf32>
    tpu.vector_store %arg13[%c1_157, %c1_158, %c1_159], %598 {strides = array<i32>} : memref<4x18x18xf32, #tpu.memory_space<vmem>>, vector<1x16x16xf32>,
    %c2_160 = arith.constant 2 : index
    %599 = memref.load %arg6[%c2_160] : memref<4xf32, #tpu.memory_space<smem>>
    %600 = vector.broadcast %599 : f32 to vector<16x16xf32>
    %601 = arith.addf %216, %600 : vector<16x16xf32>
    %c72 = arith.constant 72 : index
    %602 = memref.load %arg5[%c72] : memref<144xf32, #tpu.memory_space<smem>>
    %603 = vector.broadcast %602 : f32 to vector<16x16xf32>
    %604 = arith.mulf %603, %218 : vector<16x16xf32>
    %605 = arith.addf %601, %604 : vector<16x16xf32>
    %c73 = arith.constant 73 : index
    %606 = memref.load %arg5[%c73] : memref<144xf32, #tpu.memory_space<smem>>
    %607 = vector.broadcast %606 : f32 to vector<16x16xf32>
    %608 = arith.mulf %607, %220 : vector<16x16xf32>
    %609 = arith.addf %605, %608 : vector<16x16xf32>
    %c74 = arith.constant 74 : index
    %610 = memref.load %arg5[%c74] : memref<144xf32, #tpu.memory_space<smem>>
    %611 = vector.broadcast %610 : f32 to vector<16x16xf32>
    %612 = arith.mulf %611, %222 : vector<16x16xf32>
    %613 = arith.addf %609, %612 : vector<16x16xf32>
    %c75 = arith.constant 75 : index
    %614 = memref.load %arg5[%c75] : memref<144xf32, #tpu.memory_space<smem>>
    %615 = vector.broadcast %614 : f32 to vector<16x16xf32>
    %616 = arith.mulf %615, %224 : vector<16x16xf32>
    %617 = arith.addf %613, %616 : vector<16x16xf32>
    %c76 = arith.constant 76 : index
    %618 = memref.load %arg5[%c76] : memref<144xf32, #tpu.memory_space<smem>>
    %619 = vector.broadcast %618 : f32 to vector<16x16xf32>
    %620 = arith.mulf %619, %226 : vector<16x16xf32>
    %621 = arith.addf %617, %620 : vector<16x16xf32>
    %c77 = arith.constant 77 : index
    %622 = memref.load %arg5[%c77] : memref<144xf32, #tpu.memory_space<smem>>
    %623 = vector.broadcast %622 : f32 to vector<16x16xf32>
    %624 = arith.mulf %623, %228 : vector<16x16xf32>
    %625 = arith.addf %621, %624 : vector<16x16xf32>
    %c78 = arith.constant 78 : index
    %626 = memref.load %arg5[%c78] : memref<144xf32, #tpu.memory_space<smem>>
    %627 = vector.broadcast %626 : f32 to vector<16x16xf32>
    %628 = arith.mulf %627, %230 : vector<16x16xf32>
    %629 = arith.addf %625, %628 : vector<16x16xf32>
    %c79 = arith.constant 79 : index
    %630 = memref.load %arg5[%c79] : memref<144xf32, #tpu.memory_space<smem>>
    %631 = vector.broadcast %630 : f32 to vector<16x16xf32>
    %632 = arith.mulf %631, %232 : vector<16x16xf32>
    %633 = arith.addf %629, %632 : vector<16x16xf32>
    %c80 = arith.constant 80 : index
    %634 = memref.load %arg5[%c80] : memref<144xf32, #tpu.memory_space<smem>>
    %635 = vector.broadcast %634 : f32 to vector<16x16xf32>
    %636 = arith.mulf %635, %234 : vector<16x16xf32>
    %637 = arith.addf %633, %636 : vector<16x16xf32>
    %c81 = arith.constant 81 : index
    %638 = memref.load %arg5[%c81] : memref<144xf32, #tpu.memory_space<smem>>
    %639 = vector.broadcast %638 : f32 to vector<16x16xf32>
    %640 = arith.mulf %639, %236 : vector<16x16xf32>
    %641 = arith.addf %637, %640 : vector<16x16xf32>
    %c82 = arith.constant 82 : index
    %642 = memref.load %arg5[%c82] : memref<144xf32, #tpu.memory_space<smem>>
    %643 = vector.broadcast %642 : f32 to vector<16x16xf32>
    %644 = arith.mulf %643, %238 : vector<16x16xf32>
    %645 = arith.addf %641, %644 : vector<16x16xf32>
    %c83 = arith.constant 83 : index
    %646 = memref.load %arg5[%c83] : memref<144xf32, #tpu.memory_space<smem>>
    %647 = vector.broadcast %646 : f32 to vector<16x16xf32>
    %648 = arith.mulf %647, %240 : vector<16x16xf32>
    %649 = arith.addf %645, %648 : vector<16x16xf32>
    %c84 = arith.constant 84 : index
    %650 = memref.load %arg5[%c84] : memref<144xf32, #tpu.memory_space<smem>>
    %651 = vector.broadcast %650 : f32 to vector<16x16xf32>
    %652 = arith.mulf %651, %242 : vector<16x16xf32>
    %653 = arith.addf %649, %652 : vector<16x16xf32>
    %c85 = arith.constant 85 : index
    %654 = memref.load %arg5[%c85] : memref<144xf32, #tpu.memory_space<smem>>
    %655 = vector.broadcast %654 : f32 to vector<16x16xf32>
    %656 = arith.mulf %655, %244 : vector<16x16xf32>
    %657 = arith.addf %653, %656 : vector<16x16xf32>
    %c86 = arith.constant 86 : index
    %658 = memref.load %arg5[%c86] : memref<144xf32, #tpu.memory_space<smem>>
    %659 = vector.broadcast %658 : f32 to vector<16x16xf32>
    %660 = arith.mulf %659, %246 : vector<16x16xf32>
    %661 = arith.addf %657, %660 : vector<16x16xf32>
    %c87 = arith.constant 87 : index
    %662 = memref.load %arg5[%c87] : memref<144xf32, #tpu.memory_space<smem>>
    %663 = vector.broadcast %662 : f32 to vector<16x16xf32>
    %664 = arith.mulf %663, %248 : vector<16x16xf32>
    %665 = arith.addf %661, %664 : vector<16x16xf32>
    %c88 = arith.constant 88 : index
    %666 = memref.load %arg5[%c88] : memref<144xf32, #tpu.memory_space<smem>>
    %667 = vector.broadcast %666 : f32 to vector<16x16xf32>
    %668 = arith.mulf %667, %250 : vector<16x16xf32>
    %669 = arith.addf %665, %668 : vector<16x16xf32>
    %c89 = arith.constant 89 : index
    %670 = memref.load %arg5[%c89] : memref<144xf32, #tpu.memory_space<smem>>
    %671 = vector.broadcast %670 : f32 to vector<16x16xf32>
    %672 = arith.mulf %671, %252 : vector<16x16xf32>
    %673 = arith.addf %669, %672 : vector<16x16xf32>
    %c90 = arith.constant 90 : index
    %674 = memref.load %arg5[%c90] : memref<144xf32, #tpu.memory_space<smem>>
    %675 = vector.broadcast %674 : f32 to vector<16x16xf32>
    %676 = arith.mulf %675, %254 : vector<16x16xf32>
    %677 = arith.addf %673, %676 : vector<16x16xf32>
    %c91 = arith.constant 91 : index
    %678 = memref.load %arg5[%c91] : memref<144xf32, #tpu.memory_space<smem>>
    %679 = vector.broadcast %678 : f32 to vector<16x16xf32>
    %680 = arith.mulf %679, %256 : vector<16x16xf32>
    %681 = arith.addf %677, %680 : vector<16x16xf32>
    %c92 = arith.constant 92 : index
    %682 = memref.load %arg5[%c92] : memref<144xf32, #tpu.memory_space<smem>>
    %683 = vector.broadcast %682 : f32 to vector<16x16xf32>
    %684 = arith.mulf %683, %258 : vector<16x16xf32>
    %685 = arith.addf %681, %684 : vector<16x16xf32>
    %c93 = arith.constant 93 : index
    %686 = memref.load %arg5[%c93] : memref<144xf32, #tpu.memory_space<smem>>
    %687 = vector.broadcast %686 : f32 to vector<16x16xf32>
    %688 = arith.mulf %687, %260 : vector<16x16xf32>
    %689 = arith.addf %685, %688 : vector<16x16xf32>
    %c94 = arith.constant 94 : index
    %690 = memref.load %arg5[%c94] : memref<144xf32, #tpu.memory_space<smem>>
    %691 = vector.broadcast %690 : f32 to vector<16x16xf32>
    %692 = arith.mulf %691, %262 : vector<16x16xf32>
    %693 = arith.addf %689, %692 : vector<16x16xf32>
    %c95 = arith.constant 95 : index
    %694 = memref.load %arg5[%c95] : memref<144xf32, #tpu.memory_space<smem>>
    %695 = vector.broadcast %694 : f32 to vector<16x16xf32>
    %696 = arith.mulf %695, %264 : vector<16x16xf32>
    %697 = arith.addf %693, %696 : vector<16x16xf32>
    %c96 = arith.constant 96 : index
    %698 = memref.load %arg5[%c96] : memref<144xf32, #tpu.memory_space<smem>>
    %699 = vector.broadcast %698 : f32 to vector<16x16xf32>
    %700 = arith.mulf %699, %266 : vector<16x16xf32>
    %701 = arith.addf %697, %700 : vector<16x16xf32>
    %c97 = arith.constant 97 : index
    %702 = memref.load %arg5[%c97] : memref<144xf32, #tpu.memory_space<smem>>
    %703 = vector.broadcast %702 : f32 to vector<16x16xf32>
    %704 = arith.mulf %703, %268 : vector<16x16xf32>
    %705 = arith.addf %701, %704 : vector<16x16xf32>
    %c98 = arith.constant 98 : index
    %706 = memref.load %arg5[%c98] : memref<144xf32, #tpu.memory_space<smem>>
    %707 = vector.broadcast %706 : f32 to vector<16x16xf32>
    %708 = arith.mulf %707, %270 : vector<16x16xf32>
    %709 = arith.addf %705, %708 : vector<16x16xf32>
    %c99 = arith.constant 99 : index
    %710 = memref.load %arg5[%c99] : memref<144xf32, #tpu.memory_space<smem>>
    %711 = vector.broadcast %710 : f32 to vector<16x16xf32>
    %712 = arith.mulf %711, %272 : vector<16x16xf32>
    %713 = arith.addf %709, %712 : vector<16x16xf32>
    %c100 = arith.constant 100 : index
    %714 = memref.load %arg5[%c100] : memref<144xf32, #tpu.memory_space<smem>>
    %715 = vector.broadcast %714 : f32 to vector<16x16xf32>
    %716 = arith.mulf %715, %274 : vector<16x16xf32>
    %717 = arith.addf %713, %716 : vector<16x16xf32>
    %c101 = arith.constant 101 : index
    %718 = memref.load %arg5[%c101] : memref<144xf32, #tpu.memory_space<smem>>
    %719 = vector.broadcast %718 : f32 to vector<16x16xf32>
    %720 = arith.mulf %719, %276 : vector<16x16xf32>
    %721 = arith.addf %717, %720 : vector<16x16xf32>
    %c102 = arith.constant 102 : index
    %722 = memref.load %arg5[%c102] : memref<144xf32, #tpu.memory_space<smem>>
    %723 = vector.broadcast %722 : f32 to vector<16x16xf32>
    %724 = arith.mulf %723, %278 : vector<16x16xf32>
    %725 = arith.addf %721, %724 : vector<16x16xf32>
    %c103 = arith.constant 103 : index
    %726 = memref.load %arg5[%c103] : memref<144xf32, #tpu.memory_space<smem>>
    %727 = vector.broadcast %726 : f32 to vector<16x16xf32>
    %728 = arith.mulf %727, %280 : vector<16x16xf32>
    %729 = arith.addf %725, %728 : vector<16x16xf32>
    %c104 = arith.constant 104 : index
    %730 = memref.load %arg5[%c104] : memref<144xf32, #tpu.memory_space<smem>>
    %731 = vector.broadcast %730 : f32 to vector<16x16xf32>
    %732 = arith.mulf %731, %282 : vector<16x16xf32>
    %733 = arith.addf %729, %732 : vector<16x16xf32>
    %c105 = arith.constant 105 : index
    %734 = memref.load %arg5[%c105] : memref<144xf32, #tpu.memory_space<smem>>
    %735 = vector.broadcast %734 : f32 to vector<16x16xf32>
    %736 = arith.mulf %735, %284 : vector<16x16xf32>
    %737 = arith.addf %733, %736 : vector<16x16xf32>
    %c106 = arith.constant 106 : index
    %738 = memref.load %arg5[%c106] : memref<144xf32, #tpu.memory_space<smem>>
    %739 = vector.broadcast %738 : f32 to vector<16x16xf32>
    %740 = arith.mulf %739, %286 : vector<16x16xf32>
    %741 = arith.addf %737, %740 : vector<16x16xf32>
    %c107 = arith.constant 107 : index
    %742 = memref.load %arg5[%c107] : memref<144xf32, #tpu.memory_space<smem>>
    %743 = vector.broadcast %742 : f32 to vector<16x16xf32>
    %744 = arith.mulf %743, %288 : vector<16x16xf32>
    %745 = arith.addf %741, %744 : vector<16x16xf32>
    %cst_161 = arith.constant 0.000000e+00 : f32
    %746 = vector.broadcast %cst_161 : f32 to vector<16x16xf32>
    %747 = arith.cmpf oge, %745, %746 : vector<16x16xf32>
    %748 = vector.broadcast %214 : f32 to vector<16x16xf32>
    %749 = arith.mulf %748, %745 : vector<16x16xf32>
    %750 = arith.select %747, %745, %749 : vector<16x16xi1>, vector<16x16xf32>
    %c2_162 = arith.constant 2 : index
    %c1_163 = arith.constant 1 : index
    %c1_164 = arith.constant 1 : index
    %751 = vector.load %arg13[%c2_162, %c1_163, %c1_164] : memref<4x18x18xf32, #tpu.memory_space<vmem>>, vector<1x16x16xf32>
    %752 = vector.shape_cast %751 : vector<1x16x16xf32> to vector<16x16xf32>
    %753 = vector.shape_cast %750 : vector<16x16xf32> to vector<1x16x16xf32>
    tpu.vector_store %arg13[%c2_162, %c1_163, %c1_164], %753 {strides = array<i32>} : memref<4x18x18xf32, #tpu.memory_space<vmem>>, vector<1x16x16xf32>,
    %c3_165 = arith.constant 3 : index
    %754 = memref.load %arg6[%c3_165] : memref<4xf32, #tpu.memory_space<smem>>
    %755 = vector.broadcast %754 : f32 to vector<16x16xf32>
    %756 = arith.addf %216, %755 : vector<16x16xf32>
    %c108 = arith.constant 108 : index
    %757 = memref.load %arg5[%c108] : memref<144xf32, #tpu.memory_space<smem>>
    %758 = vector.broadcast %757 : f32 to vector<16x16xf32>
    %759 = arith.mulf %758, %218 : vector<16x16xf32>
    %760 = arith.addf %756, %759 : vector<16x16xf32>
    %c109 = arith.constant 109 : index
    %761 = memref.load %arg5[%c109] : memref<144xf32, #tpu.memory_space<smem>>
    %762 = vector.broadcast %761 : f32 to vector<16x16xf32>
    %763 = arith.mulf %762, %220 : vector<16x16xf32>
    %764 = arith.addf %760, %763 : vector<16x16xf32>
    %c110 = arith.constant 110 : index
    %765 = memref.load %arg5[%c110] : memref<144xf32, #tpu.memory_space<smem>>
    %766 = vector.broadcast %765 : f32 to vector<16x16xf32>
    %767 = arith.mulf %766, %222 : vector<16x16xf32>
    %768 = arith.addf %764, %767 : vector<16x16xf32>
    %c111 = arith.constant 111 : index
    %769 = memref.load %arg5[%c111] : memref<144xf32, #tpu.memory_space<smem>>
    %770 = vector.broadcast %769 : f32 to vector<16x16xf32>
    %771 = arith.mulf %770, %224 : vector<16x16xf32>
    %772 = arith.addf %768, %771 : vector<16x16xf32>
    %c112 = arith.constant 112 : index
    %773 = memref.load %arg5[%c112] : memref<144xf32, #tpu.memory_space<smem>>
    %774 = vector.broadcast %773 : f32 to vector<16x16xf32>
    %775 = arith.mulf %774, %226 : vector<16x16xf32>
    %776 = arith.addf %772, %775 : vector<16x16xf32>
    %c113 = arith.constant 113 : index
    %777 = memref.load %arg5[%c113] : memref<144xf32, #tpu.memory_space<smem>>
    %778 = vector.broadcast %777 : f32 to vector<16x16xf32>
    %779 = arith.mulf %778, %228 : vector<16x16xf32>
    %780 = arith.addf %776, %779 : vector<16x16xf32>
    %c114 = arith.constant 114 : index
    %781 = memref.load %arg5[%c114] : memref<144xf32, #tpu.memory_space<smem>>
    %782 = vector.broadcast %781 : f32 to vector<16x16xf32>
    %783 = arith.mulf %782, %230 : vector<16x16xf32>
    %784 = arith.addf %780, %783 : vector<16x16xf32>
    %c115 = arith.constant 115 : index
    %785 = memref.load %arg5[%c115] : memref<144xf32, #tpu.memory_space<smem>>
    %786 = vector.broadcast %785 : f32 to vector<16x16xf32>
    %787 = arith.mulf %786, %232 : vector<16x16xf32>
    %788 = arith.addf %784, %787 : vector<16x16xf32>
    %c116 = arith.constant 116 : index
    %789 = memref.load %arg5[%c116] : memref<144xf32, #tpu.memory_space<smem>>
    %790 = vector.broadcast %789 : f32 to vector<16x16xf32>
    %791 = arith.mulf %790, %234 : vector<16x16xf32>
    %792 = arith.addf %788, %791 : vector<16x16xf32>
    %c117 = arith.constant 117 : index
    %793 = memref.load %arg5[%c117] : memref<144xf32, #tpu.memory_space<smem>>
    %794 = vector.broadcast %793 : f32 to vector<16x16xf32>
    %795 = arith.mulf %794, %236 : vector<16x16xf32>
    %796 = arith.addf %792, %795 : vector<16x16xf32>
    %c118 = arith.constant 118 : index
    %797 = memref.load %arg5[%c118] : memref<144xf32, #tpu.memory_space<smem>>
    %798 = vector.broadcast %797 : f32 to vector<16x16xf32>
    %799 = arith.mulf %798, %238 : vector<16x16xf32>
    %800 = arith.addf %796, %799 : vector<16x16xf32>
    %c119 = arith.constant 119 : index
    %801 = memref.load %arg5[%c119] : memref<144xf32, #tpu.memory_space<smem>>
    %802 = vector.broadcast %801 : f32 to vector<16x16xf32>
    %803 = arith.mulf %802, %240 : vector<16x16xf32>
    %804 = arith.addf %800, %803 : vector<16x16xf32>
    %c120 = arith.constant 120 : index
    %805 = memref.load %arg5[%c120] : memref<144xf32, #tpu.memory_space<smem>>
    %806 = vector.broadcast %805 : f32 to vector<16x16xf32>
    %807 = arith.mulf %806, %242 : vector<16x16xf32>
    %808 = arith.addf %804, %807 : vector<16x16xf32>
    %c121 = arith.constant 121 : index
    %809 = memref.load %arg5[%c121] : memref<144xf32, #tpu.memory_space<smem>>
    %810 = vector.broadcast %809 : f32 to vector<16x16xf32>
    %811 = arith.mulf %810, %244 : vector<16x16xf32>
    %812 = arith.addf %808, %811 : vector<16x16xf32>
    %c122 = arith.constant 122 : index
    %813 = memref.load %arg5[%c122] : memref<144xf32, #tpu.memory_space<smem>>
    %814 = vector.broadcast %813 : f32 to vector<16x16xf32>
    %815 = arith.mulf %814, %246 : vector<16x16xf32>
    %816 = arith.addf %812, %815 : vector<16x16xf32>
    %c123 = arith.constant 123 : index
    %817 = memref.load %arg5[%c123] : memref<144xf32, #tpu.memory_space<smem>>
    %818 = vector.broadcast %817 : f32 to vector<16x16xf32>
    %819 = arith.mulf %818, %248 : vector<16x16xf32>
    %820 = arith.addf %816, %819 : vector<16x16xf32>
    %c124 = arith.constant 124 : index
    %821 = memref.load %arg5[%c124] : memref<144xf32, #tpu.memory_space<smem>>
    %822 = vector.broadcast %821 : f32 to vector<16x16xf32>
    %823 = arith.mulf %822, %250 : vector<16x16xf32>
    %824 = arith.addf %820, %823 : vector<16x16xf32>
    %c125 = arith.constant 125 : index
    %825 = memref.load %arg5[%c125] : memref<144xf32, #tpu.memory_space<smem>>
    %826 = vector.broadcast %825 : f32 to vector<16x16xf32>
    %827 = arith.mulf %826, %252 : vector<16x16xf32>
    %828 = arith.addf %824, %827 : vector<16x16xf32>
    %c126 = arith.constant 126 : index
    %829 = memref.load %arg5[%c126] : memref<144xf32, #tpu.memory_space<smem>>
    %830 = vector.broadcast %829 : f32 to vector<16x16xf32>
    %831 = arith.mulf %830, %254 : vector<16x16xf32>
    %832 = arith.addf %828, %831 : vector<16x16xf32>
    %c127 = arith.constant 127 : index
    %833 = memref.load %arg5[%c127] : memref<144xf32, #tpu.memory_space<smem>>
    %834 = vector.broadcast %833 : f32 to vector<16x16xf32>
    %835 = arith.mulf %834, %256 : vector<16x16xf32>
    %836 = arith.addf %832, %835 : vector<16x16xf32>
    %c128 = arith.constant 128 : index
    %837 = memref.load %arg5[%c128] : memref<144xf32, #tpu.memory_space<smem>>
    %838 = vector.broadcast %837 : f32 to vector<16x16xf32>
    %839 = arith.mulf %838, %258 : vector<16x16xf32>
    %840 = arith.addf %836, %839 : vector<16x16xf32>
    %c129 = arith.constant 129 : index
    %841 = memref.load %arg5[%c129] : memref<144xf32, #tpu.memory_space<smem>>
    %842 = vector.broadcast %841 : f32 to vector<16x16xf32>
    %843 = arith.mulf %842, %260 : vector<16x16xf32>
    %844 = arith.addf %840, %843 : vector<16x16xf32>
    %c130 = arith.constant 130 : index
    %845 = memref.load %arg5[%c130] : memref<144xf32, #tpu.memory_space<smem>>
    %846 = vector.broadcast %845 : f32 to vector<16x16xf32>
    %847 = arith.mulf %846, %262 : vector<16x16xf32>
    %848 = arith.addf %844, %847 : vector<16x16xf32>
    %c131 = arith.constant 131 : index
    %849 = memref.load %arg5[%c131] : memref<144xf32, #tpu.memory_space<smem>>
    %850 = vector.broadcast %849 : f32 to vector<16x16xf32>
    %851 = arith.mulf %850, %264 : vector<16x16xf32>
    %852 = arith.addf %848, %851 : vector<16x16xf32>
    %c132 = arith.constant 132 : index
    %853 = memref.load %arg5[%c132] : memref<144xf32, #tpu.memory_space<smem>>
    %854 = vector.broadcast %853 : f32 to vector<16x16xf32>
    %855 = arith.mulf %854, %266 : vector<16x16xf32>
    %856 = arith.addf %852, %855 : vector<16x16xf32>
    %c133 = arith.constant 133 : index
    %857 = memref.load %arg5[%c133] : memref<144xf32, #tpu.memory_space<smem>>
    %858 = vector.broadcast %857 : f32 to vector<16x16xf32>
    %859 = arith.mulf %858, %268 : vector<16x16xf32>
    %860 = arith.addf %856, %859 : vector<16x16xf32>
    %c134 = arith.constant 134 : index
    %861 = memref.load %arg5[%c134] : memref<144xf32, #tpu.memory_space<smem>>
    %862 = vector.broadcast %861 : f32 to vector<16x16xf32>
    %863 = arith.mulf %862, %270 : vector<16x16xf32>
    %864 = arith.addf %860, %863 : vector<16x16xf32>
    %c135 = arith.constant 135 : index
    %865 = memref.load %arg5[%c135] : memref<144xf32, #tpu.memory_space<smem>>
    %866 = vector.broadcast %865 : f32 to vector<16x16xf32>
    %867 = arith.mulf %866, %272 : vector<16x16xf32>
    %868 = arith.addf %864, %867 : vector<16x16xf32>
    %c136 = arith.constant 136 : index
    %869 = memref.load %arg5[%c136] : memref<144xf32, #tpu.memory_space<smem>>
    %870 = vector.broadcast %869 : f32 to vector<16x16xf32>
    %871 = arith.mulf %870, %274 : vector<16x16xf32>
    %872 = arith.addf %868, %871 : vector<16x16xf32>
    %c137 = arith.constant 137 : index
    %873 = memref.load %arg5[%c137] : memref<144xf32, #tpu.memory_space<smem>>
    %874 = vector.broadcast %873 : f32 to vector<16x16xf32>
    %875 = arith.mulf %874, %276 : vector<16x16xf32>
    %876 = arith.addf %872, %875 : vector<16x16xf32>
    %c138 = arith.constant 138 : index
    %877 = memref.load %arg5[%c138] : memref<144xf32, #tpu.memory_space<smem>>
    %878 = vector.broadcast %877 : f32 to vector<16x16xf32>
    %879 = arith.mulf %878, %278 : vector<16x16xf32>
    %880 = arith.addf %876, %879 : vector<16x16xf32>
    %c139 = arith.constant 139 : index
    %881 = memref.load %arg5[%c139] : memref<144xf32, #tpu.memory_space<smem>>
    %882 = vector.broadcast %881 : f32 to vector<16x16xf32>
    %883 = arith.mulf %882, %280 : vector<16x16xf32>
    %884 = arith.addf %880, %883 : vector<16x16xf32>
    %c140 = arith.constant 140 : index
    %885 = memref.load %arg5[%c140] : memref<144xf32, #tpu.memory_space<smem>>
    %886 = vector.broadcast %885 : f32 to vector<16x16xf32>
    %887 = arith.mulf %886, %282 : vector<16x16xf32>
    %888 = arith.addf %884, %887 : vector<16x16xf32>
    %c141 = arith.constant 141 : index
    %889 = memref.load %arg5[%c141] : memref<144xf32, #tpu.memory_space<smem>>
    %890 = vector.broadcast %889 : f32 to vector<16x16xf32>
    %891 = arith.mulf %890, %284 : vector<16x16xf32>
    %892 = arith.addf %888, %891 : vector<16x16xf32>
    %c142 = arith.constant 142 : index
    %893 = memref.load %arg5[%c142] : memref<144xf32, #tpu.memory_space<smem>>
    %894 = vector.broadcast %893 : f32 to vector<16x16xf32>
    %895 = arith.mulf %894, %286 : vector<16x16xf32>
    %896 = arith.addf %892, %895 : vector<16x16xf32>
    %c143 = arith.constant 143 : index
    %897 = memref.load %arg5[%c143] : memref<144xf32, #tpu.memory_space<smem>>
    %898 = vector.broadcast %897 : f32 to vector<16x16xf32>
    %899 = arith.mulf %898, %288 : vector<16x16xf32>
    %900 = arith.addf %896, %899 : vector<16x16xf32>
    %cst_166 = arith.constant 0.000000e+00 : f32
    %901 = vector.broadcast %cst_166 : f32 to vector<16x16xf32>
    %902 = arith.cmpf oge, %900, %901 : vector<16x16xf32>
    %903 = vector.broadcast %214 : f32 to vector<16x16xf32>
    %904 = arith.mulf %903, %900 : vector<16x16xf32>
    %905 = arith.select %902, %900, %904 : vector<16x16xi1>, vector<16x16xf32>
    %c3_167 = arith.constant 3 : index
    %c1_168 = arith.constant 1 : index
    %c1_169 = arith.constant 1 : index
    %906 = vector.load %arg13[%c3_167, %c1_168, %c1_169] : memref<4x18x18xf32, #tpu.memory_space<vmem>>, vector<1x16x16xf32>
    %907 = vector.shape_cast %906 : vector<1x16x16xf32> to vector<16x16xf32>
    %908 = vector.shape_cast %905 : vector<16x16xf32> to vector<1x16x16xf32>
    tpu.vector_store %arg13[%c3_167, %c1_168, %c1_169], %908 {strides = array<i32>} : memref<4x18x18xf32, #tpu.memory_space<vmem>>, vector<1x16x16xf32>,
    %c0_170 = arith.constant 0 : index
    %c0_171 = arith.constant 0 : index
    %c0_172 = arith.constant 0 : index
    %909 = vector.load %arg13[%c0_170, %c0_171, %c0_172] : memref<4x18x18xf32, #tpu.memory_space<vmem>>, vector<1x16x16xf32>
    %910 = vector.shape_cast %909 : vector<1x16x16xf32> to vector<16x16xf32>
    %c0_173 = arith.constant 0 : index
    %c0_174 = arith.constant 0 : index
    %c1_175 = arith.constant 1 : index
    %911 = vector.load %arg13[%c0_173, %c0_174, %c1_175] : memref<4x18x18xf32, #tpu.memory_space<vmem>>, vector<1x16x16xf32>
    %912 = vector.shape_cast %911 : vector<1x16x16xf32> to vector<16x16xf32>
    %c0_176 = arith.constant 0 : index
    %c0_177 = arith.constant 0 : index
    %c2_178 = arith.constant 2 : index
    %913 = vector.load %arg13[%c0_176, %c0_177, %c2_178] : memref<4x18x18xf32, #tpu.memory_space<vmem>>, vector<1x16x16xf32>
    %914 = vector.shape_cast %913 : vector<1x16x16xf32> to vector<16x16xf32>
    %c0_179 = arith.constant 0 : index
    %c1_180 = arith.constant 1 : index
    %c0_181 = arith.constant 0 : index
    %915 = vector.load %arg13[%c0_179, %c1_180, %c0_181] : memref<4x18x18xf32, #tpu.memory_space<vmem>>, vector<1x16x16xf32>
    %916 = vector.shape_cast %915 : vector<1x16x16xf32> to vector<16x16xf32>
    %c0_182 = arith.constant 0 : index
    %c1_183 = arith.constant 1 : index
    %c1_184 = arith.constant 1 : index
    %917 = vector.load %arg13[%c0_182, %c1_183, %c1_184] : memref<4x18x18xf32, #tpu.memory_space<vmem>>, vector<1x16x16xf32>
    %918 = vector.shape_cast %917 : vector<1x16x16xf32> to vector<16x16xf32>
    %c0_185 = arith.constant 0 : index
    %c1_186 = arith.constant 1 : index
    %c2_187 = arith.constant 2 : index
    %919 = vector.load %arg13[%c0_185, %c1_186, %c2_187] : memref<4x18x18xf32, #tpu.memory_space<vmem>>, vector<1x16x16xf32>
    %920 = vector.shape_cast %919 : vector<1x16x16xf32> to vector<16x16xf32>
    %c0_188 = arith.constant 0 : index
    %c2_189 = arith.constant 2 : index
    %c0_190 = arith.constant 0 : index
    %921 = vector.load %arg13[%c0_188, %c2_189, %c0_190] : memref<4x18x18xf32, #tpu.memory_space<vmem>>, vector<1x16x16xf32>
    %922 = vector.shape_cast %921 : vector<1x16x16xf32> to vector<16x16xf32>
    %c0_191 = arith.constant 0 : index
    %c2_192 = arith.constant 2 : index
    %c1_193 = arith.constant 1 : index
    %923 = vector.load %arg13[%c0_191, %c2_192, %c1_193] : memref<4x18x18xf32, #tpu.memory_space<vmem>>, vector<1x16x16xf32>
    %924 = vector.shape_cast %923 : vector<1x16x16xf32> to vector<16x16xf32>
    %c0_194 = arith.constant 0 : index
    %c2_195 = arith.constant 2 : index
    %c2_196 = arith.constant 2 : index
    %925 = vector.load %arg13[%c0_194, %c2_195, %c2_196] : memref<4x18x18xf32, #tpu.memory_space<vmem>>, vector<1x16x16xf32>
    %926 = vector.shape_cast %925 : vector<1x16x16xf32> to vector<16x16xf32>
    %c1_197 = arith.constant 1 : index
    %c0_198 = arith.constant 0 : index
    %c0_199 = arith.constant 0 : index
    %927 = vector.load %arg13[%c1_197, %c0_198, %c0_199] : memref<4x18x18xf32, #tpu.memory_space<vmem>>, vector<1x16x16xf32>
    %928 = vector.shape_cast %927 : vector<1x16x16xf32> to vector<16x16xf32>
    %c1_200 = arith.constant 1 : index
    %c0_201 = arith.constant 0 : index
    %c1_202 = arith.constant 1 : index
    %929 = vector.load %arg13[%c1_200, %c0_201, %c1_202] : memref<4x18x18xf32, #tpu.memory_space<vmem>>, vector<1x16x16xf32>
    %930 = vector.shape_cast %929 : vector<1x16x16xf32> to vector<16x16xf32>
    %c1_203 = arith.constant 1 : index
    %c0_204 = arith.constant 0 : index
    %c2_205 = arith.constant 2 : index
    %931 = vector.load %arg13[%c1_203, %c0_204, %c2_205] : memref<4x18x18xf32, #tpu.memory_space<vmem>>, vector<1x16x16xf32>
    %932 = vector.shape_cast %931 : vector<1x16x16xf32> to vector<16x16xf32>
    %c1_206 = arith.constant 1 : index
    %c1_207 = arith.constant 1 : index
    %c0_208 = arith.constant 0 : index
    %933 = vector.load %arg13[%c1_206, %c1_207, %c0_208] : memref<4x18x18xf32, #tpu.memory_space<vmem>>, vector<1x16x16xf32>
    %934 = vector.shape_cast %933 : vector<1x16x16xf32> to vector<16x16xf32>
    %c1_209 = arith.constant 1 : index
    %c1_210 = arith.constant 1 : index
    %c1_211 = arith.constant 1 : index
    %935 = vector.load %arg13[%c1_209, %c1_210, %c1_211] : memref<4x18x18xf32, #tpu.memory_space<vmem>>, vector<1x16x16xf32>
    %936 = vector.shape_cast %935 : vector<1x16x16xf32> to vector<16x16xf32>
    %c1_212 = arith.constant 1 : index
    %c1_213 = arith.constant 1 : index
    %c2_214 = arith.constant 2 : index
    %937 = vector.load %arg13[%c1_212, %c1_213, %c2_214] : memref<4x18x18xf32, #tpu.memory_space<vmem>>, vector<1x16x16xf32>
    %938 = vector.shape_cast %937 : vector<1x16x16xf32> to vector<16x16xf32>
    %c1_215 = arith.constant 1 : index
    %c2_216 = arith.constant 2 : index
    %c0_217 = arith.constant 0 : index
    %939 = vector.load %arg13[%c1_215, %c2_216, %c0_217] : memref<4x18x18xf32, #tpu.memory_space<vmem>>, vector<1x16x16xf32>
    %940 = vector.shape_cast %939 : vector<1x16x16xf32> to vector<16x16xf32>
    %c1_218 = arith.constant 1 : index
    %c2_219 = arith.constant 2 : index
    %c1_220 = arith.constant 1 : index
    %941 = vector.load %arg13[%c1_218, %c2_219, %c1_220] : memref<4x18x18xf32, #tpu.memory_space<vmem>>, vector<1x16x16xf32>
    %942 = vector.shape_cast %941 : vector<1x16x16xf32> to vector<16x16xf32>
    %c1_221 = arith.constant 1 : index
    %c2_222 = arith.constant 2 : index
    %c2_223 = arith.constant 2 : index
    %943 = vector.load %arg13[%c1_221, %c2_222, %c2_223] : memref<4x18x18xf32, #tpu.memory_space<vmem>>, vector<1x16x16xf32>
    %944 = vector.shape_cast %943 : vector<1x16x16xf32> to vector<16x16xf32>
    %c2_224 = arith.constant 2 : index
    %c0_225 = arith.constant 0 : index
    %c0_226 = arith.constant 0 : index
    %945 = vector.load %arg13[%c2_224, %c0_225, %c0_226] : memref<4x18x18xf32, #tpu.memory_space<vmem>>, vector<1x16x16xf32>
    %946 = vector.shape_cast %945 : vector<1x16x16xf32> to vector<16x16xf32>
    %c2_227 = arith.constant 2 : index
    %c0_228 = arith.constant 0 : index
    %c1_229 = arith.constant 1 : index
    %947 = vector.load %arg13[%c2_227, %c0_228, %c1_229] : memref<4x18x18xf32, #tpu.memory_space<vmem>>, vector<1x16x16xf32>
    %948 = vector.shape_cast %947 : vector<1x16x16xf32> to vector<16x16xf32>
    %c2_230 = arith.constant 2 : index
    %c0_231 = arith.constant 0 : index
    %c2_232 = arith.constant 2 : index
    %949 = vector.load %arg13[%c2_230, %c0_231, %c2_232] : memref<4x18x18xf32, #tpu.memory_space<vmem>>, vector<1x16x16xf32>
    %950 = vector.shape_cast %949 : vector<1x16x16xf32> to vector<16x16xf32>
    %c2_233 = arith.constant 2 : index
    %c1_234 = arith.constant 1 : index
    %c0_235 = arith.constant 0 : index
    %951 = vector.load %arg13[%c2_233, %c1_234, %c0_235] : memref<4x18x18xf32, #tpu.memory_space<vmem>>, vector<1x16x16xf32>
    %952 = vector.shape_cast %951 : vector<1x16x16xf32> to vector<16x16xf32>
    %c2_236 = arith.constant 2 : index
    %c1_237 = arith.constant 1 : index
    %c1_238 = arith.constant 1 : index
    %953 = vector.load %arg13[%c2_236, %c1_237, %c1_238] : memref<4x18x18xf32, #tpu.memory_space<vmem>>, vector<1x16x16xf32>
    %954 = vector.shape_cast %953 : vector<1x16x16xf32> to vector<16x16xf32>
    %c2_239 = arith.constant 2 : index
    %c1_240 = arith.constant 1 : index
    %c2_241 = arith.constant 2 : index
    %955 = vector.load %arg13[%c2_239, %c1_240, %c2_241] : memref<4x18x18xf32, #tpu.memory_space<vmem>>, vector<1x16x16xf32>
    %956 = vector.shape_cast %955 : vector<1x16x16xf32> to vector<16x16xf32>
    %c2_242 = arith.constant 2 : index
    %c2_243 = arith.constant 2 : index
    %c0_244 = arith.constant 0 : index
    %957 = vector.load %arg13[%c2_242, %c2_243, %c0_244] : memref<4x18x18xf32, #tpu.memory_space<vmem>>, vector<1x16x16xf32>
    %958 = vector.shape_cast %957 : vector<1x16x16xf32> to vector<16x16xf32>
    %c2_245 = arith.constant 2 : index
    %c2_246 = arith.constant 2 : index
    %c1_247 = arith.constant 1 : index
    %959 = vector.load %arg13[%c2_245, %c2_246, %c1_247] : memref<4x18x18xf32, #tpu.memory_space<vmem>>, vector<1x16x16xf32>
    %960 = vector.shape_cast %959 : vector<1x16x16xf32> to vector<16x16xf32>
    %c2_248 = arith.constant 2 : index
    %c2_249 = arith.constant 2 : index
    %c2_250 = arith.constant 2 : index
    %961 = vector.load %arg13[%c2_248, %c2_249, %c2_250] : memref<4x18x18xf32, #tpu.memory_space<vmem>>, vector<1x16x16xf32>
    %962 = vector.shape_cast %961 : vector<1x16x16xf32> to vector<16x16xf32>
    %c3_251 = arith.constant 3 : index
    %c0_252 = arith.constant 0 : index
    %c0_253 = arith.constant 0 : index
    %963 = vector.load %arg13[%c3_251, %c0_252, %c0_253] : memref<4x18x18xf32, #tpu.memory_space<vmem>>, vector<1x16x16xf32>
    %964 = vector.shape_cast %963 : vector<1x16x16xf32> to vector<16x16xf32>
    %c3_254 = arith.constant 3 : index
    %c0_255 = arith.constant 0 : index
    %c1_256 = arith.constant 1 : index
    %965 = vector.load %arg13[%c3_254, %c0_255, %c1_256] : memref<4x18x18xf32, #tpu.memory_space<vmem>>, vector<1x16x16xf32>
    %966 = vector.shape_cast %965 : vector<1x16x16xf32> to vector<16x16xf32>
    %c3_257 = arith.constant 3 : index
    %c0_258 = arith.constant 0 : index
    %c2_259 = arith.constant 2 : index
    %967 = vector.load %arg13[%c3_257, %c0_258, %c2_259] : memref<4x18x18xf32, #tpu.memory_space<vmem>>, vector<1x16x16xf32>
    %968 = vector.shape_cast %967 : vector<1x16x16xf32> to vector<16x16xf32>
    %c3_260 = arith.constant 3 : index
    %c1_261 = arith.constant 1 : index
    %c0_262 = arith.constant 0 : index
    %969 = vector.load %arg13[%c3_260, %c1_261, %c0_262] : memref<4x18x18xf32, #tpu.memory_space<vmem>>, vector<1x16x16xf32>
    %970 = vector.shape_cast %969 : vector<1x16x16xf32> to vector<16x16xf32>
    %c3_263 = arith.constant 3 : index
    %c1_264 = arith.constant 1 : index
    %c1_265 = arith.constant 1 : index
    %971 = vector.load %arg13[%c3_263, %c1_264, %c1_265] : memref<4x18x18xf32, #tpu.memory_space<vmem>>, vector<1x16x16xf32>
    %972 = vector.shape_cast %971 : vector<1x16x16xf32> to vector<16x16xf32>
    %c3_266 = arith.constant 3 : index
    %c1_267 = arith.constant 1 : index
    %c2_268 = arith.constant 2 : index
    %973 = vector.load %arg13[%c3_266, %c1_267, %c2_268] : memref<4x18x18xf32, #tpu.memory_space<vmem>>, vector<1x16x16xf32>
    %974 = vector.shape_cast %973 : vector<1x16x16xf32> to vector<16x16xf32>
    %c3_269 = arith.constant 3 : index
    %c2_270 = arith.constant 2 : index
    %c0_271 = arith.constant 0 : index
    %975 = vector.load %arg13[%c3_269, %c2_270, %c0_271] : memref<4x18x18xf32, #tpu.memory_space<vmem>>, vector<1x16x16xf32>
    %976 = vector.shape_cast %975 : vector<1x16x16xf32> to vector<16x16xf32>
    %c3_272 = arith.constant 3 : index
    %c2_273 = arith.constant 2 : index
    %c1_274 = arith.constant 1 : index
    %977 = vector.load %arg13[%c3_272, %c2_273, %c1_274] : memref<4x18x18xf32, #tpu.memory_space<vmem>>, vector<1x16x16xf32>
    %978 = vector.shape_cast %977 : vector<1x16x16xf32> to vector<16x16xf32>
    %c3_275 = arith.constant 3 : index
    %c2_276 = arith.constant 2 : index
    %c2_277 = arith.constant 2 : index
    %979 = vector.load %arg13[%c3_275, %c2_276, %c2_277] : memref<4x18x18xf32, #tpu.memory_space<vmem>>, vector<1x16x16xf32>
    %980 = vector.shape_cast %979 : vector<1x16x16xf32> to vector<16x16xf32>
    %c0_278 = arith.constant 0 : index
    %981 = memref.load %arg9[%c0_278] : memref<4xf32, #tpu.memory_space<smem>>
    %982 = vector.broadcast %981 : f32 to vector<16x16xf32>
    %983 = arith.addf %216, %982 : vector<16x16xf32>
    %c0_279 = arith.constant 0 : index
    %984 = memref.load %arg8[%c0_279] : memref<144xf32, #tpu.memory_space<smem>>
    %985 = vector.broadcast %984 : f32 to vector<16x16xf32>
    %986 = arith.mulf %985, %910 : vector<16x16xf32>
    %987 = arith.addf %983, %986 : vector<16x16xf32>
    %c1_280 = arith.constant 1 : index
    %988 = memref.load %arg8[%c1_280] : memref<144xf32, #tpu.memory_space<smem>>
    %989 = vector.broadcast %988 : f32 to vector<16x16xf32>
    %990 = arith.mulf %989, %912 : vector<16x16xf32>
    %991 = arith.addf %987, %990 : vector<16x16xf32>
    %c2_281 = arith.constant 2 : index
    %992 = memref.load %arg8[%c2_281] : memref<144xf32, #tpu.memory_space<smem>>
    %993 = vector.broadcast %992 : f32 to vector<16x16xf32>
    %994 = arith.mulf %993, %914 : vector<16x16xf32>
    %995 = arith.addf %991, %994 : vector<16x16xf32>
    %c3_282 = arith.constant 3 : index
    %996 = memref.load %arg8[%c3_282] : memref<144xf32, #tpu.memory_space<smem>>
    %997 = vector.broadcast %996 : f32 to vector<16x16xf32>
    %998 = arith.mulf %997, %916 : vector<16x16xf32>
    %999 = arith.addf %995, %998 : vector<16x16xf32>
    %c4_283 = arith.constant 4 : index
    %1000 = memref.load %arg8[%c4_283] : memref<144xf32, #tpu.memory_space<smem>>
    %1001 = vector.broadcast %1000 : f32 to vector<16x16xf32>
    %1002 = arith.mulf %1001, %918 : vector<16x16xf32>
    %1003 = arith.addf %999, %1002 : vector<16x16xf32>
    %c5_284 = arith.constant 5 : index
    %1004 = memref.load %arg8[%c5_284] : memref<144xf32, #tpu.memory_space<smem>>
    %1005 = vector.broadcast %1004 : f32 to vector<16x16xf32>
    %1006 = arith.mulf %1005, %920 : vector<16x16xf32>
    %1007 = arith.addf %1003, %1006 : vector<16x16xf32>
    %c6_285 = arith.constant 6 : index
    %1008 = memref.load %arg8[%c6_285] : memref<144xf32, #tpu.memory_space<smem>>
    %1009 = vector.broadcast %1008 : f32 to vector<16x16xf32>
    %1010 = arith.mulf %1009, %922 : vector<16x16xf32>
    %1011 = arith.addf %1007, %1010 : vector<16x16xf32>
    %c7_286 = arith.constant 7 : index
    %1012 = memref.load %arg8[%c7_286] : memref<144xf32, #tpu.memory_space<smem>>
    %1013 = vector.broadcast %1012 : f32 to vector<16x16xf32>
    %1014 = arith.mulf %1013, %924 : vector<16x16xf32>
    %1015 = arith.addf %1011, %1014 : vector<16x16xf32>
    %c8_287 = arith.constant 8 : index
    %1016 = memref.load %arg8[%c8_287] : memref<144xf32, #tpu.memory_space<smem>>
    %1017 = vector.broadcast %1016 : f32 to vector<16x16xf32>
    %1018 = arith.mulf %1017, %926 : vector<16x16xf32>
    %1019 = arith.addf %1015, %1018 : vector<16x16xf32>
    %c9_288 = arith.constant 9 : index
    %1020 = memref.load %arg8[%c9_288] : memref<144xf32, #tpu.memory_space<smem>>
    %1021 = vector.broadcast %1020 : f32 to vector<16x16xf32>
    %1022 = arith.mulf %1021, %928 : vector<16x16xf32>
    %1023 = arith.addf %1019, %1022 : vector<16x16xf32>
    %c10_289 = arith.constant 10 : index
    %1024 = memref.load %arg8[%c10_289] : memref<144xf32, #tpu.memory_space<smem>>
    %1025 = vector.broadcast %1024 : f32 to vector<16x16xf32>
    %1026 = arith.mulf %1025, %930 : vector<16x16xf32>
    %1027 = arith.addf %1023, %1026 : vector<16x16xf32>
    %c11_290 = arith.constant 11 : index
    %1028 = memref.load %arg8[%c11_290] : memref<144xf32, #tpu.memory_space<smem>>
    %1029 = vector.broadcast %1028 : f32 to vector<16x16xf32>
    %1030 = arith.mulf %1029, %932 : vector<16x16xf32>
    %1031 = arith.addf %1027, %1030 : vector<16x16xf32>
    %c12_291 = arith.constant 12 : index
    %1032 = memref.load %arg8[%c12_291] : memref<144xf32, #tpu.memory_space<smem>>
    %1033 = vector.broadcast %1032 : f32 to vector<16x16xf32>
    %1034 = arith.mulf %1033, %934 : vector<16x16xf32>
    %1035 = arith.addf %1031, %1034 : vector<16x16xf32>
    %c13_292 = arith.constant 13 : index
    %1036 = memref.load %arg8[%c13_292] : memref<144xf32, #tpu.memory_space<smem>>
    %1037 = vector.broadcast %1036 : f32 to vector<16x16xf32>
    %1038 = arith.mulf %1037, %936 : vector<16x16xf32>
    %1039 = arith.addf %1035, %1038 : vector<16x16xf32>
    %c14_293 = arith.constant 14 : index
    %1040 = memref.load %arg8[%c14_293] : memref<144xf32, #tpu.memory_space<smem>>
    %1041 = vector.broadcast %1040 : f32 to vector<16x16xf32>
    %1042 = arith.mulf %1041, %938 : vector<16x16xf32>
    %1043 = arith.addf %1039, %1042 : vector<16x16xf32>
    %c15_294 = arith.constant 15 : index
    %1044 = memref.load %arg8[%c15_294] : memref<144xf32, #tpu.memory_space<smem>>
    %1045 = vector.broadcast %1044 : f32 to vector<16x16xf32>
    %1046 = arith.mulf %1045, %940 : vector<16x16xf32>
    %1047 = arith.addf %1043, %1046 : vector<16x16xf32>
    %c16_295 = arith.constant 16 : index
    %1048 = memref.load %arg8[%c16_295] : memref<144xf32, #tpu.memory_space<smem>>
    %1049 = vector.broadcast %1048 : f32 to vector<16x16xf32>
    %1050 = arith.mulf %1049, %942 : vector<16x16xf32>
    %1051 = arith.addf %1047, %1050 : vector<16x16xf32>
    %c17_296 = arith.constant 17 : index
    %1052 = memref.load %arg8[%c17_296] : memref<144xf32, #tpu.memory_space<smem>>
    %1053 = vector.broadcast %1052 : f32 to vector<16x16xf32>
    %1054 = arith.mulf %1053, %944 : vector<16x16xf32>
    %1055 = arith.addf %1051, %1054 : vector<16x16xf32>
    %c18_297 = arith.constant 18 : index
    %1056 = memref.load %arg8[%c18_297] : memref<144xf32, #tpu.memory_space<smem>>
    %1057 = vector.broadcast %1056 : f32 to vector<16x16xf32>
    %1058 = arith.mulf %1057, %946 : vector<16x16xf32>
    %1059 = arith.addf %1055, %1058 : vector<16x16xf32>
    %c19_298 = arith.constant 19 : index
    %1060 = memref.load %arg8[%c19_298] : memref<144xf32, #tpu.memory_space<smem>>
    %1061 = vector.broadcast %1060 : f32 to vector<16x16xf32>
    %1062 = arith.mulf %1061, %948 : vector<16x16xf32>
    %1063 = arith.addf %1059, %1062 : vector<16x16xf32>
    %c20_299 = arith.constant 20 : index
    %1064 = memref.load %arg8[%c20_299] : memref<144xf32, #tpu.memory_space<smem>>
    %1065 = vector.broadcast %1064 : f32 to vector<16x16xf32>
    %1066 = arith.mulf %1065, %950 : vector<16x16xf32>
    %1067 = arith.addf %1063, %1066 : vector<16x16xf32>
    %c21_300 = arith.constant 21 : index
    %1068 = memref.load %arg8[%c21_300] : memref<144xf32, #tpu.memory_space<smem>>
    %1069 = vector.broadcast %1068 : f32 to vector<16x16xf32>
    %1070 = arith.mulf %1069, %952 : vector<16x16xf32>
    %1071 = arith.addf %1067, %1070 : vector<16x16xf32>
    %c22_301 = arith.constant 22 : index
    %1072 = memref.load %arg8[%c22_301] : memref<144xf32, #tpu.memory_space<smem>>
    %1073 = vector.broadcast %1072 : f32 to vector<16x16xf32>
    %1074 = arith.mulf %1073, %954 : vector<16x16xf32>
    %1075 = arith.addf %1071, %1074 : vector<16x16xf32>
    %c23_302 = arith.constant 23 : index
    %1076 = memref.load %arg8[%c23_302] : memref<144xf32, #tpu.memory_space<smem>>
    %1077 = vector.broadcast %1076 : f32 to vector<16x16xf32>
    %1078 = arith.mulf %1077, %956 : vector<16x16xf32>
    %1079 = arith.addf %1075, %1078 : vector<16x16xf32>
    %c24_303 = arith.constant 24 : index
    %1080 = memref.load %arg8[%c24_303] : memref<144xf32, #tpu.memory_space<smem>>
    %1081 = vector.broadcast %1080 : f32 to vector<16x16xf32>
    %1082 = arith.mulf %1081, %958 : vector<16x16xf32>
    %1083 = arith.addf %1079, %1082 : vector<16x16xf32>
    %c25_304 = arith.constant 25 : index
    %1084 = memref.load %arg8[%c25_304] : memref<144xf32, #tpu.memory_space<smem>>
    %1085 = vector.broadcast %1084 : f32 to vector<16x16xf32>
    %1086 = arith.mulf %1085, %960 : vector<16x16xf32>
    %1087 = arith.addf %1083, %1086 : vector<16x16xf32>
    %c26_305 = arith.constant 26 : index
    %1088 = memref.load %arg8[%c26_305] : memref<144xf32, #tpu.memory_space<smem>>
    %1089 = vector.broadcast %1088 : f32 to vector<16x16xf32>
    %1090 = arith.mulf %1089, %962 : vector<16x16xf32>
    %1091 = arith.addf %1087, %1090 : vector<16x16xf32>
    %c27_306 = arith.constant 27 : index
    %1092 = memref.load %arg8[%c27_306] : memref<144xf32, #tpu.memory_space<smem>>
    %1093 = vector.broadcast %1092 : f32 to vector<16x16xf32>
    %1094 = arith.mulf %1093, %964 : vector<16x16xf32>
    %1095 = arith.addf %1091, %1094 : vector<16x16xf32>
    %c28_307 = arith.constant 28 : index
    %1096 = memref.load %arg8[%c28_307] : memref<144xf32, #tpu.memory_space<smem>>
    %1097 = vector.broadcast %1096 : f32 to vector<16x16xf32>
    %1098 = arith.mulf %1097, %966 : vector<16x16xf32>
    %1099 = arith.addf %1095, %1098 : vector<16x16xf32>
    %c29_308 = arith.constant 29 : index
    %1100 = memref.load %arg8[%c29_308] : memref<144xf32, #tpu.memory_space<smem>>
    %1101 = vector.broadcast %1100 : f32 to vector<16x16xf32>
    %1102 = arith.mulf %1101, %968 : vector<16x16xf32>
    %1103 = arith.addf %1099, %1102 : vector<16x16xf32>
    %c30_309 = arith.constant 30 : index
    %1104 = memref.load %arg8[%c30_309] : memref<144xf32, #tpu.memory_space<smem>>
    %1105 = vector.broadcast %1104 : f32 to vector<16x16xf32>
    %1106 = arith.mulf %1105, %970 : vector<16x16xf32>
    %1107 = arith.addf %1103, %1106 : vector<16x16xf32>
    %c31_310 = arith.constant 31 : index
    %1108 = memref.load %arg8[%c31_310] : memref<144xf32, #tpu.memory_space<smem>>
    %1109 = vector.broadcast %1108 : f32 to vector<16x16xf32>
    %1110 = arith.mulf %1109, %972 : vector<16x16xf32>
    %1111 = arith.addf %1107, %1110 : vector<16x16xf32>
    %c32_311 = arith.constant 32 : index
    %1112 = memref.load %arg8[%c32_311] : memref<144xf32, #tpu.memory_space<smem>>
    %1113 = vector.broadcast %1112 : f32 to vector<16x16xf32>
    %1114 = arith.mulf %1113, %974 : vector<16x16xf32>
    %1115 = arith.addf %1111, %1114 : vector<16x16xf32>
    %c33_312 = arith.constant 33 : index
    %1116 = memref.load %arg8[%c33_312] : memref<144xf32, #tpu.memory_space<smem>>
    %1117 = vector.broadcast %1116 : f32 to vector<16x16xf32>
    %1118 = arith.mulf %1117, %976 : vector<16x16xf32>
    %1119 = arith.addf %1115, %1118 : vector<16x16xf32>
    %c34_313 = arith.constant 34 : index
    %1120 = memref.load %arg8[%c34_313] : memref<144xf32, #tpu.memory_space<smem>>
    %1121 = vector.broadcast %1120 : f32 to vector<16x16xf32>
    %1122 = arith.mulf %1121, %978 : vector<16x16xf32>
    %1123 = arith.addf %1119, %1122 : vector<16x16xf32>
    %c35_314 = arith.constant 35 : index
    %1124 = memref.load %arg8[%c35_314] : memref<144xf32, #tpu.memory_space<smem>>
    %1125 = vector.broadcast %1124 : f32 to vector<16x16xf32>
    %1126 = arith.mulf %1125, %980 : vector<16x16xf32>
    %1127 = arith.addf %1123, %1126 : vector<16x16xf32>
    %cst_315 = arith.constant 0.000000e+00 : f32
    %1128 = vector.broadcast %cst_315 : f32 to vector<16x16xf32>
    %1129 = arith.cmpf oge, %1127, %1128 : vector<16x16xf32>
    %1130 = vector.broadcast %215 : f32 to vector<16x16xf32>
    %1131 = arith.mulf %1130, %1127 : vector<16x16xf32>
    %1132 = arith.select %1129, %1127, %1131 : vector<16x16xi1>, vector<16x16xf32>
    %c0_316 = arith.constant 0 : index
    %c0_317 = arith.constant 0 : index
    %c0_318 = arith.constant 0 : index
    %c0_319 = arith.constant 0 : index
    %1133 = vector.load %arg11[%c0_316, %c0_317, %c0_318, %c0_319] : memref<1x4x16x16xf32, #tpu.memory_space<vmem>>, vector<1x1x16x16xf32>
    %1134 = vector.shape_cast %1133 : vector<1x1x16x16xf32> to vector<16x16xf32>
    %1135 = vector.shape_cast %1132 : vector<16x16xf32> to vector<1x1x16x16xf32>
    tpu.vector_store %arg11[%c0_316, %c0_317, %c0_318, %c0_319], %1135 {strides = array<i32>} : memref<1x4x16x16xf32, #tpu.memory_space<vmem>>, vector<1x1x16x16xf32>,
    %c1_320 = arith.constant 1 : index
    %1136 = memref.load %arg9[%c1_320] : memref<4xf32, #tpu.memory_space<smem>>
    %1137 = vector.broadcast %1136 : f32 to vector<16x16xf32>
    %1138 = arith.addf %216, %1137 : vector<16x16xf32>
    %c36_321 = arith.constant 36 : index
    %1139 = memref.load %arg8[%c36_321] : memref<144xf32, #tpu.memory_space<smem>>
    %1140 = vector.broadcast %1139 : f32 to vector<16x16xf32>
    %1141 = arith.mulf %1140, %910 : vector<16x16xf32>
    %1142 = arith.addf %1138, %1141 : vector<16x16xf32>
    %c37_322 = arith.constant 37 : index
    %1143 = memref.load %arg8[%c37_322] : memref<144xf32, #tpu.memory_space<smem>>
    %1144 = vector.broadcast %1143 : f32 to vector<16x16xf32>
    %1145 = arith.mulf %1144, %912 : vector<16x16xf32>
    %1146 = arith.addf %1142, %1145 : vector<16x16xf32>
    %c38_323 = arith.constant 38 : index
    %1147 = memref.load %arg8[%c38_323] : memref<144xf32, #tpu.memory_space<smem>>
    %1148 = vector.broadcast %1147 : f32 to vector<16x16xf32>
    %1149 = arith.mulf %1148, %914 : vector<16x16xf32>
    %1150 = arith.addf %1146, %1149 : vector<16x16xf32>
    %c39_324 = arith.constant 39 : index
    %1151 = memref.load %arg8[%c39_324] : memref<144xf32, #tpu.memory_space<smem>>
    %1152 = vector.broadcast %1151 : f32 to vector<16x16xf32>
    %1153 = arith.mulf %1152, %916 : vector<16x16xf32>
    %1154 = arith.addf %1150, %1153 : vector<16x16xf32>
    %c40_325 = arith.constant 40 : index
    %1155 = memref.load %arg8[%c40_325] : memref<144xf32, #tpu.memory_space<smem>>
    %1156 = vector.broadcast %1155 : f32 to vector<16x16xf32>
    %1157 = arith.mulf %1156, %918 : vector<16x16xf32>
    %1158 = arith.addf %1154, %1157 : vector<16x16xf32>
    %c41_326 = arith.constant 41 : index
    %1159 = memref.load %arg8[%c41_326] : memref<144xf32, #tpu.memory_space<smem>>
    %1160 = vector.broadcast %1159 : f32 to vector<16x16xf32>
    %1161 = arith.mulf %1160, %920 : vector<16x16xf32>
    %1162 = arith.addf %1158, %1161 : vector<16x16xf32>
    %c42_327 = arith.constant 42 : index
    %1163 = memref.load %arg8[%c42_327] : memref<144xf32, #tpu.memory_space<smem>>
    %1164 = vector.broadcast %1163 : f32 to vector<16x16xf32>
    %1165 = arith.mulf %1164, %922 : vector<16x16xf32>
    %1166 = arith.addf %1162, %1165 : vector<16x16xf32>
    %c43_328 = arith.constant 43 : index
    %1167 = memref.load %arg8[%c43_328] : memref<144xf32, #tpu.memory_space<smem>>
    %1168 = vector.broadcast %1167 : f32 to vector<16x16xf32>
    %1169 = arith.mulf %1168, %924 : vector<16x16xf32>
    %1170 = arith.addf %1166, %1169 : vector<16x16xf32>
    %c44_329 = arith.constant 44 : index
    %1171 = memref.load %arg8[%c44_329] : memref<144xf32, #tpu.memory_space<smem>>
    %1172 = vector.broadcast %1171 : f32 to vector<16x16xf32>
    %1173 = arith.mulf %1172, %926 : vector<16x16xf32>
    %1174 = arith.addf %1170, %1173 : vector<16x16xf32>
    %c45_330 = arith.constant 45 : index
    %1175 = memref.load %arg8[%c45_330] : memref<144xf32, #tpu.memory_space<smem>>
    %1176 = vector.broadcast %1175 : f32 to vector<16x16xf32>
    %1177 = arith.mulf %1176, %928 : vector<16x16xf32>
    %1178 = arith.addf %1174, %1177 : vector<16x16xf32>
    %c46_331 = arith.constant 46 : index
    %1179 = memref.load %arg8[%c46_331] : memref<144xf32, #tpu.memory_space<smem>>
    %1180 = vector.broadcast %1179 : f32 to vector<16x16xf32>
    %1181 = arith.mulf %1180, %930 : vector<16x16xf32>
    %1182 = arith.addf %1178, %1181 : vector<16x16xf32>
    %c47_332 = arith.constant 47 : index
    %1183 = memref.load %arg8[%c47_332] : memref<144xf32, #tpu.memory_space<smem>>
    %1184 = vector.broadcast %1183 : f32 to vector<16x16xf32>
    %1185 = arith.mulf %1184, %932 : vector<16x16xf32>
    %1186 = arith.addf %1182, %1185 : vector<16x16xf32>
    %c48_333 = arith.constant 48 : index
    %1187 = memref.load %arg8[%c48_333] : memref<144xf32, #tpu.memory_space<smem>>
    %1188 = vector.broadcast %1187 : f32 to vector<16x16xf32>
    %1189 = arith.mulf %1188, %934 : vector<16x16xf32>
    %1190 = arith.addf %1186, %1189 : vector<16x16xf32>
    %c49_334 = arith.constant 49 : index
    %1191 = memref.load %arg8[%c49_334] : memref<144xf32, #tpu.memory_space<smem>>
    %1192 = vector.broadcast %1191 : f32 to vector<16x16xf32>
    %1193 = arith.mulf %1192, %936 : vector<16x16xf32>
    %1194 = arith.addf %1190, %1193 : vector<16x16xf32>
    %c50_335 = arith.constant 50 : index
    %1195 = memref.load %arg8[%c50_335] : memref<144xf32, #tpu.memory_space<smem>>
    %1196 = vector.broadcast %1195 : f32 to vector<16x16xf32>
    %1197 = arith.mulf %1196, %938 : vector<16x16xf32>
    %1198 = arith.addf %1194, %1197 : vector<16x16xf32>
    %c51_336 = arith.constant 51 : index
    %1199 = memref.load %arg8[%c51_336] : memref<144xf32, #tpu.memory_space<smem>>
    %1200 = vector.broadcast %1199 : f32 to vector<16x16xf32>
    %1201 = arith.mulf %1200, %940 : vector<16x16xf32>
    %1202 = arith.addf %1198, %1201 : vector<16x16xf32>
    %c52_337 = arith.constant 52 : index
    %1203 = memref.load %arg8[%c52_337] : memref<144xf32, #tpu.memory_space<smem>>
    %1204 = vector.broadcast %1203 : f32 to vector<16x16xf32>
    %1205 = arith.mulf %1204, %942 : vector<16x16xf32>
    %1206 = arith.addf %1202, %1205 : vector<16x16xf32>
    %c53_338 = arith.constant 53 : index
    %1207 = memref.load %arg8[%c53_338] : memref<144xf32, #tpu.memory_space<smem>>
    %1208 = vector.broadcast %1207 : f32 to vector<16x16xf32>
    %1209 = arith.mulf %1208, %944 : vector<16x16xf32>
    %1210 = arith.addf %1206, %1209 : vector<16x16xf32>
    %c54_339 = arith.constant 54 : index
    %1211 = memref.load %arg8[%c54_339] : memref<144xf32, #tpu.memory_space<smem>>
    %1212 = vector.broadcast %1211 : f32 to vector<16x16xf32>
    %1213 = arith.mulf %1212, %946 : vector<16x16xf32>
    %1214 = arith.addf %1210, %1213 : vector<16x16xf32>
    %c55_340 = arith.constant 55 : index
    %1215 = memref.load %arg8[%c55_340] : memref<144xf32, #tpu.memory_space<smem>>
    %1216 = vector.broadcast %1215 : f32 to vector<16x16xf32>
    %1217 = arith.mulf %1216, %948 : vector<16x16xf32>
    %1218 = arith.addf %1214, %1217 : vector<16x16xf32>
    %c56_341 = arith.constant 56 : index
    %1219 = memref.load %arg8[%c56_341] : memref<144xf32, #tpu.memory_space<smem>>
    %1220 = vector.broadcast %1219 : f32 to vector<16x16xf32>
    %1221 = arith.mulf %1220, %950 : vector<16x16xf32>
    %1222 = arith.addf %1218, %1221 : vector<16x16xf32>
    %c57_342 = arith.constant 57 : index
    %1223 = memref.load %arg8[%c57_342] : memref<144xf32, #tpu.memory_space<smem>>
    %1224 = vector.broadcast %1223 : f32 to vector<16x16xf32>
    %1225 = arith.mulf %1224, %952 : vector<16x16xf32>
    %1226 = arith.addf %1222, %1225 : vector<16x16xf32>
    %c58_343 = arith.constant 58 : index
    %1227 = memref.load %arg8[%c58_343] : memref<144xf32, #tpu.memory_space<smem>>
    %1228 = vector.broadcast %1227 : f32 to vector<16x16xf32>
    %1229 = arith.mulf %1228, %954 : vector<16x16xf32>
    %1230 = arith.addf %1226, %1229 : vector<16x16xf32>
    %c59_344 = arith.constant 59 : index
    %1231 = memref.load %arg8[%c59_344] : memref<144xf32, #tpu.memory_space<smem>>
    %1232 = vector.broadcast %1231 : f32 to vector<16x16xf32>
    %1233 = arith.mulf %1232, %956 : vector<16x16xf32>
    %1234 = arith.addf %1230, %1233 : vector<16x16xf32>
    %c60_345 = arith.constant 60 : index
    %1235 = memref.load %arg8[%c60_345] : memref<144xf32, #tpu.memory_space<smem>>
    %1236 = vector.broadcast %1235 : f32 to vector<16x16xf32>
    %1237 = arith.mulf %1236, %958 : vector<16x16xf32>
    %1238 = arith.addf %1234, %1237 : vector<16x16xf32>
    %c61_346 = arith.constant 61 : index
    %1239 = memref.load %arg8[%c61_346] : memref<144xf32, #tpu.memory_space<smem>>
    %1240 = vector.broadcast %1239 : f32 to vector<16x16xf32>
    %1241 = arith.mulf %1240, %960 : vector<16x16xf32>
    %1242 = arith.addf %1238, %1241 : vector<16x16xf32>
    %c62_347 = arith.constant 62 : index
    %1243 = memref.load %arg8[%c62_347] : memref<144xf32, #tpu.memory_space<smem>>
    %1244 = vector.broadcast %1243 : f32 to vector<16x16xf32>
    %1245 = arith.mulf %1244, %962 : vector<16x16xf32>
    %1246 = arith.addf %1242, %1245 : vector<16x16xf32>
    %c63_348 = arith.constant 63 : index
    %1247 = memref.load %arg8[%c63_348] : memref<144xf32, #tpu.memory_space<smem>>
    %1248 = vector.broadcast %1247 : f32 to vector<16x16xf32>
    %1249 = arith.mulf %1248, %964 : vector<16x16xf32>
    %1250 = arith.addf %1246, %1249 : vector<16x16xf32>
    %c64_349 = arith.constant 64 : index
    %1251 = memref.load %arg8[%c64_349] : memref<144xf32, #tpu.memory_space<smem>>
    %1252 = vector.broadcast %1251 : f32 to vector<16x16xf32>
    %1253 = arith.mulf %1252, %966 : vector<16x16xf32>
    %1254 = arith.addf %1250, %1253 : vector<16x16xf32>
    %c65_350 = arith.constant 65 : index
    %1255 = memref.load %arg8[%c65_350] : memref<144xf32, #tpu.memory_space<smem>>
    %1256 = vector.broadcast %1255 : f32 to vector<16x16xf32>
    %1257 = arith.mulf %1256, %968 : vector<16x16xf32>
    %1258 = arith.addf %1254, %1257 : vector<16x16xf32>
    %c66_351 = arith.constant 66 : index
    %1259 = memref.load %arg8[%c66_351] : memref<144xf32, #tpu.memory_space<smem>>
    %1260 = vector.broadcast %1259 : f32 to vector<16x16xf32>
    %1261 = arith.mulf %1260, %970 : vector<16x16xf32>
    %1262 = arith.addf %1258, %1261 : vector<16x16xf32>
    %c67_352 = arith.constant 67 : index
    %1263 = memref.load %arg8[%c67_352] : memref<144xf32, #tpu.memory_space<smem>>
    %1264 = vector.broadcast %1263 : f32 to vector<16x16xf32>
    %1265 = arith.mulf %1264, %972 : vector<16x16xf32>
    %1266 = arith.addf %1262, %1265 : vector<16x16xf32>
    %c68_353 = arith.constant 68 : index
    %1267 = memref.load %arg8[%c68_353] : memref<144xf32, #tpu.memory_space<smem>>
    %1268 = vector.broadcast %1267 : f32 to vector<16x16xf32>
    %1269 = arith.mulf %1268, %974 : vector<16x16xf32>
    %1270 = arith.addf %1266, %1269 : vector<16x16xf32>
    %c69_354 = arith.constant 69 : index
    %1271 = memref.load %arg8[%c69_354] : memref<144xf32, #tpu.memory_space<smem>>
    %1272 = vector.broadcast %1271 : f32 to vector<16x16xf32>
    %1273 = arith.mulf %1272, %976 : vector<16x16xf32>
    %1274 = arith.addf %1270, %1273 : vector<16x16xf32>
    %c70_355 = arith.constant 70 : index
    %1275 = memref.load %arg8[%c70_355] : memref<144xf32, #tpu.memory_space<smem>>
    %1276 = vector.broadcast %1275 : f32 to vector<16x16xf32>
    %1277 = arith.mulf %1276, %978 : vector<16x16xf32>
    %1278 = arith.addf %1274, %1277 : vector<16x16xf32>
    %c71_356 = arith.constant 71 : index
    %1279 = memref.load %arg8[%c71_356] : memref<144xf32, #tpu.memory_space<smem>>
    %1280 = vector.broadcast %1279 : f32 to vector<16x16xf32>
    %1281 = arith.mulf %1280, %980 : vector<16x16xf32>
    %1282 = arith.addf %1278, %1281 : vector<16x16xf32>
    %cst_357 = arith.constant 0.000000e+00 : f32
    %1283 = vector.broadcast %cst_357 : f32 to vector<16x16xf32>
    %1284 = arith.cmpf oge, %1282, %1283 : vector<16x16xf32>
    %1285 = vector.broadcast %215 : f32 to vector<16x16xf32>
    %1286 = arith.mulf %1285, %1282 : vector<16x16xf32>
    %1287 = arith.select %1284, %1282, %1286 : vector<16x16xi1>, vector<16x16xf32>
    %c0_358 = arith.constant 0 : index
    %c1_359 = arith.constant 1 : index
    %c0_360 = arith.constant 0 : index
    %c0_361 = arith.constant 0 : index
    %1288 = vector.load %arg11[%c0_358, %c1_359, %c0_360, %c0_361] : memref<1x4x16x16xf32, #tpu.memory_space<vmem>>, vector<1x1x16x16xf32>
    %1289 = vector.shape_cast %1288 : vector<1x1x16x16xf32> to vector<16x16xf32>
    %1290 = vector.shape_cast %1287 : vector<16x16xf32> to vector<1x1x16x16xf32>
    tpu.vector_store %arg11[%c0_358, %c1_359, %c0_360, %c0_361], %1290 {strides = array<i32>} : memref<1x4x16x16xf32, #tpu.memory_space<vmem>>, vector<1x1x16x16xf32>,
    %c2_362 = arith.constant 2 : index
    %1291 = memref.load %arg9[%c2_362] : memref<4xf32, #tpu.memory_space<smem>>
    %1292 = vector.broadcast %1291 : f32 to vector<16x16xf32>
    %1293 = arith.addf %216, %1292 : vector<16x16xf32>
    %c72_363 = arith.constant 72 : index
    %1294 = memref.load %arg8[%c72_363] : memref<144xf32, #tpu.memory_space<smem>>
    %1295 = vector.broadcast %1294 : f32 to vector<16x16xf32>
    %1296 = arith.mulf %1295, %910 : vector<16x16xf32>
    %1297 = arith.addf %1293, %1296 : vector<16x16xf32>
    %c73_364 = arith.constant 73 : index
    %1298 = memref.load %arg8[%c73_364] : memref<144xf32, #tpu.memory_space<smem>>
    %1299 = vector.broadcast %1298 : f32 to vector<16x16xf32>
    %1300 = arith.mulf %1299, %912 : vector<16x16xf32>
    %1301 = arith.addf %1297, %1300 : vector<16x16xf32>
    %c74_365 = arith.constant 74 : index
    %1302 = memref.load %arg8[%c74_365] : memref<144xf32, #tpu.memory_space<smem>>
    %1303 = vector.broadcast %1302 : f32 to vector<16x16xf32>
    %1304 = arith.mulf %1303, %914 : vector<16x16xf32>
    %1305 = arith.addf %1301, %1304 : vector<16x16xf32>
    %c75_366 = arith.constant 75 : index
    %1306 = memref.load %arg8[%c75_366] : memref<144xf32, #tpu.memory_space<smem>>
    %1307 = vector.broadcast %1306 : f32 to vector<16x16xf32>
    %1308 = arith.mulf %1307, %916 : vector<16x16xf32>
    %1309 = arith.addf %1305, %1308 : vector<16x16xf32>
    %c76_367 = arith.constant 76 : index
    %1310 = memref.load %arg8[%c76_367] : memref<144xf32, #tpu.memory_space<smem>>
    %1311 = vector.broadcast %1310 : f32 to vector<16x16xf32>
    %1312 = arith.mulf %1311, %918 : vector<16x16xf32>
    %1313 = arith.addf %1309, %1312 : vector<16x16xf32>
    %c77_368 = arith.constant 77 : index
    %1314 = memref.load %arg8[%c77_368] : memref<144xf32, #tpu.memory_space<smem>>
    %1315 = vector.broadcast %1314 : f32 to vector<16x16xf32>
    %1316 = arith.mulf %1315, %920 : vector<16x16xf32>
    %1317 = arith.addf %1313, %1316 : vector<16x16xf32>
    %c78_369 = arith.constant 78 : index
    %1318 = memref.load %arg8[%c78_369] : memref<144xf32, #tpu.memory_space<smem>>
    %1319 = vector.broadcast %1318 : f32 to vector<16x16xf32>
    %1320 = arith.mulf %1319, %922 : vector<16x16xf32>
    %1321 = arith.addf %1317, %1320 : vector<16x16xf32>
    %c79_370 = arith.constant 79 : index
    %1322 = memref.load %arg8[%c79_370] : memref<144xf32, #tpu.memory_space<smem>>
    %1323 = vector.broadcast %1322 : f32 to vector<16x16xf32>
    %1324 = arith.mulf %1323, %924 : vector<16x16xf32>
    %1325 = arith.addf %1321, %1324 : vector<16x16xf32>
    %c80_371 = arith.constant 80 : index
    %1326 = memref.load %arg8[%c80_371] : memref<144xf32, #tpu.memory_space<smem>>
    %1327 = vector.broadcast %1326 : f32 to vector<16x16xf32>
    %1328 = arith.mulf %1327, %926 : vector<16x16xf32>
    %1329 = arith.addf %1325, %1328 : vector<16x16xf32>
    %c81_372 = arith.constant 81 : index
    %1330 = memref.load %arg8[%c81_372] : memref<144xf32, #tpu.memory_space<smem>>
    %1331 = vector.broadcast %1330 : f32 to vector<16x16xf32>
    %1332 = arith.mulf %1331, %928 : vector<16x16xf32>
    %1333 = arith.addf %1329, %1332 : vector<16x16xf32>
    %c82_373 = arith.constant 82 : index
    %1334 = memref.load %arg8[%c82_373] : memref<144xf32, #tpu.memory_space<smem>>
    %1335 = vector.broadcast %1334 : f32 to vector<16x16xf32>
    %1336 = arith.mulf %1335, %930 : vector<16x16xf32>
    %1337 = arith.addf %1333, %1336 : vector<16x16xf32>
    %c83_374 = arith.constant 83 : index
    %1338 = memref.load %arg8[%c83_374] : memref<144xf32, #tpu.memory_space<smem>>
    %1339 = vector.broadcast %1338 : f32 to vector<16x16xf32>
    %1340 = arith.mulf %1339, %932 : vector<16x16xf32>
    %1341 = arith.addf %1337, %1340 : vector<16x16xf32>
    %c84_375 = arith.constant 84 : index
    %1342 = memref.load %arg8[%c84_375] : memref<144xf32, #tpu.memory_space<smem>>
    %1343 = vector.broadcast %1342 : f32 to vector<16x16xf32>
    %1344 = arith.mulf %1343, %934 : vector<16x16xf32>
    %1345 = arith.addf %1341, %1344 : vector<16x16xf32>
    %c85_376 = arith.constant 85 : index
    %1346 = memref.load %arg8[%c85_376] : memref<144xf32, #tpu.memory_space<smem>>
    %1347 = vector.broadcast %1346 : f32 to vector<16x16xf32>
    %1348 = arith.mulf %1347, %936 : vector<16x16xf32>
    %1349 = arith.addf %1345, %1348 : vector<16x16xf32>
    %c86_377 = arith.constant 86 : index
    %1350 = memref.load %arg8[%c86_377] : memref<144xf32, #tpu.memory_space<smem>>
    %1351 = vector.broadcast %1350 : f32 to vector<16x16xf32>
    %1352 = arith.mulf %1351, %938 : vector<16x16xf32>
    %1353 = arith.addf %1349, %1352 : vector<16x16xf32>
    %c87_378 = arith.constant 87 : index
    %1354 = memref.load %arg8[%c87_378] : memref<144xf32, #tpu.memory_space<smem>>
    %1355 = vector.broadcast %1354 : f32 to vector<16x16xf32>
    %1356 = arith.mulf %1355, %940 : vector<16x16xf32>
    %1357 = arith.addf %1353, %1356 : vector<16x16xf32>
    %c88_379 = arith.constant 88 : index
    %1358 = memref.load %arg8[%c88_379] : memref<144xf32, #tpu.memory_space<smem>>
    %1359 = vector.broadcast %1358 : f32 to vector<16x16xf32>
    %1360 = arith.mulf %1359, %942 : vector<16x16xf32>
    %1361 = arith.addf %1357, %1360 : vector<16x16xf32>
    %c89_380 = arith.constant 89 : index
    %1362 = memref.load %arg8[%c89_380] : memref<144xf32, #tpu.memory_space<smem>>
    %1363 = vector.broadcast %1362 : f32 to vector<16x16xf32>
    %1364 = arith.mulf %1363, %944 : vector<16x16xf32>
    %1365 = arith.addf %1361, %1364 : vector<16x16xf32>
    %c90_381 = arith.constant 90 : index
    %1366 = memref.load %arg8[%c90_381] : memref<144xf32, #tpu.memory_space<smem>>
    %1367 = vector.broadcast %1366 : f32 to vector<16x16xf32>
    %1368 = arith.mulf %1367, %946 : vector<16x16xf32>
    %1369 = arith.addf %1365, %1368 : vector<16x16xf32>
    %c91_382 = arith.constant 91 : index
    %1370 = memref.load %arg8[%c91_382] : memref<144xf32, #tpu.memory_space<smem>>
    %1371 = vector.broadcast %1370 : f32 to vector<16x16xf32>
    %1372 = arith.mulf %1371, %948 : vector<16x16xf32>
    %1373 = arith.addf %1369, %1372 : vector<16x16xf32>
    %c92_383 = arith.constant 92 : index
    %1374 = memref.load %arg8[%c92_383] : memref<144xf32, #tpu.memory_space<smem>>
    %1375 = vector.broadcast %1374 : f32 to vector<16x16xf32>
    %1376 = arith.mulf %1375, %950 : vector<16x16xf32>
    %1377 = arith.addf %1373, %1376 : vector<16x16xf32>
    %c93_384 = arith.constant 93 : index
    %1378 = memref.load %arg8[%c93_384] : memref<144xf32, #tpu.memory_space<smem>>
    %1379 = vector.broadcast %1378 : f32 to vector<16x16xf32>
    %1380 = arith.mulf %1379, %952 : vector<16x16xf32>
    %1381 = arith.addf %1377, %1380 : vector<16x16xf32>
    %c94_385 = arith.constant 94 : index
    %1382 = memref.load %arg8[%c94_385] : memref<144xf32, #tpu.memory_space<smem>>
    %1383 = vector.broadcast %1382 : f32 to vector<16x16xf32>
    %1384 = arith.mulf %1383, %954 : vector<16x16xf32>
    %1385 = arith.addf %1381, %1384 : vector<16x16xf32>
    %c95_386 = arith.constant 95 : index
    %1386 = memref.load %arg8[%c95_386] : memref<144xf32, #tpu.memory_space<smem>>
    %1387 = vector.broadcast %1386 : f32 to vector<16x16xf32>
    %1388 = arith.mulf %1387, %956 : vector<16x16xf32>
    %1389 = arith.addf %1385, %1388 : vector<16x16xf32>
    %c96_387 = arith.constant 96 : index
    %1390 = memref.load %arg8[%c96_387] : memref<144xf32, #tpu.memory_space<smem>>
    %1391 = vector.broadcast %1390 : f32 to vector<16x16xf32>
    %1392 = arith.mulf %1391, %958 : vector<16x16xf32>
    %1393 = arith.addf %1389, %1392 : vector<16x16xf32>
    %c97_388 = arith.constant 97 : index
    %1394 = memref.load %arg8[%c97_388] : memref<144xf32, #tpu.memory_space<smem>>
    %1395 = vector.broadcast %1394 : f32 to vector<16x16xf32>
    %1396 = arith.mulf %1395, %960 : vector<16x16xf32>
    %1397 = arith.addf %1393, %1396 : vector<16x16xf32>
    %c98_389 = arith.constant 98 : index
    %1398 = memref.load %arg8[%c98_389] : memref<144xf32, #tpu.memory_space<smem>>
    %1399 = vector.broadcast %1398 : f32 to vector<16x16xf32>
    %1400 = arith.mulf %1399, %962 : vector<16x16xf32>
    %1401 = arith.addf %1397, %1400 : vector<16x16xf32>
    %c99_390 = arith.constant 99 : index
    %1402 = memref.load %arg8[%c99_390] : memref<144xf32, #tpu.memory_space<smem>>
    %1403 = vector.broadcast %1402 : f32 to vector<16x16xf32>
    %1404 = arith.mulf %1403, %964 : vector<16x16xf32>
    %1405 = arith.addf %1401, %1404 : vector<16x16xf32>
    %c100_391 = arith.constant 100 : index
    %1406 = memref.load %arg8[%c100_391] : memref<144xf32, #tpu.memory_space<smem>>
    %1407 = vector.broadcast %1406 : f32 to vector<16x16xf32>
    %1408 = arith.mulf %1407, %966 : vector<16x16xf32>
    %1409 = arith.addf %1405, %1408 : vector<16x16xf32>
    %c101_392 = arith.constant 101 : index
    %1410 = memref.load %arg8[%c101_392] : memref<144xf32, #tpu.memory_space<smem>>
    %1411 = vector.broadcast %1410 : f32 to vector<16x16xf32>
    %1412 = arith.mulf %1411, %968 : vector<16x16xf32>
    %1413 = arith.addf %1409, %1412 : vector<16x16xf32>
    %c102_393 = arith.constant 102 : index
    %1414 = memref.load %arg8[%c102_393] : memref<144xf32, #tpu.memory_space<smem>>
    %1415 = vector.broadcast %1414 : f32 to vector<16x16xf32>
    %1416 = arith.mulf %1415, %970 : vector<16x16xf32>
    %1417 = arith.addf %1413, %1416 : vector<16x16xf32>
    %c103_394 = arith.constant 103 : index
    %1418 = memref.load %arg8[%c103_394] : memref<144xf32, #tpu.memory_space<smem>>
    %1419 = vector.broadcast %1418 : f32 to vector<16x16xf32>
    %1420 = arith.mulf %1419, %972 : vector<16x16xf32>
    %1421 = arith.addf %1417, %1420 : vector<16x16xf32>
    %c104_395 = arith.constant 104 : index
    %1422 = memref.load %arg8[%c104_395] : memref<144xf32, #tpu.memory_space<smem>>
    %1423 = vector.broadcast %1422 : f32 to vector<16x16xf32>
    %1424 = arith.mulf %1423, %974 : vector<16x16xf32>
    %1425 = arith.addf %1421, %1424 : vector<16x16xf32>
    %c105_396 = arith.constant 105 : index
    %1426 = memref.load %arg8[%c105_396] : memref<144xf32, #tpu.memory_space<smem>>
    %1427 = vector.broadcast %1426 : f32 to vector<16x16xf32>
    %1428 = arith.mulf %1427, %976 : vector<16x16xf32>
    %1429 = arith.addf %1425, %1428 : vector<16x16xf32>
    %c106_397 = arith.constant 106 : index
    %1430 = memref.load %arg8[%c106_397] : memref<144xf32, #tpu.memory_space<smem>>
    %1431 = vector.broadcast %1430 : f32 to vector<16x16xf32>
    %1432 = arith.mulf %1431, %978 : vector<16x16xf32>
    %1433 = arith.addf %1429, %1432 : vector<16x16xf32>
    %c107_398 = arith.constant 107 : index
    %1434 = memref.load %arg8[%c107_398] : memref<144xf32, #tpu.memory_space<smem>>
    %1435 = vector.broadcast %1434 : f32 to vector<16x16xf32>
    %1436 = arith.mulf %1435, %980 : vector<16x16xf32>
    %1437 = arith.addf %1433, %1436 : vector<16x16xf32>
    %cst_399 = arith.constant 0.000000e+00 : f32
    %1438 = vector.broadcast %cst_399 : f32 to vector<16x16xf32>
    %1439 = arith.cmpf oge, %1437, %1438 : vector<16x16xf32>
    %1440 = vector.broadcast %215 : f32 to vector<16x16xf32>
    %1441 = arith.mulf %1440, %1437 : vector<16x16xf32>
    %1442 = arith.select %1439, %1437, %1441 : vector<16x16xi1>, vector<16x16xf32>
    %c0_400 = arith.constant 0 : index
    %c2_401 = arith.constant 2 : index
    %c0_402 = arith.constant 0 : index
    %c0_403 = arith.constant 0 : index
    %1443 = vector.load %arg11[%c0_400, %c2_401, %c0_402, %c0_403] : memref<1x4x16x16xf32, #tpu.memory_space<vmem>>, vector<1x1x16x16xf32>
    %1444 = vector.shape_cast %1443 : vector<1x1x16x16xf32> to vector<16x16xf32>
    %1445 = vector.shape_cast %1442 : vector<16x16xf32> to vector<1x1x16x16xf32>
    tpu.vector_store %arg11[%c0_400, %c2_401, %c0_402, %c0_403], %1445 {strides = array<i32>} : memref<1x4x16x16xf32, #tpu.memory_space<vmem>>, vector<1x1x16x16xf32>,
    %c3_404 = arith.constant 3 : index
    %1446 = memref.load %arg9[%c3_404] : memref<4xf32, #tpu.memory_space<smem>>
    %1447 = vector.broadcast %1446 : f32 to vector<16x16xf32>
    %1448 = arith.addf %216, %1447 : vector<16x16xf32>
    %c108_405 = arith.constant 108 : index
    %1449 = memref.load %arg8[%c108_405] : memref<144xf32, #tpu.memory_space<smem>>
    %1450 = vector.broadcast %1449 : f32 to vector<16x16xf32>
    %1451 = arith.mulf %1450, %910 : vector<16x16xf32>
    %1452 = arith.addf %1448, %1451 : vector<16x16xf32>
    %c109_406 = arith.constant 109 : index
    %1453 = memref.load %arg8[%c109_406] : memref<144xf32, #tpu.memory_space<smem>>
    %1454 = vector.broadcast %1453 : f32 to vector<16x16xf32>
    %1455 = arith.mulf %1454, %912 : vector<16x16xf32>
    %1456 = arith.addf %1452, %1455 : vector<16x16xf32>
    %c110_407 = arith.constant 110 : index
    %1457 = memref.load %arg8[%c110_407] : memref<144xf32, #tpu.memory_space<smem>>
    %1458 = vector.broadcast %1457 : f32 to vector<16x16xf32>
    %1459 = arith.mulf %1458, %914 : vector<16x16xf32>
    %1460 = arith.addf %1456, %1459 : vector<16x16xf32>
    %c111_408 = arith.constant 111 : index
    %1461 = memref.load %arg8[%c111_408] : memref<144xf32, #tpu.memory_space<smem>>
    %1462 = vector.broadcast %1461 : f32 to vector<16x16xf32>
    %1463 = arith.mulf %1462, %916 : vector<16x16xf32>
    %1464 = arith.addf %1460, %1463 : vector<16x16xf32>
    %c112_409 = arith.constant 112 : index
    %1465 = memref.load %arg8[%c112_409] : memref<144xf32, #tpu.memory_space<smem>>
    %1466 = vector.broadcast %1465 : f32 to vector<16x16xf32>
    %1467 = arith.mulf %1466, %918 : vector<16x16xf32>
    %1468 = arith.addf %1464, %1467 : vector<16x16xf32>
    %c113_410 = arith.constant 113 : index
    %1469 = memref.load %arg8[%c113_410] : memref<144xf32, #tpu.memory_space<smem>>
    %1470 = vector.broadcast %1469 : f32 to vector<16x16xf32>
    %1471 = arith.mulf %1470, %920 : vector<16x16xf32>
    %1472 = arith.addf %1468, %1471 : vector<16x16xf32>
    %c114_411 = arith.constant 114 : index
    %1473 = memref.load %arg8[%c114_411] : memref<144xf32, #tpu.memory_space<smem>>
    %1474 = vector.broadcast %1473 : f32 to vector<16x16xf32>
    %1475 = arith.mulf %1474, %922 : vector<16x16xf32>
    %1476 = arith.addf %1472, %1475 : vector<16x16xf32>
    %c115_412 = arith.constant 115 : index
    %1477 = memref.load %arg8[%c115_412] : memref<144xf32, #tpu.memory_space<smem>>
    %1478 = vector.broadcast %1477 : f32 to vector<16x16xf32>
    %1479 = arith.mulf %1478, %924 : vector<16x16xf32>
    %1480 = arith.addf %1476, %1479 : vector<16x16xf32>
    %c116_413 = arith.constant 116 : index
    %1481 = memref.load %arg8[%c116_413] : memref<144xf32, #tpu.memory_space<smem>>
    %1482 = vector.broadcast %1481 : f32 to vector<16x16xf32>
    %1483 = arith.mulf %1482, %926 : vector<16x16xf32>
    %1484 = arith.addf %1480, %1483 : vector<16x16xf32>
    %c117_414 = arith.constant 117 : index
    %1485 = memref.load %arg8[%c117_414] : memref<144xf32, #tpu.memory_space<smem>>
    %1486 = vector.broadcast %1485 : f32 to vector<16x16xf32>
    %1487 = arith.mulf %1486, %928 : vector<16x16xf32>
    %1488 = arith.addf %1484, %1487 : vector<16x16xf32>
    %c118_415 = arith.constant 118 : index
    %1489 = memref.load %arg8[%c118_415] : memref<144xf32, #tpu.memory_space<smem>>
    %1490 = vector.broadcast %1489 : f32 to vector<16x16xf32>
    %1491 = arith.mulf %1490, %930 : vector<16x16xf32>
    %1492 = arith.addf %1488, %1491 : vector<16x16xf32>
    %c119_416 = arith.constant 119 : index
    %1493 = memref.load %arg8[%c119_416] : memref<144xf32, #tpu.memory_space<smem>>
    %1494 = vector.broadcast %1493 : f32 to vector<16x16xf32>
    %1495 = arith.mulf %1494, %932 : vector<16x16xf32>
    %1496 = arith.addf %1492, %1495 : vector<16x16xf32>
    %c120_417 = arith.constant 120 : index
    %1497 = memref.load %arg8[%c120_417] : memref<144xf32, #tpu.memory_space<smem>>
    %1498 = vector.broadcast %1497 : f32 to vector<16x16xf32>
    %1499 = arith.mulf %1498, %934 : vector<16x16xf32>
    %1500 = arith.addf %1496, %1499 : vector<16x16xf32>
    %c121_418 = arith.constant 121 : index
    %1501 = memref.load %arg8[%c121_418] : memref<144xf32, #tpu.memory_space<smem>>
    %1502 = vector.broadcast %1501 : f32 to vector<16x16xf32>
    %1503 = arith.mulf %1502, %936 : vector<16x16xf32>
    %1504 = arith.addf %1500, %1503 : vector<16x16xf32>
    %c122_419 = arith.constant 122 : index
    %1505 = memref.load %arg8[%c122_419] : memref<144xf32, #tpu.memory_space<smem>>
    %1506 = vector.broadcast %1505 : f32 to vector<16x16xf32>
    %1507 = arith.mulf %1506, %938 : vector<16x16xf32>
    %1508 = arith.addf %1504, %1507 : vector<16x16xf32>
    %c123_420 = arith.constant 123 : index
    %1509 = memref.load %arg8[%c123_420] : memref<144xf32, #tpu.memory_space<smem>>
    %1510 = vector.broadcast %1509 : f32 to vector<16x16xf32>
    %1511 = arith.mulf %1510, %940 : vector<16x16xf32>
    %1512 = arith.addf %1508, %1511 : vector<16x16xf32>
    %c124_421 = arith.constant 124 : index
    %1513 = memref.load %arg8[%c124_421] : memref<144xf32, #tpu.memory_space<smem>>
    %1514 = vector.broadcast %1513 : f32 to vector<16x16xf32>
    %1515 = arith.mulf %1514, %942 : vector<16x16xf32>
    %1516 = arith.addf %1512, %1515 : vector<16x16xf32>
    %c125_422 = arith.constant 125 : index
    %1517 = memref.load %arg8[%c125_422] : memref<144xf32, #tpu.memory_space<smem>>
    %1518 = vector.broadcast %1517 : f32 to vector<16x16xf32>
    %1519 = arith.mulf %1518, %944 : vector<16x16xf32>
    %1520 = arith.addf %1516, %1519 : vector<16x16xf32>
    %c126_423 = arith.constant 126 : index
    %1521 = memref.load %arg8[%c126_423] : memref<144xf32, #tpu.memory_space<smem>>
    %1522 = vector.broadcast %1521 : f32 to vector<16x16xf32>
    %1523 = arith.mulf %1522, %946 : vector<16x16xf32>
    %1524 = arith.addf %1520, %1523 : vector<16x16xf32>
    %c127_424 = arith.constant 127 : index
    %1525 = memref.load %arg8[%c127_424] : memref<144xf32, #tpu.memory_space<smem>>
    %1526 = vector.broadcast %1525 : f32 to vector<16x16xf32>
    %1527 = arith.mulf %1526, %948 : vector<16x16xf32>
    %1528 = arith.addf %1524, %1527 : vector<16x16xf32>
    %c128_425 = arith.constant 128 : index
    %1529 = memref.load %arg8[%c128_425] : memref<144xf32, #tpu.memory_space<smem>>
    %1530 = vector.broadcast %1529 : f32 to vector<16x16xf32>
    %1531 = arith.mulf %1530, %950 : vector<16x16xf32>
    %1532 = arith.addf %1528, %1531 : vector<16x16xf32>
    %c129_426 = arith.constant 129 : index
    %1533 = memref.load %arg8[%c129_426] : memref<144xf32, #tpu.memory_space<smem>>
    %1534 = vector.broadcast %1533 : f32 to vector<16x16xf32>
    %1535 = arith.mulf %1534, %952 : vector<16x16xf32>
    %1536 = arith.addf %1532, %1535 : vector<16x16xf32>
    %c130_427 = arith.constant 130 : index
    %1537 = memref.load %arg8[%c130_427] : memref<144xf32, #tpu.memory_space<smem>>
    %1538 = vector.broadcast %1537 : f32 to vector<16x16xf32>
    %1539 = arith.mulf %1538, %954 : vector<16x16xf32>
    %1540 = arith.addf %1536, %1539 : vector<16x16xf32>
    %c131_428 = arith.constant 131 : index
    %1541 = memref.load %arg8[%c131_428] : memref<144xf32, #tpu.memory_space<smem>>
    %1542 = vector.broadcast %1541 : f32 to vector<16x16xf32>
    %1543 = arith.mulf %1542, %956 : vector<16x16xf32>
    %1544 = arith.addf %1540, %1543 : vector<16x16xf32>
    %c132_429 = arith.constant 132 : index
    %1545 = memref.load %arg8[%c132_429] : memref<144xf32, #tpu.memory_space<smem>>
    %1546 = vector.broadcast %1545 : f32 to vector<16x16xf32>
    %1547 = arith.mulf %1546, %958 : vector<16x16xf32>
    %1548 = arith.addf %1544, %1547 : vector<16x16xf32>
    %c133_430 = arith.constant 133 : index
    %1549 = memref.load %arg8[%c133_430] : memref<144xf32, #tpu.memory_space<smem>>
    %1550 = vector.broadcast %1549 : f32 to vector<16x16xf32>
    %1551 = arith.mulf %1550, %960 : vector<16x16xf32>
    %1552 = arith.addf %1548, %1551 : vector<16x16xf32>
    %c134_431 = arith.constant 134 : index
    %1553 = memref.load %arg8[%c134_431] : memref<144xf32, #tpu.memory_space<smem>>
    %1554 = vector.broadcast %1553 : f32 to vector<16x16xf32>
    %1555 = arith.mulf %1554, %962 : vector<16x16xf32>
    %1556 = arith.addf %1552, %1555 : vector<16x16xf32>
    %c135_432 = arith.constant 135 : index
    %1557 = memref.load %arg8[%c135_432] : memref<144xf32, #tpu.memory_space<smem>>
    %1558 = vector.broadcast %1557 : f32 to vector<16x16xf32>
    %1559 = arith.mulf %1558, %964 : vector<16x16xf32>
    %1560 = arith.addf %1556, %1559 : vector<16x16xf32>
    %c136_433 = arith.constant 136 : index
    %1561 = memref.load %arg8[%c136_433] : memref<144xf32, #tpu.memory_space<smem>>
    %1562 = vector.broadcast %1561 : f32 to vector<16x16xf32>
    %1563 = arith.mulf %1562, %966 : vector<16x16xf32>
    %1564 = arith.addf %1560, %1563 : vector<16x16xf32>
    %c137_434 = arith.constant 137 : index
    %1565 = memref.load %arg8[%c137_434] : memref<144xf32, #tpu.memory_space<smem>>
    %1566 = vector.broadcast %1565 : f32 to vector<16x16xf32>
    %1567 = arith.mulf %1566, %968 : vector<16x16xf32>
    %1568 = arith.addf %1564, %1567 : vector<16x16xf32>
    %c138_435 = arith.constant 138 : index
    %1569 = memref.load %arg8[%c138_435] : memref<144xf32, #tpu.memory_space<smem>>
    %1570 = vector.broadcast %1569 : f32 to vector<16x16xf32>
    %1571 = arith.mulf %1570, %970 : vector<16x16xf32>
    %1572 = arith.addf %1568, %1571 : vector<16x16xf32>
    %c139_436 = arith.constant 139 : index
    %1573 = memref.load %arg8[%c139_436] : memref<144xf32, #tpu.memory_space<smem>>
    %1574 = vector.broadcast %1573 : f32 to vector<16x16xf32>
    %1575 = arith.mulf %1574, %972 : vector<16x16xf32>
    %1576 = arith.addf %1572, %1575 : vector<16x16xf32>
    %c140_437 = arith.constant 140 : index
    %1577 = memref.load %arg8[%c140_437] : memref<144xf32, #tpu.memory_space<smem>>
    %1578 = vector.broadcast %1577 : f32 to vector<16x16xf32>
    %1579 = arith.mulf %1578, %974 : vector<16x16xf32>
    %1580 = arith.addf %1576, %1579 : vector<16x16xf32>
    %c141_438 = arith.constant 141 : index
    %1581 = memref.load %arg8[%c141_438] : memref<144xf32, #tpu.memory_space<smem>>
    %1582 = vector.broadcast %1581 : f32 to vector<16x16xf32>
    %1583 = arith.mulf %1582, %976 : vector<16x16xf32>
    %1584 = arith.addf %1580, %1583 : vector<16x16xf32>
    %c142_439 = arith.constant 142 : index
    %1585 = memref.load %arg8[%c142_439] : memref<144xf32, #tpu.memory_space<smem>>
    %1586 = vector.broadcast %1585 : f32 to vector<16x16xf32>
    %1587 = arith.mulf %1586, %978 : vector<16x16xf32>
    %1588 = arith.addf %1584, %1587 : vector<16x16xf32>
    %c143_440 = arith.constant 143 : index
    %1589 = memref.load %arg8[%c143_440] : memref<144xf32, #tpu.memory_space<smem>>
    %1590 = vector.broadcast %1589 : f32 to vector<16x16xf32>
    %1591 = arith.mulf %1590, %980 : vector<16x16xf32>
    %1592 = arith.addf %1588, %1591 : vector<16x16xf32>
    %cst_441 = arith.constant 0.000000e+00 : f32
    %1593 = vector.broadcast %cst_441 : f32 to vector<16x16xf32>
    %1594 = arith.cmpf oge, %1592, %1593 : vector<16x16xf32>
    %1595 = vector.broadcast %215 : f32 to vector<16x16xf32>
    %1596 = arith.mulf %1595, %1592 : vector<16x16xf32>
    %1597 = arith.select %1594, %1592, %1596 : vector<16x16xi1>, vector<16x16xf32>
    %c0_442 = arith.constant 0 : index
    %c3_443 = arith.constant 3 : index
    %c0_444 = arith.constant 0 : index
    %c0_445 = arith.constant 0 : index
    %1598 = vector.load %arg11[%c0_442, %c3_443, %c0_444, %c0_445] : memref<1x4x16x16xf32, #tpu.memory_space<vmem>>, vector<1x1x16x16xf32>
    %1599 = vector.shape_cast %1598 : vector<1x1x16x16xf32> to vector<16x16xf32>
    %1600 = vector.shape_cast %1597 : vector<16x16xf32> to vector<1x1x16x16xf32>
    tpu.vector_store %arg11[%c0_442, %c3_443, %c0_444, %c0_445], %1600 {strides = array<i32>} : memref<1x4x16x16xf32, #tpu.memory_space<vmem>>, vector<1x1x16x16xf32>,
    return
  }
  func.func @transform_0(%arg0: i32) -> (i32, i32, i32, i32) {
    %c0_i32 = arith.constant 0 : i32
    %c0_i32_0 = arith.constant 0 : i32
    %c0_i32_1 = arith.constant 0 : i32
    %c0_i32_2 = arith.constant 0 : i32
    return %arg0, %c0_i32, %c0_i32_0, %c0_i32_1 : i32, i32, i32, i32
  }
  func.func @transform_1(%arg0: i32) -> (i32, i32, i32, i32) {
    %c0_i32 = arith.constant 0 : i32
    %c0_i32_0 = arith.constant 0 : i32
    %c0_i32_1 = arith.constant 0 : i32
    %c0_i32_2 = arith.constant 0 : i32
    return %arg0, %c0_i32, %c0_i32_0, %c0_i32_1 : i32, i32, i32, i32
  }
  func.func @transform_2(%arg0: i32) -> (i32, i32) {
    %c0_i32 = arith.constant 0 : i32
    %c0_i32_0 = arith.constant 0 : i32
    %c0_i32_1 = arith.constant 0 : i32
    return %c0_i32, %c0_i32_0 : i32, i32
  }
  func.func @transform_3(%arg0: i32) -> (i32, i32) {
    %c0_i32 = arith.constant 0 : i32
    %c0_i32_0 = arith.constant 0 : i32
    %c0_i32_1 = arith.constant 0 : i32
    return %c0_i32, %c0_i32_0 : i32, i32
  }
  func.func @transform_4(%arg0: i32) -> i32 {
    %c0_i32 = arith.constant 0 : i32
    %c0_i32_0 = arith.constant 0 : i32
    return %c0_i32 : i32
  }
  func.func @transform_5(%arg0: i32) -> i32 {
    %c0_i32 = arith.constant 0 : i32
    %c0_i32_0 = arith.constant 0 : i32
    return %c0_i32 : i32
  }
  func.func @transform_6(%arg0: i32) -> i32 {
    %c0_i32 = arith.constant 0 : i32
    %c0_i32_0 = arith.constant 0 : i32
    return %c0_i32 : i32
  }
  func.func @transform_7(%arg0: i32) -> i32 {
    %c0_i32 = arith.constant 0 : i32
    %c0_i32_0 = arith.constant 0 : i32
    return %c0_i32 : i32
  }
  func.func @transform_8(%arg0: i32) -> i32 {
    %c0_i32 = arith.constant 0 : i32
    %c0_i32_0 = arith.constant 0 : i32
    return %c0_i32 : i32
  }
  func.func @transform_9(%arg0: i32) -> i32 {
    %c0_i32 = arith.constant 0 : i32
    %c0_i32_0 = arith.constant 0 : i32
    return %c0_i32 : i32
  }
  func.func @transform_10(%arg0: i32) -> (i32, i32, i32, i32) {
    %c0_i32 = arith.constant 0 : i32
    %c0_i32_0 = arith.constant 0 : i32
    %c0_i32_1 = arith.constant 0 : i32
    %c0_i32_2 = arith.constant 0 : i32
    return %arg0, %c0_i32, %c0_i32_0, %c0_i32_1 : i32, i32, i32, i32
  }
}

</mosaic_0001>

<llo_original>
// kernel: up_forward.1
$region0: #{up_forward.1}
  #allocation0 [shape = 'u32[]', space=smem, size = 0x4, offset = 0x4, fixed_abs, tag = 'smem constant byte address 0x4 - core index']
  #allocation1 [shape = 'u32[144,128]{1,0:T(1,128)}', space=vmem, size = 0x12000, scoped, tag = 'internal scratch']
  #allocation2 [shape = 'f32[4,18,18]{2,1,0:T(8,128)}', space=vmem, size = 0xc000, scoped, tag = 'scratch operand']
  #allocation3 [shape = 'f32[4,18,18]{2,1,0:T(8,128)}', space=vmem, size = 0xc000, scoped, tag = 'scratch operand']
  #allocation4 [shape = 'f32[1]{0:T(128)S(6)}', space=smem, size = 0x200, scoped, tag = 'scoped memory for up_forward.1']
  #allocation5 [shape = 'f32[1]{0:T(128)S(6)}', space=smem, size = 0x200, scoped, tag = 'scoped memory for up_forward.1']
  %s0 = inlined_call_operand.vmem [shape: f32[2,2,8,8], index: 0, kind: input, shape index: {}]
  %s1 = inlined_call_operand.vmem [shape: f32[2,2,16,16], index: 1, kind: input, shape index: {}]
  %s2 = inlined_call_operand.vmem [shape: f32[16,8], index: 2, kind: input, shape index: {}]
  %s3 = inlined_call_operand.vmem [shape: f32[8,16], index: 3, kind: input, shape index: {}]
  %s4 = inlined_call_operand.vmem [shape: f32[144], index: 4, kind: input, shape index: {}]
  %s5 = inlined_call_operand.vmem [shape: f32[4], index: 5, kind: input, shape index: {}]
  %s6 = inlined_call_operand.<no memory space> [shape: f32[1], index: 6, kind: input, shape index: {}]
  %s7 = inlined_call_operand.vmem [shape: f32[144], index: 7, kind: input, shape index: {}]
  %s8 = inlined_call_operand.vmem [shape: f32[4], index: 8, kind: input, shape index: {}]
  %s9 = inlined_call_operand.<no memory space> [shape: f32[1], index: 9, kind: input, shape index: {}]
  %s10 = inlined_call_operand.hbm [shape: f32[2,4,16,16], index: 10, kind: output, shape index: {}]
  %s11 = sld [smem:[#allocation0]]
  $region89: #{up_forward.1} parent=0
    _
  %s13 = ssub.s32 1, %s11
  %s14 = scalar_select 0, %s13, %s11
  %15 = sst [smem:[#allocation4]] %s6
  %16 = sst [smem:[#allocation5]] %s9
  $region1: #{up_forward.1} parent=0
    #allocation6 [shape = 'u8[1024]{0}', space=smem, size = 0x400, scoped, tag = 'input window, operand 4, single buffered']
    #allocation7 [shape = 's32[2]{0}', space=sflag, size = 0x8, scoped, tag = 'scoped memory for up_forward.1']
    #allocation8 [shape = 's32[2]{0}', space=sflag, size = 0x8, scoped, tag = 'scoped memory for up_forward.1']
    #allocation9 [shape = 'u8[512]{0}', space=smem, size = 0x200, scoped, tag = 'input window, operand 5, single buffered']
    #allocation10 [shape = 's32[1]{0}', space=sflag, size = 0x4, scoped, tag = 'scoped memory for up_forward.1']
    #allocation11 [shape = 'u8[1024]{0}', space=smem, size = 0x400, scoped, tag = 'input window, operand 7, single buffered']
    #allocation12 [shape = 'u8[512]{0}', space=smem, size = 0x200, scoped, tag = 'input window, operand 8, single buffered']
    #allocation13 [shape = 's32[1]{0}', space=sflag, size = 0x4, scoped, tag = 'scoped memory for up_forward.1']
    #allocation14 [shape = 'u8[65536]{0}', space=vmem, size = 0x10000, scoped, tag = 'output window, operand 0']
    %17 = vsyncpa [#allocation8], 0
    %18 = vsyncpa [#allocation10], 0
    %19 = vsyncpa [#allocation13], 0
    %20 = vsyncpa [#allocation7], 0
    %s21 = scalar_lea.sflag [#allocation7], 1
    %22 = vsyncpa %s21, 0
    loop: start=0, step=1, limit=4
    $region2: #{up_forward.1} parent=1 // loop_pre_header
      _
    $region3: #{up_forward.1} parent=1 // loop_header
      %s24 = sphi 0, %s28
      %p25 = scmp.ge.s32.totalorder %s24, 4
      %s34 = sphi 0, %s36
      %s37 = sphi 0, %s34
      %s38 = sphi 0, %s37
      %s54 = sphi 0, %s38
      %s60 = sphi 0, %s62
      %s63 = sphi 0, %s60
      %s64 = sphi 0, %s63
      %s80 = sphi 0, %s64
      %s84 = sphi 0, %s84
      %s86 = sphi 0, %s84
      %s87 = sphi 0, %s86
      %s101 = sphi 0, %s87
      %s105 = sphi 0, %s105
      %s107 = sphi 0, %s105
      %s108 = sphi 0, %s107
      %s122 = sphi 0, %s108
      %s126 = sphi 0, %s126
      %s128 = sphi 0, %s126
      %s129 = sphi 0, %s128
      %s143 = sphi 0, %s129
      %s147 = sphi 0, %s147
      %s149 = sphi 0, %s147
      %s150 = sphi 0, %s149
      %s164 = sphi 0, %s150
      %s168 = sphi 0, %s168
      %s170 = sphi 0, %s168
      %s171 = sphi 0, %s170
      %s185 = sphi 0, %s171
      %s189 = sphi 0, %s189
      %s191 = sphi 0, %s189
      %s192 = sphi 0, %s191
      %s206 = sphi 0, %s192
      %s210 = sphi 0, %s210
      %s212 = sphi 0, %s210
      %s213 = sphi 0, %s212
      %s227 = sphi 0, %s213
      %s231 = sphi 0, %s231
      %s233 = sphi 0, %s231
      %s234 = sphi 0, %s233
      %s248 = sphi 0, %s234
      %s254 = sphi 0, %s256
      %s257 = sphi 0, %s254
      %s258 = sphi 0, %s257
      %s274 = sphi 0, %s258
    $region4: #{up_forward.1} parent=1 // loop_header_branch
      %27 = sbr.rel (%p25) target = $region8
    $region5: #{up_forward.1} parent=1 // loop_body
      %s29 = ssub.s32 %s24, 1
      %s30 = ssub.s32 %s24, 2
      %s31 = sadd.s32 %s24, 1
      %s32 = ssub.s32 %s24, %s31
      %p33 = scmp.eq.s32.totalorder %s32, 0
      %s35 = sadd.s32 %s34, 1
      %s36 = scalar_select %p33, %s34, %s35
      %p39 = pneg %p33
      %p40 = scmp.eq.s32.totalorder %s24, 1
      %p41 = por %p39, %p40
      %p42 = scmp.ne.s32.totalorder %s34, %s37
      %p43 = scmp.eq.s32.totalorder %s24, 0
      %p44 = por %p42, %p43
      %p45 = scmp.ne.s32.totalorder %s34, %s37
      %p46 = scmp.eq.s32.totalorder %s29, 1
      %p47 = por %p45, %p46
      %p48 = scmp.ne.s32.totalorder %s37, %s38
      %p49 = scmp.eq.s32.totalorder %s29, 0
      %p50 = por %p48, %p49
      %p51 = scmp.ne.s32.totalorder %s37, %s38
      %p52 = scmp.eq.s32.totalorder %s30, 1
      %p53 = por %p51, %p52
      %p55 = scmp.ne.s32.totalorder %s38, %s54
      %p56 = scmp.eq.s32.totalorder %s30, 0
      %p57 = por %p55, %p56
      %s58 = ssub.s32 %s24, %s31
      %p59 = scmp.eq.s32.totalorder %s58, 0
      %s61 = sadd.s32 %s60, 1
      %s62 = scalar_select %p59, %s60, %s61
      %p65 = pneg %p59
      %p66 = scmp.eq.s32.totalorder %s24, 1
      %p67 = por %p65, %p66
      %p68 = scmp.ne.s32.totalorder %s60, %s63
      %p69 = scmp.eq.s32.totalorder %s24, 0
      %p70 = por %p68, %p69
      %p71 = scmp.ne.s32.totalorder %s60, %s63
      %p72 = scmp.eq.s32.totalorder %s29, 1
      %p73 = por %p71, %p72
      %p74 = scmp.ne.s32.totalorder %s63, %s64
      %p75 = scmp.eq.s32.totalorder %s29, 0
      %p76 = por %p74, %p75
      %p77 = scmp.ne.s32.totalorder %s63, %s64
      %p78 = scmp.eq.s32.totalorder %s30, 1
      %p79 = por %p77, %p78
      %p81 = scmp.ne.s32.totalorder %s64, %s80
      %p82 = scmp.eq.s32.totalorder %s30, 0
      %p83 = por %p81, %p82
      %s85 = sadd.s32 %s84, 1
      %p88 = scmp.eq.s32.totalorder %s24, 1
      %p89 = scmp.ne.s32.totalorder %s84, %s86
      %p90 = scmp.eq.s32.totalorder %s24, 0
      %p91 = por %p89, %p90
      %p92 = scmp.ne.s32.totalorder %s84, %s86
      %p93 = scmp.eq.s32.totalorder %s29, 1
      %p94 = por %p92, %p93
      %p95 = scmp.ne.s32.totalorder %s86, %s87
      %p96 = scmp.eq.s32.totalorder %s29, 0
      %p97 = por %p95, %p96
      %p98 = scmp.ne.s32.totalorder %s86, %s87
      %p99 = scmp.eq.s32.totalorder %s30, 1
      %p100 = por %p98, %p99
      %p102 = scmp.ne.s32.totalorder %s87, %s101
      %p103 = scmp.eq.s32.totalorder %s30, 0
      %p104 = por %p102, %p103
      %s106 = sadd.s32 %s105, 1
      %p109 = scmp.eq.s32.totalorder %s24, 1
      %p110 = scmp.ne.s32.totalorder %s105, %s107
      %p111 = scmp.eq.s32.totalorder %s24, 0
      %p112 = por %p110, %p111
      %p113 = scmp.ne.s32.totalorder %s105, %s107
      %p114 = scmp.eq.s32.totalorder %s29, 1
      %p115 = por %p113, %p114
      %p116 = scmp.ne.s32.totalorder %s107, %s108
      %p117 = scmp.eq.s32.totalorder %s29, 0
      %p118 = por %p116, %p117
      %p119 = scmp.ne.s32.totalorder %s107, %s108
      %p120 = scmp.eq.s32.totalorder %s30, 1
      %p121 = por %p119, %p120
      %p123 = scmp.ne.s32.totalorder %s108, %s122
      %p124 = scmp.eq.s32.totalorder %s30, 0
      %p125 = por %p123, %p124
      %s127 = sadd.s32 %s126, 1
      %p130 = scmp.eq.s32.totalorder %s24, 1
      %p131 = scmp.ne.s32.totalorder %s126, %s128
      %p132 = scmp.eq.s32.totalorder %s24, 0
      %p133 = por %p131, %p132
      %p134 = scmp.ne.s32.totalorder %s126, %s128
      %p135 = scmp.eq.s32.totalorder %s29, 1
      %p136 = por %p134, %p135
      %p137 = scmp.ne.s32.totalorder %s128, %s129
      %p138 = scmp.eq.s32.totalorder %s29, 0
      %p139 = por %p137, %p138
      %p140 = scmp.ne.s32.totalorder %s128, %s129
      %p141 = scmp.eq.s32.totalorder %s30, 1
      %p142 = por %p140, %p141
      %p144 = scmp.ne.s32.totalorder %s129, %s143
      %p145 = scmp.eq.s32.totalorder %s30, 0
      %p146 = por %p144, %p145
      %s148 = sadd.s32 %s147, 1
      %p151 = scmp.eq.s32.totalorder %s24, 1
      %p152 = scmp.ne.s32.totalorder %s147, %s149
      %p153 = scmp.eq.s32.totalorder %s24, 0
      %p154 = por %p152, %p153
      %p155 = scmp.ne.s32.totalorder %s147, %s149
      %p156 = scmp.eq.s32.totalorder %s29, 1
      %p157 = por %p155, %p156
      %p158 = scmp.ne.s32.totalorder %s149, %s150
      %p159 = scmp.eq.s32.totalorder %s29, 0
      %p160 = por %p158, %p159
      %p161 = scmp.ne.s32.totalorder %s149, %s150
      %p162 = scmp.eq.s32.totalorder %s30, 1
      %p163 = por %p161, %p162
      %p165 = scmp.ne.s32.totalorder %s150, %s164
      %p166 = scmp.eq.s32.totalorder %s30, 0
      %p167 = por %p165, %p166
      %s169 = sadd.s32 %s168, 1
      %p172 = scmp.eq.s32.totalorder %s24, 1
      %p173 = scmp.ne.s32.totalorder %s168, %s170
      %p174 = scmp.eq.s32.totalorder %s24, 0
      %p175 = por %p173, %p174
      %p176 = scmp.ne.s32.totalorder %s168, %s170
      %p177 = scmp.eq.s32.totalorder %s29, 1
      %p178 = por %p176, %p177
      %p179 = scmp.ne.s32.totalorder %s170, %s171
      %p180 = scmp.eq.s32.totalorder %s29, 0
      %p181 = por %p179, %p180
      %p182 = scmp.ne.s32.totalorder %s170, %s171
      %p183 = scmp.eq.s32.totalorder %s30, 1
      %p184 = por %p182, %p183
      %p186 = scmp.ne.s32.totalorder %s171, %s185
      %p187 = scmp.eq.s32.totalorder %s30, 0
      %p188 = por %p186, %p187
      %s190 = sadd.s32 %s189, 1
      %p193 = scmp.eq.s32.totalorder %s24, 1
      %p194 = scmp.ne.s32.totalorder %s189, %s191
      %p195 = scmp.eq.s32.totalorder %s24, 0
      %p196 = por %p194, %p195
      %p197 = scmp.ne.s32.totalorder %s189, %s191
      %p198 = scmp.eq.s32.totalorder %s29, 1
      %p199 = por %p197, %p198
      %p200 = scmp.ne.s32.totalorder %s191, %s192
      %p201 = scmp.eq.s32.totalorder %s29, 0
      %p202 = por %p200, %p201
      %p203 = scmp.ne.s32.totalorder %s191, %s192
      %p204 = scmp.eq.s32.totalorder %s30, 1
      %p205 = por %p203, %p204
      %p207 = scmp.ne.s32.totalorder %s192, %s206
      %p208 = scmp.eq.s32.totalorder %s30, 0
      %p209 = por %p207, %p208
      %s211 = sadd.s32 %s210, 1
      %p214 = scmp.eq.s32.totalorder %s24, 1
      %p215 = scmp.ne.s32.totalorder %s210, %s212
      %p216 = scmp.eq.s32.totalorder %s24, 0
      %p217 = por %p215, %p216
      %p218 = scmp.ne.s32.totalorder %s210, %s212
      %p219 = scmp.eq.s32.totalorder %s29, 1
      %p220 = por %p218, %p219
      %p221 = scmp.ne.s32.totalorder %s212, %s213
      %p222 = scmp.eq.s32.totalorder %s29, 0
      %p223 = por %p221, %p222
      %p224 = scmp.ne.s32.totalorder %s212, %s213
      %p225 = scmp.eq.s32.totalorder %s30, 1
      %p226 = por %p224, %p225
      %p228 = scmp.ne.s32.totalorder %s213, %s227
      %p229 = scmp.eq.s32.totalorder %s30, 0
      %p230 = por %p228, %p229
      %s232 = sadd.s32 %s231, 1
      %p235 = scmp.eq.s32.totalorder %s24, 1
      %p236 = scmp.ne.s32.totalorder %s231, %s233
      %p237 = scmp.eq.s32.totalorder %s24, 0
      %p238 = por %p236, %p237
      %p239 = scmp.ne.s32.totalorder %s231, %s233
      %p240 = scmp.eq.s32.totalorder %s29, 1
      %p241 = por %p239, %p240
      %p242 = scmp.ne.s32.totalorder %s233, %s234
      %p243 = scmp.eq.s32.totalorder %s29, 0
      %p244 = por %p242, %p243
      %p245 = scmp.ne.s32.totalorder %s233, %s234
      %p246 = scmp.eq.s32.totalorder %s30, 1
      %p247 = por %p245, %p246
      %p249 = scmp.ne.s32.totalorder %s234, %s248
      %p250 = scmp.eq.s32.totalorder %s30, 0
      %p251 = por %p249, %p250
      %s252 = ssub.s32 %s24, %s31
      %p253 = scmp.eq.s32.totalorder %s252, 0
      %s255 = sadd.s32 %s254, 1
      %s256 = scalar_select %p253, %s254, %s255
      %p259 = pneg %p253
      %p260 = scmp.eq.s32.totalorder %s24, 1
      %p261 = por %p259, %p260
      %p262 = scmp.ne.s32.totalorder %s254, %s257
      %p263 = scmp.eq.s32.totalorder %s24, 0
      %p264 = por %p262, %p263
      %p265 = scmp.ne.s32.totalorder %s254, %s257
      %p266 = scmp.eq.s32.totalorder %s29, 1
      %p267 = por %p265, %p266
      %p268 = scmp.ne.s32.totalorder %s257, %s258
      %p269 = scmp.eq.s32.totalorder %s29, 0
      %p270 = por %p268, %p269
      %p271 = scmp.ne.s32.totalorder %s257, %s258
      %p272 = scmp.eq.s32.totalorder %s30, 1
      %p273 = por %p271, %p272
      %p275 = scmp.ne.s32.totalorder %s258, %s274
      %p276 = scmp.eq.s32.totalorder %s30, 0
      %p277 = por %p275, %p276
      %p278 = scmp.le.s32.totalorder 1, %s24
      %p279 = scmp.lt.s32.totalorder %s24, 3
      %p280 = pnand %p278, %p279
      %p281 = pneg %p280
      // Predicated region
      $region9: #{up_forward.1} parent=5 // pred_check
        _
      $region10: #{up_forward.1} parent=5 // pred_check_branch
        %283 = sbr.rel (%p280) target = $region12
      $region11: #{up_forward.1} parent=5 // pred_region
        %s284 = ssub.s32 %s24, 1
        // Predicated region
        $region13: #{up_forward.1} parent=11 // pred_check
          %p285 = pneg %p97
        $region14: #{up_forward.1} parent=11 // pred_check_branch
          %287 = sbr.rel (%p285) target = $region16
        $region15: #{up_forward.1} parent=11 // pred_region
          _
        $region16: #{up_forward.1} parent=11 // pred_fallthru
          _
        // Predicated region
        $region17: #{up_forward.1} parent=11 // pred_check
          %p288 = pneg %p118
        $region18: #{up_forward.1} parent=11 // pred_check_branch
          %290 = sbr.rel (%p288) target = $region20
        $region19: #{up_forward.1} parent=11 // pred_region
          _
        $region20: #{up_forward.1} parent=11 // pred_fallthru
          _
        // Predicated region
        $region21: #{up_forward.1} parent=11 // pred_check
          %p291 = pneg %p139
        $region22: #{up_forward.1} parent=11 // pred_check_branch
          %293 = sbr.rel (%p291) target = $region24
        $region23: #{up_forward.1} parent=11 // pred_region
          %s295 = ssub.s32 32, 32
          %296 = vsyncadd [#allocation8], %s295
          %s298 = sshll.u32 %s4, 4
          %s299 = int_to_ptr.vmem [resolvable:$true] %s298
          %301 = dma.vmem_to_smem %s299, 32, [#allocation6], [#allocation8]
        $region24: #{up_forward.1} parent=11 // pred_fallthru
          _
        // Predicated region
        $region25: #{up_forward.1} parent=11 // pred_check
          %p302 = pneg %p160
        $region26: #{up_forward.1} parent=11 // pred_check_branch
          %304 = sbr.rel (%p302) target = $region28
        $region27: #{up_forward.1} parent=11 // pred_region
          %s306 = ssub.s32 16, 16
          %307 = vsyncadd [#allocation10], %s306
          %s309 = sshll.u32 %s5, 4
          %s310 = int_to_ptr.vmem [resolvable:$true] %s309
          %312 = dma.vmem_to_smem %s310, 16, [#allocation9], [#allocation10]
        $region28: #{up_forward.1} parent=11 // pred_fallthru
          _
        // Predicated region
        $region29: #{up_forward.1} parent=11 // pred_check
          %p313 = pneg %p181
        $region30: #{up_forward.1} parent=11 // pred_check_branch
          %315 = sbr.rel (%p313) target = $region32
        $region31: #{up_forward.1} parent=11 // pred_region
          _
        $region32: #{up_forward.1} parent=11 // pred_fallthru
          _
        // Predicated region
        $region33: #{up_forward.1} parent=11 // pred_check
          %p316 = pneg %p202
        $region34: #{up_forward.1} parent=11 // pred_check_branch
          %318 = sbr.rel (%p316) target = $region36
        $region35: #{up_forward.1} parent=11 // pred_region
          %s320 = ssub.s32 32, 32
          %321 = vsyncadd [#allocation10], %s320
          %s323 = sshll.u32 %s7, 4
          %s324 = int_to_ptr.vmem [resolvable:$true] %s323
          %326 = dma.vmem_to_smem %s324, 32, [#allocation11], [#allocation10]
        $region36: #{up_forward.1} parent=11 // pred_fallthru
          _
        // Predicated region
        $region37: #{up_forward.1} parent=11 // pred_check
          %p327 = pneg %p223
        $region38: #{up_forward.1} parent=11 // pred_check_branch
          %329 = sbr.rel (%p327) target = $region40
        $region39: #{up_forward.1} parent=11 // pred_region
          %s331 = ssub.s32 16, 16
          %332 = vsyncadd [#allocation13], %s331
          %s334 = sshll.u32 %s8, 4
          %s335 = int_to_ptr.vmem [resolvable:$true] %s334
          %337 = dma.vmem_to_smem %s335, 16, [#allocation12], [#allocation13]
        $region40: #{up_forward.1} parent=11 // pred_fallthru
          _
        // Predicated region
        $region41: #{up_forward.1} parent=11 // pred_check
          %p338 = pneg %p244
        $region42: #{up_forward.1} parent=11 // pred_check_branch
          %340 = sbr.rel (%p338) target = $region44
        $region43: #{up_forward.1} parent=11 // pred_region
          _
        $region44: #{up_forward.1} parent=11 // pred_fallthru
          _
      $region12: #{up_forward.1} parent=5 // pred_fallthru
        _
      %p341 = scmp.lt.s32.totalorder %s24, 2
      // Predicated region
      $region45: #{up_forward.1} parent=5 // pred_check
        %p342 = pneg %p341
      $region46: #{up_forward.1} parent=5 // pred_check_branch
        %344 = sbr.rel (%p342) target = $region48
      $region47: #{up_forward.1} parent=5 // pred_region
        // Predicated region
        $region49: #{up_forward.1} parent=47 // pred_check
          %p345 = pneg %p44
        $region50: #{up_forward.1} parent=47 // pred_check_branch
          %347 = sbr.rel (%p345) target = $region52
        $region51: #{up_forward.1} parent=47 // pred_region
          %p348 = scmp.lt.s32.totalorder %s24, 1
          %s349 = scalar_select %p348, %s24, 1
          %s350 = smul.addr %s349, 2
          %s351 = smul.addr %s350, 8
          %s352 = scalar_lea.vmem %s0, %s351
        $region52: #{up_forward.1} parent=47 // pred_fallthru
          _
        // Predicated region
        $region53: #{up_forward.1} parent=47 // pred_check
          %p353 = pneg %p70
        $region54: #{up_forward.1} parent=47 // pred_check_branch
          %355 = sbr.rel (%p353) target = $region56
        $region55: #{up_forward.1} parent=47 // pred_region
          %p356 = scmp.lt.s32.totalorder %s24, 1
          %s357 = scalar_select %p356, %s24, 1
          %s358 = smul.addr %s357, 4
          %s359 = smul.addr %s358, 8
          %s360 = scalar_lea.vmem %s1, %s359
        $region56: #{up_forward.1} parent=47 // pred_fallthru
          _
      $region48: #{up_forward.1} parent=5 // pred_fallthru
        _
      %p361 = scmp.le.s32.totalorder 1, %s24
      %p362 = scmp.lt.s32.totalorder %s24, 3
      %p363 = pnand %p361, %p362
      %p364 = pneg %p363
      // Predicated region
      $region57: #{up_forward.1} parent=5 // pred_check
        _
      $region58: #{up_forward.1} parent=5 // pred_check_branch
        %366 = sbr.rel (%p363) target = $region60
      $region59: #{up_forward.1} parent=5 // pred_region
        %s367 = ssub.s32 %s24, 1
        // Predicated region
        $region61: #{up_forward.1} parent=59 // pred_check
          %p368 = pneg %p139
        $region62: #{up_forward.1} parent=59 // pred_check_branch
          %370 = sbr.rel (%p368) target = $region64
        $region63: #{up_forward.1} parent=59 // pred_region
          %371 = dma.done [#allocation8], 32
        $region64: #{up_forward.1} parent=59 // pred_fallthru
          _
        // Predicated region
        $region65: #{up_forward.1} parent=59 // pred_check
          %p372 = pneg %p160
        $region66: #{up_forward.1} parent=59 // pred_check_branch
          %374 = sbr.rel (%p372) target = $region68
        $region67: #{up_forward.1} parent=59 // pred_region
          %375 = dma.done [#allocation10], 16
        $region68: #{up_forward.1} parent=59 // pred_fallthru
          _
        // Predicated region
        $region69: #{up_forward.1} parent=59 // pred_check
          %p376 = pneg %p202
        $region70: #{up_forward.1} parent=59 // pred_check_branch
          %378 = sbr.rel (%p376) target = $region72
        $region71: #{up_forward.1} parent=59 // pred_region
          %379 = dma.done [#allocation10], 32
        $region72: #{up_forward.1} parent=59 // pred_fallthru
          _
        // Predicated region
        $region73: #{up_forward.1} parent=59 // pred_check
          %p380 = pneg %p223
        $region74: #{up_forward.1} parent=59 // pred_check_branch
          %382 = sbr.rel (%p380) target = $region76
        $region75: #{up_forward.1} parent=59 // pred_region
          %383 = dma.done [#allocation13], 16
        $region76: #{up_forward.1} parent=59 // pred_fallthru
          _
        %384 = sfence
        %p385 = scmp.lt.s32.totalorder %s29, 1
        %s386 = scalar_select %p385, %s29, 1
        %s387 = smul.addr %s386, 2
        %s388 = smul.addr %s387, 8
        %s389 = scalar_lea.vmem %s0, %s388
        %p390 = pneg %p50
        %p391 = pneg %p47
        %p392 = scmp.lt.s32.totalorder %s29, 1
        %s393 = scalar_select %p392, %s29, 1
        %s394 = smul.addr %s393, 4
        %s395 = smul.addr %s394, 8
        %s396 = scalar_lea.vmem %s1, %s395
        %p397 = pneg %p76
        %p398 = pneg %p73
        %p399 = pneg %p97
        %p400 = pneg %p94
        %p401 = pneg %p118
        %p402 = pneg %p115
        %p403 = pneg %p139
        %p404 = pneg %p136
        %p405 = pneg %p160
        %p406 = pneg %p157
        %p407 = pneg %p181
        %p408 = pneg %p178
        %p409 = pneg %p202
        %p410 = pneg %p199
        %p411 = pneg %p223
        %p412 = pneg %p220
        %p413 = pneg %p244
        %p414 = pneg %p241
        %p415 = pneg %p270
        %p416 = pneg %p267
        %s417 = sand.u32 %s257, 1
        %s418 = scalar_lea.sflag [#allocation7], %s417
        %s419 = sand.u32 %s257, 1
        %s420 = smul.addr %s419, 64
        %s421 = scalar_lea.vmem [#allocation14], %s420
        %p422 = scmp.lt.s32.totalorder %s29, 1
        %s423 = scalar_select %p422, %s29, 1
        %s424 = smul.addr %s423, 2
        %s425 = smul.addr %s424, 8
        %s426 = scalar_lea.vmem %s0, %s425
        %p427 = scmp.lt.s32.totalorder %s29, 1
        %s428 = scalar_select %p427, %s29, 1
        %s429 = smul.addr %s428, 4
        %s430 = smul.addr %s429, 8
        %s431 = scalar_lea.vmem %s1, %s430
        %vm432 = vcmask 146432
        %433 = vst.msk [vmem:[#allocation2] sm:$0xff] %vm432, 0.0
        %434 = vst.msk [vmem:[#allocation2 + $0x8] sm:$0xff] %vm432, 0.0
        %vm435 = vcmask 140288
        %436 = vst.msk [vmem:[#allocation2 + $0x10] sm:$0x3] %vm435, 0.0
        %437 = vst.msk [vmem:[#allocation2 + $0x18] sm:$0xff] %vm432, 0.0
        %438 = vst.msk [vmem:[#allocation2 + $0x20] sm:$0xff] %vm432, 0.0
        %439 = vst.msk [vmem:[#allocation2 + $0x28] sm:$0x3] %vm435, 0.0
        %440 = vst.msk [vmem:[#allocation2 + $0x30] sm:$0xff] %vm432, 0.0
        %441 = vst.msk [vmem:[#allocation2 + $0x38] sm:$0xff] %vm432, 0.0
        %442 = vst.msk [vmem:[#allocation2 + $0x40] sm:$0x3] %vm435, 0.0
        %443 = vst.msk [vmem:[#allocation2 + $0x48] sm:$0xff] %vm432, 0.0
        %444 = vst.msk [vmem:[#allocation2 + $0x50] sm:$0xff] %vm432, 0.0
        %445 = vst.msk [vmem:[#allocation2 + $0x58] sm:$0x3] %vm435, 0.0
        %446 = vst.msk [vmem:[#allocation3] sm:$0xff] %vm432, 0.0
        %447 = vst.msk [vmem:[#allocation3 + $0x8] sm:$0xff] %vm432, 0.0
        %448 = vst.msk [vmem:[#allocation3 + $0x10] sm:$0x3] %vm435, 0.0
        %449 = vst.msk [vmem:[#allocation3 + $0x18] sm:$0xff] %vm432, 0.0
        %450 = vst.msk [vmem:[#allocation3 + $0x20] sm:$0xff] %vm432, 0.0
        %451 = vst.msk [vmem:[#allocation3 + $0x28] sm:$0x3] %vm435, 0.0
        %452 = vst.msk [vmem:[#allocation3 + $0x30] sm:$0xff] %vm432, 0.0
        %453 = vst.msk [vmem:[#allocation3 + $0x38] sm:$0xff] %vm432, 0.0
        %454 = vst.msk [vmem:[#allocation3 + $0x40] sm:$0x3] %vm435, 0.0
        %455 = vst.msk [vmem:[#allocation3 + $0x48] sm:$0xff] %vm432, 0.0
        %456 = vst.msk [vmem:[#allocation3 + $0x50] sm:$0xff] %vm432, 0.0
        %457 = vst.msk [vmem:[#allocation3 + $0x58] sm:$0x3] %vm435, 0.0
        %v458 = vld [vmem:[%s431] sm:$0xff]
        %v459 = vld [vmem:[%s431 + $0x8] sm:$0xff]
        %462 = vrot.lane.b32.xlu0 %v458, 1
        %v463 = vpop.permute.xlu0 %462
        %464 = vrot.lane.b32.xlu0 %v459, 1
        %v465 = vpop.permute.xlu0 %464
        %vm468 = vcmask 138248
        %469 = vst.msk [vmem:[#allocation2 + $0x1] sm:$0xff] %vm468, %v463
        %470 = vst.msk [vmem:[#allocation2 + $0x9] sm:$0xff] %vm468, %v465
        %s471 = scalar_lea.vmem %s431, 16
        %v472 = vld [vmem:[%s471] sm:$0xff]
        %v473 = vld [vmem:[%s471 + $0x8] sm:$0xff]
        %476 = vrot.lane.b32.xlu0 %v472, 1
        %v477 = vpop.permute.xlu0 %476
        %478 = vrot.lane.b32.xlu0 %v473, 1
        %v479 = vpop.permute.xlu0 %478
        %s482 = scalar_lea.vmem [#allocation2], 24
        %483 = vst.msk [vmem:[%s482 + $0x1] sm:$0xff] %vm468, %v477
        %484 = vst.msk [vmem:[%s482 + $0x9] sm:$0xff] %vm468, %v479
        %v485 = vld [vmem:[%s2] sm:$0xff]
        %v486 = vld [vmem:[%s2 + $0x8] sm:$0xff]
        %v487 = vld [vmem:[%s3] sm:$0xff]
        %v488 = vld [vmem:[%s426] sm:$0xff]
        %490 = vset.pattern.permute.xlu0 0
        %491 = vperm.xlu0 %490, %v485
        %v492 = vpop.permute.xlu0 %491
        %495 = vset.pattern.permute.xlu0 0
        %496 = vperm.xlu0 %495, %v486
        %v497 = vpop.permute.xlu0 %496
        %v499 = vlaneseq
        %v500 = vshrl.u32 %v499, 7
        %v501 = vsub.s32 0, %v500
        %v502 = vrot.slane %v488, %v501
        %v503 = vmul.f32 %v492, %v502
        %v504 = vmul.f32 %v497, %v502
        %505 = vset.pattern.permute.xlu0 1
        %506 = vperm.xlu0 %505, %v485
        %v507 = vpop.permute.xlu0 %506
        %509 = vset.pattern.permute.xlu0 1
        %510 = vperm.xlu0 %509, %v486
        %v511 = vpop.permute.xlu0 %510
        %v513 = vlaneseq
        %v514 = vshrl.u32 %v513, 7
        %v515 = vsub.s32 1, %v514
        %v516 = vrot.slane %v488, %v515
        %v517 = vmul.f32 %v507, %v516
        %v518 = vmul.f32 %v511, %v516
        %v519 = vadd.f32 %v503, %v517
        %v520 = vadd.f32 %v504, %v518
        %521 = vset.pattern.permute.xlu0 2
        %522 = vperm.xlu0 %521, %v485
        %v523 = vpop.permute.xlu0 %522
        %525 = vset.pattern.permute.xlu0 2
        %526 = vperm.xlu0 %525, %v486
        %v527 = vpop.permute.xlu0 %526
        %v529 = vlaneseq
        %v530 = vshrl.u32 %v529, 7
        %v531 = vsub.s32 2, %v530
        %v532 = vrot.slane %v488, %v531
        %v533 = vmul.f32 %v523, %v532
        %v534 = vmul.f32 %v527, %v532
        %v535 = vadd.f32 %v519, %v533
        %v536 = vadd.f32 %v520, %v534
        %537 = vset.pattern.permute.xlu0 3
        %538 = vperm.xlu0 %537, %v485
        %v539 = vpop.permute.xlu0 %538
        %541 = vset.pattern.permute.xlu0 3
        %542 = vperm.xlu0 %541, %v486
        %v543 = vpop.permute.xlu0 %542
        %v545 = vlaneseq
        %v546 = vshrl.u32 %v545, 7
        %v547 = vsub.s32 3, %v546
        %v548 = vrot.slane %v488, %v547
        %v549 = vmul.f32 %v539, %v548
        %v550 = vmul.f32 %v543, %v548
        %v551 = vadd.f32 %v535, %v549
        %v552 = vadd.f32 %v536, %v550
        %553 = vset.pattern.permute.xlu0 4
        %554 = vperm.xlu0 %553, %v485
        %v555 = vpop.permute.xlu0 %554
        %557 = vset.pattern.permute.xlu0 4
        %558 = vperm.xlu0 %557, %v486
        %v559 = vpop.permute.xlu0 %558
        %v561 = vlaneseq
        %v562 = vshrl.u32 %v561, 7
        %v563 = vsub.s32 4, %v562
        %v564 = vrot.slane %v488, %v563
        %v565 = vmul.f32 %v555, %v564
        %v566 = vmul.f32 %v559, %v564
        %v567 = vadd.f32 %v551, %v565
        %v568 = vadd.f32 %v552, %v566
        %569 = vset.pattern.permute.xlu0 5
        %570 = vperm.xlu0 %569, %v485
        %v571 = vpop.permute.xlu0 %570
        %573 = vset.pattern.permute.xlu0 5
        %574 = vperm.xlu0 %573, %v486
        %v575 = vpop.permute.xlu0 %574
        %v577 = vlaneseq
        %v578 = vshrl.u32 %v577, 7
        %v579 = vsub.s32 5, %v578
        %v580 = vrot.slane %v488, %v579
        %v581 = vmul.f32 %v571, %v580
        %v582 = vmul.f32 %v575, %v580
        %v583 = vadd.f32 %v567, %v581
        %v584 = vadd.f32 %v568, %v582
        %585 = vset.pattern.permute.xlu0 6
        %586 = vperm.xlu0 %585, %v485
        %v587 = vpop.permute.xlu0 %586
        %589 = vset.pattern.permute.xlu0 6
        %590 = vperm.xlu0 %589, %v486
        %v591 = vpop.permute.xlu0 %590
        %v593 = vlaneseq
        %v594 = vshrl.u32 %v593, 7
        %v595 = vsub.s32 6, %v594
        %v596 = vrot.slane %v488, %v595
        %v597 = vmul.f32 %v587, %v596
        %v598 = vmul.f32 %v591, %v596
        %v599 = vadd.f32 %v583, %v597
        %v600 = vadd.f32 %v584, %v598
        %601 = vset.pattern.permute.xlu0 7
        %602 = vperm.xlu0 %601, %v485
        %v603 = vpop.permute.xlu0 %602
        %605 = vset.pattern.permute.xlu0 7
        %606 = vperm.xlu0 %605, %v486
        %v607 = vpop.permute.xlu0 %606
        %v609 = vlaneseq
        %v610 = vshrl.u32 %v609, 7
        %v611 = vsub.s32 7, %v610
        %v612 = vrot.slane %v488, %v611
        %v613 = vmul.f32 %v603, %v612
        %v614 = vmul.f32 %v607, %v612
        %v615 = vadd.f32 %v599, %v613
        %v616 = vadd.f32 %v600, %v614
        %618 = vset.pattern.permute.xlu0 0
        %619 = vperm.xlu0 %618, %v615
        %v620 = vpop.permute.xlu0 %619
        %623 = vset.pattern.permute.xlu0 0
        %624 = vperm.xlu0 %623, %v616
        %v625 = vpop.permute.xlu0 %624
        %v627 = vlaneseq
        %v628 = vshrl.u32 %v627, 7
        %v629 = vsub.s32 0, %v628
        %v630 = vrot.slane %v487, %v629
        %v631 = vmul.f32 %v620, %v630
        %v632 = vmul.f32 %v625, %v630
        %633 = vset.pattern.permute.xlu0 1
        %634 = vperm.xlu0 %633, %v615
        %v635 = vpop.permute.xlu0 %634
        %637 = vset.pattern.permute.xlu0 1
        %638 = vperm.xlu0 %637, %v616
        %v639 = vpop.permute.xlu0 %638
        %v641 = vlaneseq
        %v642 = vshrl.u32 %v641, 7
        %v643 = vsub.s32 1, %v642
        %v644 = vrot.slane %v487, %v643
        %v645 = vmul.f32 %v635, %v644
        %v646 = vmul.f32 %v639, %v644
        %v647 = vadd.f32 %v631, %v645
        %v648 = vadd.f32 %v632, %v646
        %649 = vset.pattern.permute.xlu0 2
        %650 = vperm.xlu0 %649, %v615
        %v651 = vpop.permute.xlu0 %650
        %653 = vset.pattern.permute.xlu0 2
        %654 = vperm.xlu0 %653, %v616
        %v655 = vpop.permute.xlu0 %654
        %v657 = vlaneseq
        %v658 = vshrl.u32 %v657, 7
        %v659 = vsub.s32 2, %v658
        %v660 = vrot.slane %v487, %v659
        %v661 = vmul.f32 %v651, %v660
        %v662 = vmul.f32 %v655, %v660
        %v663 = vadd.f32 %v647, %v661
        %v664 = vadd.f32 %v648, %v662
        %665 = vset.pattern.permute.xlu0 3
        %666 = vperm.xlu0 %665, %v615
        %v667 = vpop.permute.xlu0 %666
        %669 = vset.pattern.permute.xlu0 3
        %670 = vperm.xlu0 %669, %v616
        %v671 = vpop.permute.xlu0 %670
        %v673 = vlaneseq
        %v674 = vshrl.u32 %v673, 7
        %v675 = vsub.s32 3, %v674
        %v676 = vrot.slane %v487, %v675
        %v677 = vmul.f32 %v667, %v676
        %v678 = vmul.f32 %v671, %v676
        %v679 = vadd.f32 %v663, %v677
        %v680 = vadd.f32 %v664, %v678
        %681 = vset.pattern.permute.xlu0 4
        %682 = vperm.xlu0 %681, %v615
        %v683 = vpop.permute.xlu0 %682
        %685 = vset.pattern.permute.xlu0 4
        %686 = vperm.xlu0 %685, %v616
        %v687 = vpop.permute.xlu0 %686
        %v689 = vlaneseq
        %v690 = vshrl.u32 %v689, 7
        %v691 = vsub.s32 4, %v690
        %v692 = vrot.slane %v487, %v691
        %v693 = vmul.f32 %v683, %v692
        %v694 = vmul.f32 %v687, %v692
        %v695 = vadd.f32 %v679, %v693
        %v696 = vadd.f32 %v680, %v694
        %697 = vset.pattern.permute.xlu0 5
        %698 = vperm.xlu0 %697, %v615
        %v699 = vpop.permute.xlu0 %698
        %701 = vset.pattern.permute.xlu0 5
        %702 = vperm.xlu0 %701, %v616
        %v703 = vpop.permute.xlu0 %702
        %v705 = vlaneseq
        %v706 = vshrl.u32 %v705, 7
        %v707 = vsub.s32 5, %v706
        %v708 = vrot.slane %v487, %v707
        %v709 = vmul.f32 %v699, %v708
        %v710 = vmul.f32 %v703, %v708
        %v711 = vadd.f32 %v695, %v709
        %v712 = vadd.f32 %v696, %v710
        %713 = vset.pattern.permute.xlu0 6
        %714 = vperm.xlu0 %713, %v615
        %v715 = vpop.permute.xlu0 %714
        %717 = vset.pattern.permute.xlu0 6
        %718 = vperm.xlu0 %717, %v616
        %v719 = vpop.permute.xlu0 %718
        %v721 = vlaneseq
        %v722 = vshrl.u32 %v721, 7
        %v723 = vsub.s32 6, %v722
        %v724 = vrot.slane %v487, %v723
        %v725 = vmul.f32 %v715, %v724
        %v726 = vmul.f32 %v719, %v724
        %v727 = vadd.f32 %v711, %v725
        %v728 = vadd.f32 %v712, %v726
        %729 = vset.pattern.permute.xlu0 7
        %730 = vperm.xlu0 %729, %v615
        %v731 = vpop.permute.xlu0 %730
        %733 = vset.pattern.permute.xlu0 7
        %734 = vperm.xlu0 %733, %v616
        %v735 = vpop.permute.xlu0 %734
        %v737 = vlaneseq
        %v738 = vshrl.u32 %v737, 7
        %v739 = vsub.s32 7, %v738
        %v740 = vrot.slane %v487, %v739
        %v741 = vmul.f32 %v731, %v740
        %v742 = vmul.f32 %v735, %v740
        %v743 = vadd.f32 %v727, %v741
        %v744 = vadd.f32 %v728, %v742
        %747 = vrot.lane.b32.xlu0 %v743, 1
        %v748 = vpop.permute.xlu0 %747
        %749 = vrot.lane.b32.xlu0 %v744, 1
        %v750 = vpop.permute.xlu0 %749
        %s753 = scalar_lea.vmem [#allocation2], 48
        %754 = vst.msk [vmem:[%s753 + $0x1] sm:$0xff] %vm468, %v748
        %755 = vst.msk [vmem:[%s753 + $0x9] sm:$0xff] %vm468, %v750
        %s756 = scalar_lea.vmem %s426, 8
        %v757 = vld [vmem:[%s756] sm:$0xff]
        %v758 = vlaneseq
        %v759 = vshrl.u32 %v758, 7
        %v760 = vsub.s32 0, %v759
        %v761 = vrot.slane %v757, %v760
        %v762 = vmul.f32 %v492, %v761
        %v763 = vmul.f32 %v497, %v761
        %v764 = vlaneseq
        %v765 = vshrl.u32 %v764, 7
        %v766 = vsub.s32 1, %v765
        %v767 = vrot.slane %v757, %v766
        %v768 = vmul.f32 %v507, %v767
        %v769 = vmul.f32 %v511, %v767
        %v770 = vadd.f32 %v762, %v768
        %v771 = vadd.f32 %v763, %v769
        %v772 = vlaneseq
        %v773 = vshrl.u32 %v772, 7
        %v774 = vsub.s32 2, %v773
        %v775 = vrot.slane %v757, %v774
        %v776 = vmul.f32 %v523, %v775
        %v777 = vmul.f32 %v527, %v775
        %v778 = vadd.f32 %v770, %v776
        %v779 = vadd.f32 %v771, %v777
        %v780 = vlaneseq
        %v781 = vshrl.u32 %v780, 7
        %v782 = vsub.s32 3, %v781
        %v783 = vrot.slane %v757, %v782
        %v784 = vmul.f32 %v539, %v783
        %v785 = vmul.f32 %v543, %v783
        %v786 = vadd.f32 %v778, %v784
        %v787 = vadd.f32 %v779, %v785
        %v788 = vlaneseq
        %v789 = vshrl.u32 %v788, 7
        %v790 = vsub.s32 4, %v789
        %v791 = vrot.slane %v757, %v790
        %v792 = vmul.f32 %v555, %v791
        %v793 = vmul.f32 %v559, %v791
        %v794 = vadd.f32 %v786, %v792
        %v795 = vadd.f32 %v787, %v793
        %v796 = vlaneseq
        %v797 = vshrl.u32 %v796, 7
        %v798 = vsub.s32 5, %v797
        %v799 = vrot.slane %v757, %v798
        %v800 = vmul.f32 %v571, %v799
        %v801 = vmul.f32 %v575, %v799
        %v802 = vadd.f32 %v794, %v800
        %v803 = vadd.f32 %v795, %v801
        %v804 = vlaneseq
        %v805 = vshrl.u32 %v804, 7
        %v806 = vsub.s32 6, %v805
        %v807 = vrot.slane %v757, %v806
        %v808 = vmul.f32 %v587, %v807
        %v809 = vmul.f32 %v591, %v807
        %v810 = vadd.f32 %v802, %v808
        %v811 = vadd.f32 %v803, %v809
        %v812 = vlaneseq
        %v813 = vshrl.u32 %v812, 7
        %v814 = vsub.s32 7, %v813
        %v815 = vrot.slane %v757, %v814
        %v816 = vmul.f32 %v603, %v815
        %v817 = vmul.f32 %v607, %v815
        %v818 = vadd.f32 %v810, %v816
        %v819 = vadd.f32 %v811, %v817
        %821 = vset.pattern.permute.xlu0 0
        %822 = vperm.xlu0 %821, %v818
        %v823 = vpop.permute.xlu0 %822
        %826 = vset.pattern.permute.xlu0 0
        %827 = vperm.xlu0 %826, %v819
        %v828 = vpop.permute.xlu0 %827
        %v830 = vmul.f32 %v823, %v630
        %v831 = vmul.f32 %v828, %v630
        %832 = vset.pattern.permute.xlu0 1
        %833 = vperm.xlu0 %832, %v818
        %v834 = vpop.permute.xlu0 %833
        %836 = vset.pattern.permute.xlu0 1
        %837 = vperm.xlu0 %836, %v819
        %v838 = vpop.permute.xlu0 %837
        %v840 = vmul.f32 %v834, %v644
        %v841 = vmul.f32 %v838, %v644
        %v842 = vadd.f32 %v830, %v840
        %v843 = vadd.f32 %v831, %v841
        %844 = vset.pattern.permute.xlu0 2
        %845 = vperm.xlu0 %844, %v818
        %v846 = vpop.permute.xlu0 %845
        %848 = vset.pattern.permute.xlu0 2
        %849 = vperm.xlu0 %848, %v819
        %v850 = vpop.permute.xlu0 %849
        %v852 = vmul.f32 %v846, %v660
        %v853 = vmul.f32 %v850, %v660
        %v854 = vadd.f32 %v842, %v852
        %v855 = vadd.f32 %v843, %v853
        %856 = vset.pattern.permute.xlu0 3
        %857 = vperm.xlu0 %856, %v818
        %v858 = vpop.permute.xlu0 %857
        %860 = vset.pattern.permute.xlu0 3
        %861 = vperm.xlu0 %860, %v819
        %v862 = vpop.permute.xlu0 %861
        %v864 = vmul.f32 %v858, %v676
        %v865 = vmul.f32 %v862, %v676
        %v866 = vadd.f32 %v854, %v864
        %v867 = vadd.f32 %v855, %v865
        %868 = vset.pattern.permute.xlu0 4
        %869 = vperm.xlu0 %868, %v818
        %v870 = vpop.permute.xlu0 %869
        %872 = vset.pattern.permute.xlu0 4
        %873 = vperm.xlu0 %872, %v819
        %v874 = vpop.permute.xlu0 %873
        %v876 = vmul.f32 %v870, %v692
        %v877 = vmul.f32 %v874, %v692
        %v878 = vadd.f32 %v866, %v876
        %v879 = vadd.f32 %v867, %v877
        %880 = vset.pattern.permute.xlu0 5
        %881 = vperm.xlu0 %880, %v818
        %v882 = vpop.permute.xlu0 %881
        %884 = vset.pattern.permute.xlu0 5
        %885 = vperm.xlu0 %884, %v819
        %v886 = vpop.permute.xlu0 %885
        %v888 = vmul.f32 %v882, %v708
        %v889 = vmul.f32 %v886, %v708
        %v890 = vadd.f32 %v878, %v888
        %v891 = vadd.f32 %v879, %v889
        %892 = vset.pattern.permute.xlu0 6
        %893 = vperm.xlu0 %892, %v818
        %v894 = vpop.permute.xlu0 %893
        %896 = vset.pattern.permute.xlu0 6
        %897 = vperm.xlu0 %896, %v819
        %v898 = vpop.permute.xlu0 %897
        %v900 = vmul.f32 %v894, %v724
        %v901 = vmul.f32 %v898, %v724
        %v902 = vadd.f32 %v890, %v900
        %v903 = vadd.f32 %v891, %v901
        %904 = vset.pattern.permute.xlu0 7
        %905 = vperm.xlu0 %904, %v818
        %v906 = vpop.permute.xlu0 %905
        %908 = vset.pattern.permute.xlu0 7
        %909 = vperm.xlu0 %908, %v819
        %v910 = vpop.permute.xlu0 %909
        %v912 = vmul.f32 %v906, %v740
        %v913 = vmul.f32 %v910, %v740
        %v914 = vadd.f32 %v902, %v912
        %v915 = vadd.f32 %v903, %v913
        %918 = vrot.lane.b32.xlu0 %v914, 1
        %v919 = vpop.permute.xlu0 %918
        %920 = vrot.lane.b32.xlu0 %v915, 1
        %v921 = vpop.permute.xlu0 %920
        %s924 = scalar_lea.vmem [#allocation2], 72
        %925 = vst.msk [vmem:[%s924 + $0x1] sm:$0xff] %vm468, %v919
        %926 = vst.msk [vmem:[%s924 + $0x9] sm:$0xff] %vm468, %v921
        %s927 = sld [smem:[#allocation4]]
        %s928 = sld [smem:[#allocation5]]
        %v929 = vld [vmem:[#allocation2] sm:$0xff]
        %v930 = vld [vmem:[#allocation2 + $0x8] sm:$0xff]
        %v931 = vld [vmem:[#allocation2 + $0x1] sm:$0xff]
        %v932 = vld [vmem:[#allocation2 + $0x9] sm:$0xff]
        %v933 = vld [vmem:[#allocation2 + $0x2] sm:$0xff]
        %v934 = vld [vmem:[#allocation2 + $0xa] sm:$0xff]
        %v935 = vld [vmem:[%s482] sm:$0xff]
        %v936 = vld [vmem:[%s482 + $0x8] sm:$0xff]
        %v937 = vld [vmem:[%s482 + $0x1] sm:$0xff]
        %v938 = vld [vmem:[%s482 + $0x9] sm:$0xff]
        %v939 = vld [vmem:[%s482 + $0x2] sm:$0xff]
        %v940 = vld [vmem:[%s482 + $0xa] sm:$0xff]
        %v941 = vld [vmem:[%s753] sm:$0xff]
        %v942 = vld [vmem:[%s753 + $0x8] sm:$0xff]
        %v943 = vld [vmem:[%s753 + $0x1] sm:$0xff]
        %v944 = vld [vmem:[%s753 + $0x9] sm:$0xff]
        %v945 = vld [vmem:[%s753 + $0x2] sm:$0xff]
        %v946 = vld [vmem:[%s753 + $0xa] sm:$0xff]
        %v947 = vld [vmem:[%s924] sm:$0xff]
        %v948 = vld [vmem:[%s924 + $0x8] sm:$0xff]
        %v949 = vld [vmem:[%s924 + $0x1] sm:$0xff]
        %v950 = vld [vmem:[%s924 + $0x9] sm:$0xff]
        %v951 = vld [vmem:[%s924 + $0x2] sm:$0xff]
        %v952 = vld [vmem:[%s924 + $0xa] sm:$0xff]
        %s953 = sld [smem:[#allocation9]]
        %v954 = vstv %s953
        %v955 = vadd.f32 %v954, 0.0
        %s956 = sld [smem:[#allocation6]]
        %v957 = vstv %s956
        %v958 = vmul.f32 %v957, %v929
        %v959 = vmul.f32 %v957, %v930
        %v960 = vadd.f32 %v955, %v958
        %v961 = vadd.f32 %v955, %v959
        %s962 = sld [smem:[#allocation6 + $0x1]]
        %v963 = vstv %s962
        %v964 = vmul.f32 %v963, %v929
        %v965 = vmul.f32 %v963, %v930
        %968 = vrot.lane.b32.xlu0 %v964, 127
        %v969 = vpop.permute.xlu0 %968
        %970 = vrot.lane.b32.xlu0 %v965, 127
        %v971 = vpop.permute.xlu0 %970
        %v974 = vadd.f32 %v960, %v969
        %v975 = vadd.f32 %v961, %v971
        %s976 = sld [smem:[#allocation6 + $0x2]]
        %v977 = vstv %s976
        %v978 = vmul.f32 %v977, %v929
        %v979 = vmul.f32 %v977, %v930
        %982 = vrot.lane.b32.xlu0 %v978, 126
        %v983 = vpop.permute.xlu0 %982
        %984 = vrot.lane.b32.xlu0 %v979, 126
        %v985 = vpop.permute.xlu0 %984
        %v988 = vadd.f32 %v974, %v983
        %v989 = vadd.f32 %v975, %v985
        %s990 = sld [smem:[#allocation6 + $0x3]]
        %v991 = vstv %s990
        %v992 = vmul.f32 %v991, %v931
        %v993 = vmul.f32 %v991, %v932
        %v994 = vadd.f32 %v988, %v992
        %v995 = vadd.f32 %v989, %v993
        %s996 = sld [smem:[#allocation6 + $0x4]]
        %v997 = vstv %s996
        %v998 = vmul.f32 %v997, %v931
        %v999 = vmul.f32 %v997, %v932
        %1002 = vrot.lane.b32.xlu0 %v998, 127
        %v1003 = vpop.permute.xlu0 %1002
        %1004 = vrot.lane.b32.xlu0 %v999, 127
        %v1005 = vpop.permute.xlu0 %1004
        %v1008 = vadd.f32 %v994, %v1003
        %v1009 = vadd.f32 %v995, %v1005
        %s1010 = sld [smem:[#allocation6 + $0x5]]
        %v1011 = vstv %s1010
        %v1012 = vmul.f32 %v1011, %v931
        %v1013 = vmul.f32 %v1011, %v932
        %1016 = vrot.lane.b32.xlu0 %v1012, 126
        %v1017 = vpop.permute.xlu0 %1016
        %1018 = vrot.lane.b32.xlu0 %v1013, 126
        %v1019 = vpop.permute.xlu0 %1018
        %v1022 = vadd.f32 %v1008, %v1017
        %v1023 = vadd.f32 %v1009, %v1019
        %s1024 = sld [smem:[#allocation6 + $0x6]]
        %v1025 = vstv %s1024
        %v1026 = vmul.f32 %v1025, %v933
        %v1027 = vmul.f32 %v1025, %v934
        %v1028 = vadd.f32 %v1022, %v1026
        %v1029 = vadd.f32 %v1023, %v1027
        %s1030 = sld [smem:[#allocation6 + $0x7]]
        %v1031 = vstv %s1030
        %v1032 = vmul.f32 %v1031, %v933
        %v1033 = vmul.f32 %v1031, %v934
        %1036 = vrot.lane.b32.xlu0 %v1032, 127
        %v1037 = vpop.permute.xlu0 %1036
        %1038 = vrot.lane.b32.xlu0 %v1033, 127
        %v1039 = vpop.permute.xlu0 %1038
        %v1042 = vadd.f32 %v1028, %v1037
        %v1043 = vadd.f32 %v1029, %v1039
        %s1044 = sld [smem:[#allocation6 + $0x8]]
        %v1045 = vstv %s1044
        %v1046 = vmul.f32 %v1045, %v933
        %v1047 = vmul.f32 %v1045, %v934
        %1050 = vrot.lane.b32.xlu0 %v1046, 126
        %v1051 = vpop.permute.xlu0 %1050
        %1052 = vrot.lane.b32.xlu0 %v1047, 126
        %v1053 = vpop.permute.xlu0 %1052
        %v1056 = vadd.f32 %v1042, %v1051
        %v1057 = vadd.f32 %v1043, %v1053
        %s1058 = sld [smem:[#allocation6 + $0x9]]
        %v1059 = vstv %s1058
        %v1060 = vmul.f32 %v1059, %v935
        %v1061 = vmul.f32 %v1059, %v936
        %v1062 = vadd.f32 %v1056, %v1060
        %v1063 = vadd.f32 %v1057, %v1061
        %s1064 = sld [smem:[#allocation6 + $0xa]]
        %v1065 = vstv %s1064
        %v1066 = vmul.f32 %v1065, %v935
        %v1067 = vmul.f32 %v1065, %v936
        %1070 = vrot.lane.b32.xlu0 %v1066, 127
        %v1071 = vpop.permute.xlu0 %1070
        %1072 = vrot.lane.b32.xlu0 %v1067, 127
        %v1073 = vpop.permute.xlu0 %1072
        %v1076 = vadd.f32 %v1062, %v1071
        %v1077 = vadd.f32 %v1063, %v1073
        %s1078 = sld [smem:[#allocation6 + $0xb]]
        %v1079 = vstv %s1078
        %v1080 = vmul.f32 %v1079, %v935
        %v1081 = vmul.f32 %v1079, %v936
        %1084 = vrot.lane.b32.xlu0 %v1080, 126
        %v1085 = vpop.permute.xlu0 %1084
        %1086 = vrot.lane.b32.xlu0 %v1081, 126
        %v1087 = vpop.permute.xlu0 %1086
        %v1090 = vadd.f32 %v1076, %v1085
        %v1091 = vadd.f32 %v1077, %v1087
        %s1092 = sld [smem:[#allocation6 + $0xc]]
        %v1093 = vstv %s1092
        %v1094 = vmul.f32 %v1093, %v937
        %v1095 = vmul.f32 %v1093, %v938
        %v1096 = vadd.f32 %v1090, %v1094
        %v1097 = vadd.f32 %v1091, %v1095
        %s1098 = sld [smem:[#allocation6 + $0xd]]
        %v1099 = vstv %s1098
        %v1100 = vmul.f32 %v1099, %v937
        %v1101 = vmul.f32 %v1099, %v938
        %1104 = vrot.lane.b32.xlu0 %v1100, 127
        %v1105 = vpop.permute.xlu0 %1104
        %1106 = vrot.lane.b32.xlu0 %v1101, 127
        %v1107 = vpop.permute.xlu0 %1106
        %v1110 = vadd.f32 %v1096, %v1105
        %v1111 = vadd.f32 %v1097, %v1107
        %s1112 = sld [smem:[#allocation6 + $0xe]]
        %v1113 = vstv %s1112
        %v1114 = vmul.f32 %v1113, %v937
        %v1115 = vmul.f32 %v1113, %v938
        %1118 = vrot.lane.b32.xlu0 %v1114, 126
        %v1119 = vpop.permute.xlu0 %1118
        %1120 = vrot.lane.b32.xlu0 %v1115, 126
        %v1121 = vpop.permute.xlu0 %1120
        %v1124 = vadd.f32 %v1110, %v1119
        %v1125 = vadd.f32 %v1111, %v1121
        %s1126 = sld [smem:[#allocation6 + $0xf]]
        %v1127 = vstv %s1126
        %v1128 = vmul.f32 %v1127, %v939
        %v1129 = vmul.f32 %v1127, %v940
        %v1130 = vadd.f32 %v1124, %v1128
        %v1131 = vadd.f32 %v1125, %v1129
        %s1132 = sld [smem:[#allocation6 + $0x10]]
        %v1133 = vstv %s1132
        %v1134 = vmul.f32 %v1133, %v939
        %v1135 = vmul.f32 %v1133, %v940
        %1138 = vrot.lane.b32.xlu0 %v1134, 127
        %v1139 = vpop.permute.xlu0 %1138
        %1140 = vrot.lane.b32.xlu0 %v1135, 127
        %v1141 = vpop.permute.xlu0 %1140
        %v1144 = vadd.f32 %v1130, %v1139
        %v1145 = vadd.f32 %v1131, %v1141
        %s1146 = sld [smem:[#allocation6 + $0x11]]
        %v1147 = vstv %s1146
        %v1148 = vmul.f32 %v1147, %v939
        %v1149 = vmul.f32 %v1147, %v940
        %1152 = vrot.lane.b32.xlu0 %v1148, 126
        %v1153 = vpop.permute.xlu0 %1152
        %1154 = vrot.lane.b32.xlu0 %v1149, 126
        %v1155 = vpop.permute.xlu0 %1154
        %v1158 = vadd.f32 %v1144, %v1153
        %v1159 = vadd.f32 %v1145, %v1155
        %s1160 = sld [smem:[#allocation6 + $0x12]]
        %v1161 = vstv %s1160
        %v1162 = vmul.f32 %v1161, %v941
        %v1163 = vmul.f32 %v1161, %v942
        %v1164 = vadd.f32 %v1158, %v1162
        %v1165 = vadd.f32 %v1159, %v1163
        %s1166 = sld [smem:[#allocation6 + $0x13]]
        %v1167 = vstv %s1166
        %v1168 = vmul.f32 %v1167, %v941
        %v1169 = vmul.f32 %v1167, %v942
        %1172 = vrot.lane.b32.xlu0 %v1168, 127
        %v1173 = vpop.permute.xlu0 %1172
        %1174 = vrot.lane.b32.xlu0 %v1169, 127
        %v1175 = vpop.permute.xlu0 %1174
        %v1178 = vadd.f32 %v1164, %v1173
        %v1179 = vadd.f32 %v1165, %v1175
        %s1180 = sld [smem:[#allocation6 + $0x14]]
        %v1181 = vstv %s1180
        %v1182 = vmul.f32 %v1181, %v941
        %v1183 = vmul.f32 %v1181, %v942
        %1186 = vrot.lane.b32.xlu0 %v1182, 126
        %v1187 = vpop.permute.xlu0 %1186
        %1188 = vrot.lane.b32.xlu0 %v1183, 126
        %v1189 = vpop.permute.xlu0 %1188
        %v1192 = vadd.f32 %v1178, %v1187
        %v1193 = vadd.f32 %v1179, %v1189
        %s1194 = sld [smem:[#allocation6 + $0x15]]
        %v1195 = vstv %s1194
        %v1196 = vmul.f32 %v1195, %v943
        %v1197 = vmul.f32 %v1195, %v944
        %v1198 = vadd.f32 %v1192, %v1196
        %v1199 = vadd.f32 %v1193, %v1197
        %s1200 = sld [smem:[#allocation6 + $0x16]]
        %v1201 = vstv %s1200
        %v1202 = vmul.f32 %v1201, %v943
        %v1203 = vmul.f32 %v1201, %v944
        %1206 = vrot.lane.b32.xlu0 %v1202, 127
        %v1207 = vpop.permute.xlu0 %1206
        %1208 = vrot.lane.b32.xlu0 %v1203, 127
        %v1209 = vpop.permute.xlu0 %1208
        %v1212 = vadd.f32 %v1198, %v1207
        %v1213 = vadd.f32 %v1199, %v1209
        %s1214 = sld [smem:[#allocation6 + $0x17]]
        %v1215 = vstv %s1214
        %v1216 = vmul.f32 %v1215, %v943
        %v1217 = vmul.f32 %v1215, %v944
        %1220 = vrot.lane.b32.xlu0 %v1216, 126
        %v1221 = vpop.permute.xlu0 %1220
        %1222 = vrot.lane.b32.xlu0 %v1217, 126
        %v1223 = vpop.permute.xlu0 %1222
        %v1226 = vadd.f32 %v1212, %v1221
        %v1227 = vadd.f32 %v1213, %v1223
        %s1228 = sld [smem:[#allocation6 + $0x18]]
        %v1229 = vstv %s1228
        %v1230 = vmul.f32 %v1229, %v945
        %v1231 = vmul.f32 %v1229, %v946
        %v1232 = vadd.f32 %v1226, %v1230
        %v1233 = vadd.f32 %v1227, %v1231
        %s1234 = sld [smem:[#allocation6 + $0x19]]
        %v1235 = vstv %s1234
        %v1236 = vmul.f32 %v1235, %v945
        %v1237 = vmul.f32 %v1235, %v946
        %1240 = vrot.lane.b32.xlu0 %v1236, 127
        %v1241 = vpop.permute.xlu0 %1240
        %1242 = vrot.lane.b32.xlu0 %v1237, 127
        %v1243 = vpop.permute.xlu0 %1242
        %v1246 = vadd.f32 %v1232, %v1241
        %v1247 = vadd.f32 %v1233, %v1243
        %s1248 = sld [smem:[#allocation6 + $0x1a]]
        %v1249 = vstv %s1248
        %v1250 = vmul.f32 %v1249, %v945
        %v1251 = vmul.f32 %v1249, %v946
        %1254 = vrot.lane.b32.xlu0 %v1250, 126
        %v1255 = vpop.permute.xlu0 %1254
        %1256 = vrot.lane.b32.xlu0 %v1251, 126
        %v1257 = vpop.permute.xlu0 %1256
        %v1260 = vadd.f32 %v1246, %v1255
        %v1261 = vadd.f32 %v1247, %v1257
        %s1262 = sld [smem:[#allocation6 + $0x1b]]
        %v1263 = vstv %s1262
        %v1264 = vmul.f32 %v1263, %v947
        %v1265 = vmul.f32 %v1263, %v948
        %v1266 = vadd.f32 %v1260, %v1264
        %v1267 = vadd.f32 %v1261, %v1265
        %s1268 = sld [smem:[#allocation6 + $0x1c]]
        %v1269 = vstv %s1268
        %v1270 = vmul.f32 %v1269, %v947
        %v1271 = vmul.f32 %v1269, %v948
        %1274 = vrot.lane.b32.xlu0 %v1270, 127
        %v1275 = vpop.permute.xlu0 %1274
        %1276 = vrot.lane.b32.xlu0 %v1271, 127
        %v1277 = vpop.permute.xlu0 %1276
        %v1280 = vadd.f32 %v1266, %v1275
        %v1281 = vadd.f32 %v1267, %v1277
        %s1282 = sld [smem:[#allocation6 + $0x1d]]
        %v1283 = vstv %s1282
        %v1284 = vmul.f32 %v1283, %v947
        %v1285 = vmul.f32 %v1283, %v948
        %1288 = vrot.lane.b32.xlu0 %v1284, 126
        %v1289 = vpop.permute.xlu0 %1288
        %1290 = vrot.lane.b32.xlu0 %v1285, 126
        %v1291 = vpop.permute.xlu0 %1290
        %v1294 = vadd.f32 %v1280, %v1289
        %v1295 = vadd.f32 %v1281, %v1291
        %s1296 = sld [smem:[#allocation6 + $0x1e]]
        %v1297 = vstv %s1296
        %v1298 = vmul.f32 %v1297, %v949
        %v1299 = vmul.f32 %v1297, %v950
        %v1300 = vadd.f32 %v1294, %v1298
        %v1301 = vadd.f32 %v1295, %v1299
        %s1302 = sld [smem:[#allocation6 + $0x1f]]
        %v1303 = vstv %s1302
        %v1304 = vmul.f32 %v1303, %v949
        %v1305 = vmul.f32 %v1303, %v950
        %1308 = vrot.lane.b32.xlu0 %v1304, 127
        %v1309 = vpop.permute.xlu0 %1308
        %1310 = vrot.lane.b32.xlu0 %v1305, 127
        %v1311 = vpop.permute.xlu0 %1310
        %v1314 = vadd.f32 %v1300, %v1309
        %v1315 = vadd.f32 %v1301, %v1311
        %s1316 = sld [smem:[#allocation6 + $0x20]]
        %v1317 = vstv %s1316
        %v1318 = vmul.f32 %v1317, %v949
        %v1319 = vmul.f32 %v1317, %v950
        %1322 = vrot.lane.b32.xlu0 %v1318, 126
        %v1323 = vpop.permute.xlu0 %1322
        %1324 = vrot.lane.b32.xlu0 %v1319, 126
        %v1325 = vpop.permute.xlu0 %1324
        %v1328 = vadd.f32 %v1314, %v1323
        %v1329 = vadd.f32 %v1315, %v1325
        %s1330 = sld [smem:[#allocation6 + $0x21]]
        %v1331 = vstv %s1330
        %v1332 = vmul.f32 %v1331, %v951
        %v1333 = vmul.f32 %v1331, %v952
        %v1334 = vadd.f32 %v1328, %v1332
        %v1335 = vadd.f32 %v1329, %v1333
        %s1336 = sld [smem:[#allocation6 + $0x22]]
        %v1337 = vstv %s1336
        %v1338 = vmul.f32 %v1337, %v951
        %v1339 = vmul.f32 %v1337, %v952
        %1342 = vrot.lane.b32.xlu0 %v1338, 127
        %v1343 = vpop.permute.xlu0 %1342
        %1344 = vrot.lane.b32.xlu0 %v1339, 127
        %v1345 = vpop.permute.xlu0 %1344
        %v1348 = vadd.f32 %v1334, %v1343
        %v1349 = vadd.f32 %v1335, %v1345
        %s1350 = sld [smem:[#allocation6 + $0x23]]
        %v1351 = vstv %s1350
        %v1352 = vmul.f32 %v1351, %v951
        %v1353 = vmul.f32 %v1351, %v952
        %1356 = vrot.lane.b32.xlu0 %v1352, 126
        %v1357 = vpop.permute.xlu0 %1356
        %1358 = vrot.lane.b32.xlu0 %v1353, 126
        %v1359 = vpop.permute.xlu0 %1358
        %v1362 = vadd.f32 %v1348, %v1357
        %v1363 = vadd.f32 %v1349, %v1359
        %vm1364 = vcmp.ge.f32.partialorder %v1362, 0.0
        %vm1365 = vcmp.ge.f32.partialorder %v1363, 0.0
        %v1366 = vstv %s927
        %v1367 = vmul.f32 %v1366, %v1362
        %v1368 = vmul.f32 %v1366, %v1363
        %v1369 = vsel %vm1364, %v1362, %v1367
        %v1370 = vsel %vm1365, %v1363, %v1368
        %1373 = vrot.lane.b32.xlu0 %v1369, 1
        %v1374 = vpop.permute.xlu0 %1373
        %1375 = vrot.lane.b32.xlu0 %v1370, 1
        %v1376 = vpop.permute.xlu0 %1375
        %1379 = vst.msk [vmem:[#allocation3 + $0x1] sm:$0xff] %vm468, %v1374
        %1380 = vst.msk [vmem:[#allocation3 + $0x9] sm:$0xff] %vm468, %v1376
        %s1381 = sld [smem:[#allocation9 + $0x1]]
        %v1382 = vstv %s1381
        %v1383 = vadd.f32 %v1382, 0.0
        %s1384 = sld [smem:[#allocation6 + $0x24]]
        %v1385 = vstv %s1384
        %v1386 = vmul.f32 %v1385, %v929
        %v1387 = vmul.f32 %v1385, %v930
        %v1388 = vadd.f32 %v1383, %v1386
        %v1389 = vadd.f32 %v1383, %v1387
        %s1390 = sld [smem:[#allocation6 + $0x25]]
        %v1391 = vstv %s1390
        %v1392 = vmul.f32 %v1391, %v929
        %v1393 = vmul.f32 %v1391, %v930
        %1396 = vrot.lane.b32.xlu0 %v1392, 127
        %v1397 = vpop.permute.xlu0 %1396
        %1398 = vrot.lane.b32.xlu0 %v1393, 127
        %v1399 = vpop.permute.xlu0 %1398
        %v1402 = vadd.f32 %v1388, %v1397
        %v1403 = vadd.f32 %v1389, %v1399
        %s1404 = sld [smem:[#allocation6 + $0x26]]
        %v1405 = vstv %s1404
        %v1406 = vmul.f32 %v1405, %v929
        %v1407 = vmul.f32 %v1405, %v930
        %1410 = vrot.lane.b32.xlu0 %v1406, 126
        %v1411 = vpop.permute.xlu0 %1410
        %1412 = vrot.lane.b32.xlu0 %v1407, 126
        %v1413 = vpop.permute.xlu0 %1412
        %v1416 = vadd.f32 %v1402, %v1411
        %v1417 = vadd.f32 %v1403, %v1413
        %s1418 = sld [smem:[#allocation6 + $0x27]]
        %v1419 = vstv %s1418
        %v1420 = vmul.f32 %v1419, %v931
        %v1421 = vmul.f32 %v1419, %v932
        %v1422 = vadd.f32 %v1416, %v1420
        %v1423 = vadd.f32 %v1417, %v1421
        %s1424 = sld [smem:[#allocation6 + $0x28]]
        %v1425 = vstv %s1424
        %v1426 = vmul.f32 %v1425, %v931
        %v1427 = vmul.f32 %v1425, %v932
        %1430 = vrot.lane.b32.xlu0 %v1426, 127
        %v1431 = vpop.permute.xlu0 %1430
        %1432 = vrot.lane.b32.xlu0 %v1427, 127
        %v1433 = vpop.permute.xlu0 %1432
        %v1436 = vadd.f32 %v1422, %v1431
        %v1437 = vadd.f32 %v1423, %v1433
        %s1438 = sld [smem:[#allocation6 + $0x29]]
        %v1439 = vstv %s1438
        %v1440 = vmul.f32 %v1439, %v931
        %v1441 = vmul.f32 %v1439, %v932
        %1444 = vrot.lane.b32.xlu0 %v1440, 126
        %v1445 = vpop.permute.xlu0 %1444
        %1446 = vrot.lane.b32.xlu0 %v1441, 126
        %v1447 = vpop.permute.xlu0 %1446
        %v1450 = vadd.f32 %v1436, %v1445
        %v1451 = vadd.f32 %v1437, %v1447
        %s1452 = sld [smem:[#allocation6 + $0x2a]]
        %v1453 = vstv %s1452
        %v1454 = vmul.f32 %v1453, %v933
        %v1455 = vmul.f32 %v1453, %v934
        %v1456 = vadd.f32 %v1450, %v1454
        %v1457 = vadd.f32 %v1451, %v1455
        %s1458 = sld [smem:[#allocation6 + $0x2b]]
        %v1459 = vstv %s1458
        %v1460 = vmul.f32 %v1459, %v933
        %v1461 = vmul.f32 %v1459, %v934
        %1464 = vrot.lane.b32.xlu0 %v1460, 127
        %v1465 = vpop.permute.xlu0 %1464
        %1466 = vrot.lane.b32.xlu0 %v1461, 127
        %v1467 = vpop.permute.xlu0 %1466
        %v1470 = vadd.f32 %v1456, %v1465
        %v1471 = vadd.f32 %v1457, %v1467
        %s1472 = sld [smem:[#allocation6 + $0x2c]]
        %v1473 = vstv %s1472
        %v1474 = vmul.f32 %v1473, %v933
        %v1475 = vmul.f32 %v1473, %v934
        %1478 = vrot.lane.b32.xlu0 %v1474, 126
        %v1479 = vpop.permute.xlu0 %1478
        %1480 = vrot.lane.b32.xlu0 %v1475, 126
        %v1481 = vpop.permute.xlu0 %1480
        %v1484 = vadd.f32 %v1470, %v1479
        %v1485 = vadd.f32 %v1471, %v1481
        %s1486 = sld [smem:[#allocation6 + $0x2d]]
        %v1487 = vstv %s1486
        %v1488 = vmul.f32 %v1487, %v935
        %v1489 = vmul.f32 %v1487, %v936
        %v1490 = vadd.f32 %v1484, %v1488
        %v1491 = vadd.f32 %v1485, %v1489
        %s1492 = sld [smem:[#allocation6 + $0x2e]]
        %v1493 = vstv %s1492
        %v1494 = vmul.f32 %v1493, %v935
        %v1495 = vmul.f32 %v1493, %v936
        %1498 = vrot.lane.b32.xlu0 %v1494, 127
        %v1499 = vpop.permute.xlu0 %1498
        %1500 = vrot.lane.b32.xlu0 %v1495, 127
        %v1501 = vpop.permute.xlu0 %1500
        %v1504 = vadd.f32 %v1490, %v1499
        %v1505 = vadd.f32 %v1491, %v1501
        %s1506 = sld [smem:[#allocation6 + $0x2f]]
        %v1507 = vstv %s1506
        %v1508 = vmul.f32 %v1507, %v935
        %v1509 = vmul.f32 %v1507, %v936
        %1512 = vrot.lane.b32.xlu0 %v1508, 126
        %v1513 = vpop.permute.xlu0 %1512
        %1514 = vrot.lane.b32.xlu0 %v1509, 126
        %v1515 = vpop.permute.xlu0 %1514
        %v1518 = vadd.f32 %v1504, %v1513
        %v1519 = vadd.f32 %v1505, %v1515
        %s1520 = sld [smem:[#allocation6 + $0x30]]
        %v1521 = vstv %s1520
        %v1522 = vmul.f32 %v1521, %v937
        %v1523 = vmul.f32 %v1521, %v938
        %v1524 = vadd.f32 %v1518, %v1522
        %v1525 = vadd.f32 %v1519, %v1523
        %s1526 = sld [smem:[#allocation6 + $0x31]]
        %v1527 = vstv %s1526
        %v1528 = vmul.f32 %v1527, %v937
        %v1529 = vmul.f32 %v1527, %v938
        %1532 = vrot.lane.b32.xlu0 %v1528, 127
        %v1533 = vpop.permute.xlu0 %1532
        %1534 = vrot.lane.b32.xlu0 %v1529, 127
        %v1535 = vpop.permute.xlu0 %1534
        %v1538 = vadd.f32 %v1524, %v1533
        %v1539 = vadd.f32 %v1525, %v1535
        %s1540 = sld [smem:[#allocation6 + $0x32]]
        %v1541 = vstv %s1540
        %v1542 = vmul.f32 %v1541, %v937
        %v1543 = vmul.f32 %v1541, %v938
        %1546 = vrot.lane.b32.xlu0 %v1542, 126
        %v1547 = vpop.permute.xlu0 %1546
        %1548 = vrot.lane.b32.xlu0 %v1543, 126
        %v1549 = vpop.permute.xlu0 %1548
        %v1552 = vadd.f32 %v1538, %v1547
        %v1553 = vadd.f32 %v1539, %v1549
        %s1554 = sld [smem:[#allocation6 + $0x33]]
        %v1555 = vstv %s1554
        %v1556 = vmul.f32 %v1555, %v939
        %v1557 = vmul.f32 %v1555, %v940
        %v1558 = vadd.f32 %v1552, %v1556
        %v1559 = vadd.f32 %v1553, %v1557
        %s1560 = sld [smem:[#allocation6 + $0x34]]
        %v1561 = vstv %s1560
        %v1562 = vmul.f32 %v1561, %v939
        %v1563 = vmul.f32 %v1561, %v940
        %1566 = vrot.lane.b32.xlu0 %v1562, 127
        %v1567 = vpop.permute.xlu0 %1566
        %1568 = vrot.lane.b32.xlu0 %v1563, 127
        %v1569 = vpop.permute.xlu0 %1568
        %v1572 = vadd.f32 %v1558, %v1567
        %v1573 = vadd.f32 %v1559, %v1569
        %s1574 = sld [smem:[#allocation6 + $0x35]]
        %v1575 = vstv %s1574
        %v1576 = vmul.f32 %v1575, %v939
        %v1577 = vmul.f32 %v1575, %v940
        %1580 = vrot.lane.b32.xlu0 %v1576, 126
        %v1581 = vpop.permute.xlu0 %1580
        %1582 = vrot.lane.b32.xlu0 %v1577, 126
        %v1583 = vpop.permute.xlu0 %1582
        %v1586 = vadd.f32 %v1572, %v1581
        %v1587 = vadd.f32 %v1573, %v1583
        %s1588 = sld [smem:[#allocation6 + $0x36]]
        %v1589 = vstv %s1588
        %v1590 = vmul.f32 %v1589, %v941
        %v1591 = vmul.f32 %v1589, %v942
        %v1592 = vadd.f32 %v1586, %v1590
        %v1593 = vadd.f32 %v1587, %v1591
        %s1594 = sld [smem:[#allocation6 + $0x37]]
        %v1595 = vstv %s1594
        %v1596 = vmul.f32 %v1595, %v941
        %v1597 = vmul.f32 %v1595, %v942
        %1600 = vrot.lane.b32.xlu0 %v1596, 127
        %v1601 = vpop.permute.xlu0 %1600
        %1602 = vrot.lane.b32.xlu0 %v1597, 127
        %v1603 = vpop.permute.xlu0 %1602
        %v1606 = vadd.f32 %v1592, %v1601
        %v1607 = vadd.f32 %v1593, %v1603
        %s1608 = sld [smem:[#allocation6 + $0x38]]
        %v1609 = vstv %s1608
        %v1610 = vmul.f32 %v1609, %v941
        %v1611 = vmul.f32 %v1609, %v942
        %1614 = vrot.lane.b32.xlu0 %v1610, 126
        %v1615 = vpop.permute.xlu0 %1614
        %1616 = vrot.lane.b32.xlu0 %v1611, 126
        %v1617 = vpop.permute.xlu0 %1616
        %v1620 = vadd.f32 %v1606, %v1615
        %v1621 = vadd.f32 %v1607, %v1617
        %s1622 = sld [smem:[#allocation6 + $0x39]]
        %v1623 = vstv %s1622
        %v1624 = vmul.f32 %v1623, %v943
        %v1625 = vmul.f32 %v1623, %v944
        %v1626 = vadd.f32 %v1620, %v1624
        %v1627 = vadd.f32 %v1621, %v1625
        %s1628 = sld [smem:[#allocation6 + $0x3a]]
        %v1629 = vstv %s1628
        %v1630 = vmul.f32 %v1629, %v943
        %v1631 = vmul.f32 %v1629, %v944
        %1634 = vrot.lane.b32.xlu0 %v1630, 127
        %v1635 = vpop.permute.xlu0 %1634
        %1636 = vrot.lane.b32.xlu0 %v1631, 127
        %v1637 = vpop.permute.xlu0 %1636
        %v1640 = vadd.f32 %v1626, %v1635
        %v1641 = vadd.f32 %v1627, %v1637
        %s1642 = sld [smem:[#allocation6 + $0x3b]]
        %v1643 = vstv %s1642
        %v1644 = vmul.f32 %v1643, %v943
        %v1645 = vmul.f32 %v1643, %v944
        %1648 = vrot.lane.b32.xlu0 %v1644, 126
        %v1649 = vpop.permute.xlu0 %1648
        %1650 = vrot.lane.b32.xlu0 %v1645, 126
        %v1651 = vpop.permute.xlu0 %1650
        %v1654 = vadd.f32 %v1640, %v1649
        %v1655 = vadd.f32 %v1641, %v1651
        %s1656 = sld [smem:[#allocation6 + $0x3c]]
        %v1657 = vstv %s1656
        %v1658 = vmul.f32 %v1657, %v945
        %v1659 = vmul.f32 %v1657, %v946
        %v1660 = vadd.f32 %v1654, %v1658
        %v1661 = vadd.f32 %v1655, %v1659
        %s1662 = sld [smem:[#allocation6 + $0x3d]]
        %v1663 = vstv %s1662
        %v1664 = vmul.f32 %v1663, %v945
        %v1665 = vmul.f32 %v1663, %v946
        %1668 = vrot.lane.b32.xlu0 %v1664, 127
        %v1669 = vpop.permute.xlu0 %1668
        %1670 = vrot.lane.b32.xlu0 %v1665, 127
        %v1671 = vpop.permute.xlu0 %1670
        %v1674 = vadd.f32 %v1660, %v1669
        %v1675 = vadd.f32 %v1661, %v1671
        %s1676 = sld [smem:[#allocation6 + $0x3e]]
        %v1677 = vstv %s1676
        %v1678 = vmul.f32 %v1677, %v945
        %v1679 = vmul.f32 %v1677, %v946
        %1682 = vrot.lane.b32.xlu0 %v1678, 126
        %v1683 = vpop.permute.xlu0 %1682
        %1684 = vrot.lane.b32.xlu0 %v1679, 126
        %v1685 = vpop.permute.xlu0 %1684
        %v1688 = vadd.f32 %v1674, %v1683
        %v1689 = vadd.f32 %v1675, %v1685
        %s1690 = sld [smem:[#allocation6 + $0x3f]]
        %v1691 = vstv %s1690
        %v1692 = vmul.f32 %v1691, %v947
        %v1693 = vmul.f32 %v1691, %v948
        %v1694 = vadd.f32 %v1688, %v1692
        %v1695 = vadd.f32 %v1689, %v1693
        %s1696 = sld [smem:[#allocation6 + $0x40]]
        %v1697 = vstv %s1696
        %v1698 = vmul.f32 %v1697, %v947
        %v1699 = vmul.f32 %v1697, %v948
        %1702 = vrot.lane.b32.xlu0 %v1698, 127
        %v1703 = vpop.permute.xlu0 %1702
        %1704 = vrot.lane.b32.xlu0 %v1699, 127
        %v1705 = vpop.permute.xlu0 %1704
        %v1708 = vadd.f32 %v1694, %v1703
        %v1709 = vadd.f32 %v1695, %v1705
        %s1710 = sld [smem:[#allocation6 + $0x41]]
        %v1711 = vstv %s1710
        %v1712 = vmul.f32 %v1711, %v947
        %v1713 = vmul.f32 %v1711, %v948
        %1716 = vrot.lane.b32.xlu0 %v1712, 126
        %v1717 = vpop.permute.xlu0 %1716
        %1718 = vrot.lane.b32.xlu0 %v1713, 126
        %v1719 = vpop.permute.xlu0 %1718
        %v1722 = vadd.f32 %v1708, %v1717
        %v1723 = vadd.f32 %v1709, %v1719
        %s1724 = sld [smem:[#allocation6 + $0x42]]
        %v1725 = vstv %s1724
        %v1726 = vmul.f32 %v1725, %v949
        %v1727 = vmul.f32 %v1725, %v950
        %v1728 = vadd.f32 %v1722, %v1726
        %v1729 = vadd.f32 %v1723, %v1727
        %s1730 = sld [smem:[#allocation6 + $0x43]]
        %v1731 = vstv %s1730
        %v1732 = vmul.f32 %v1731, %v949
        %v1733 = vmul.f32 %v1731, %v950
        %1736 = vrot.lane.b32.xlu0 %v1732, 127
        %v1737 = vpop.permute.xlu0 %1736
        %1738 = vrot.lane.b32.xlu0 %v1733, 127
        %v1739 = vpop.permute.xlu0 %1738
        %v1742 = vadd.f32 %v1728, %v1737
        %v1743 = vadd.f32 %v1729, %v1739
        %s1744 = sld [smem:[#allocation6 + $0x44]]
        %v1745 = vstv %s1744
        %v1746 = vmul.f32 %v1745, %v949
        %v1747 = vmul.f32 %v1745, %v950
        %1750 = vrot.lane.b32.xlu0 %v1746, 126
        %v1751 = vpop.permute.xlu0 %1750
        %1752 = vrot.lane.b32.xlu0 %v1747, 126
        %v1753 = vpop.permute.xlu0 %1752
        %v1756 = vadd.f32 %v1742, %v1751
        %v1757 = vadd.f32 %v1743, %v1753
        %s1758 = sld [smem:[#allocation6 + $0x45]]
        %v1759 = vstv %s1758
        %v1760 = vmul.f32 %v1759, %v951
        %v1761 = vmul.f32 %v1759, %v952
        %v1762 = vadd.f32 %v1756, %v1760
        %v1763 = vadd.f32 %v1757, %v1761
        %s1764 = sld [smem:[#allocation6 + $0x46]]
        %v1765 = vstv %s1764
        %v1766 = vmul.f32 %v1765, %v951
        %v1767 = vmul.f32 %v1765, %v952
        %1770 = vrot.lane.b32.xlu0 %v1766, 127
        %v1771 = vpop.permute.xlu0 %1770
        %1772 = vrot.lane.b32.xlu0 %v1767, 127
        %v1773 = vpop.permute.xlu0 %1772
        %v1776 = vadd.f32 %v1762, %v1771
        %v1777 = vadd.f32 %v1763, %v1773
        %s1778 = sld [smem:[#allocation6 + $0x47]]
        %v1779 = vstv %s1778
        %v1780 = vmul.f32 %v1779, %v951
        %v1781 = vmul.f32 %v1779, %v952
        %1784 = vrot.lane.b32.xlu0 %v1780, 126
        %v1785 = vpop.permute.xlu0 %1784
        %1786 = vrot.lane.b32.xlu0 %v1781, 126
        %v1787 = vpop.permute.xlu0 %1786
        %v1790 = vadd.f32 %v1776, %v1785
        %v1791 = vadd.f32 %v1777, %v1787
        %vm1792 = vcmp.ge.f32.partialorder %v1790, 0.0
        %vm1793 = vcmp.ge.f32.partialorder %v1791, 0.0
        %v1794 = vmul.f32 %v1366, %v1790
        %v1795 = vmul.f32 %v1366, %v1791
        %v1796 = vsel %vm1792, %v1790, %v1794
        %v1797 = vsel %vm1793, %v1791, %v1795
        %1800 = vrot.lane.b32.xlu0 %v1796, 1
        %v1801 = vpop.permute.xlu0 %1800
        %1802 = vrot.lane.b32.xlu0 %v1797, 1
        %v1803 = vpop.permute.xlu0 %1802
        %s1806 = scalar_lea.vmem [#allocation3], 24
        %1807 = vst.msk [vmem:[%s1806 + $0x1] sm:$0xff] %vm468, %v1801
        %1808 = vst.msk [vmem:[%s1806 + $0x9] sm:$0xff] %vm468, %v1803
        %s1809 = sld [smem:[#allocation9 + $0x2]]
        %v1810 = vstv %s1809
        %v1811 = vadd.f32 %v1810, 0.0
        %s1812 = sld [smem:[#allocation6 + $0x48]]
        %v1813 = vstv %s1812
        %v1814 = vmul.f32 %v1813, %v929
        %v1815 = vmul.f32 %v1813, %v930
        %v1816 = vadd.f32 %v1811, %v1814
        %v1817 = vadd.f32 %v1811, %v1815
        %s1818 = sld [smem:[#allocation6 + $0x49]]
        %v1819 = vstv %s1818
        %v1820 = vmul.f32 %v1819, %v929
        %v1821 = vmul.f32 %v1819, %v930
        %1824 = vrot.lane.b32.xlu0 %v1820, 127
        %v1825 = vpop.permute.xlu0 %1824
        %1826 = vrot.lane.b32.xlu0 %v1821, 127
        %v1827 = vpop.permute.xlu0 %1826
        %v1830 = vadd.f32 %v1816, %v1825
        %v1831 = vadd.f32 %v1817, %v1827
        %s1832 = sld [smem:[#allocation6 + $0x4a]]
        %v1833 = vstv %s1832
        %v1834 = vmul.f32 %v1833, %v929
        %v1835 = vmul.f32 %v1833, %v930
        %1838 = vrot.lane.b32.xlu0 %v1834, 126
        %v1839 = vpop.permute.xlu0 %1838
        %1840 = vrot.lane.b32.xlu0 %v1835, 126
        %v1841 = vpop.permute.xlu0 %1840
        %v1844 = vadd.f32 %v1830, %v1839
        %v1845 = vadd.f32 %v1831, %v1841
        %s1846 = sld [smem:[#allocation6 + $0x4b]]
        %v1847 = vstv %s1846
        %v1848 = vmul.f32 %v1847, %v931
        %v1849 = vmul.f32 %v1847, %v932
        %v1850 = vadd.f32 %v1844, %v1848
        %v1851 = vadd.f32 %v1845, %v1849
        %s1852 = sld [smem:[#allocation6 + $0x4c]]
        %v1853 = vstv %s1852
        %v1854 = vmul.f32 %v1853, %v931
        %v1855 = vmul.f32 %v1853, %v932
        %1858 = vrot.lane.b32.xlu0 %v1854, 127
        %v1859 = vpop.permute.xlu0 %1858
        %1860 = vrot.lane.b32.xlu0 %v1855, 127
        %v1861 = vpop.permute.xlu0 %1860
        %v1864 = vadd.f32 %v1850, %v1859
        %v1865 = vadd.f32 %v1851, %v1861
        %s1866 = sld [smem:[#allocation6 + $0x4d]]
        %v1867 = vstv %s1866
        %v1868 = vmul.f32 %v1867, %v931
        %v1869 = vmul.f32 %v1867, %v932
        %1872 = vrot.lane.b32.xlu0 %v1868, 126
        %v1873 = vpop.permute.xlu0 %1872
        %1874 = vrot.lane.b32.xlu0 %v1869, 126
        %v1875 = vpop.permute.xlu0 %1874
        %v1878 = vadd.f32 %v1864, %v1873
        %v1879 = vadd.f32 %v1865, %v1875
        %s1880 = sld [smem:[#allocation6 + $0x4e]]
        %v1881 = vstv %s1880
        %v1882 = vmul.f32 %v1881, %v933
        %v1883 = vmul.f32 %v1881, %v934
        %v1884 = vadd.f32 %v1878, %v1882
        %v1885 = vadd.f32 %v1879, %v1883
        %s1886 = sld [smem:[#allocation6 + $0x4f]]
        %v1887 = vstv %s1886
        %v1888 = vmul.f32 %v1887, %v933
        %v1889 = vmul.f32 %v1887, %v934
        %1892 = vrot.lane.b32.xlu0 %v1888, 127
        %v1893 = vpop.permute.xlu0 %1892
        %1894 = vrot.lane.b32.xlu0 %v1889, 127
        %v1895 = vpop.permute.xlu0 %1894
        %v1898 = vadd.f32 %v1884, %v1893
        %v1899 = vadd.f32 %v1885, %v1895
        %s1900 = sld [smem:[#allocation6 + $0x50]]
        %v1901 = vstv %s1900
        %v1902 = vmul.f32 %v1901, %v933
        %v1903 = vmul.f32 %v1901, %v934
        %1906 = vrot.lane.b32.xlu0 %v1902, 126
        %v1907 = vpop.permute.xlu0 %1906
        %1908 = vrot.lane.b32.xlu0 %v1903, 126
        %v1909 = vpop.permute.xlu0 %1908
        %v1912 = vadd.f32 %v1898, %v1907
        %v1913 = vadd.f32 %v1899, %v1909
        %s1914 = sld [smem:[#allocation6 + $0x51]]
        %v1915 = vstv %s1914
        %v1916 = vmul.f32 %v1915, %v935
        %v1917 = vmul.f32 %v1915, %v936
        %v1918 = vadd.f32 %v1912, %v1916
        %v1919 = vadd.f32 %v1913, %v1917
        %s1920 = sld [smem:[#allocation6 + $0x52]]
        %v1921 = vstv %s1920
        %v1922 = vmul.f32 %v1921, %v935
        %v1923 = vmul.f32 %v1921, %v936
        %1926 = vrot.lane.b32.xlu0 %v1922, 127
        %v1927 = vpop.permute.xlu0 %1926
        %1928 = vrot.lane.b32.xlu0 %v1923, 127
        %v1929 = vpop.permute.xlu0 %1928
        %v1932 = vadd.f32 %v1918, %v1927
        %v1933 = vadd.f32 %v1919, %v1929
        %s1934 = sld [smem:[#allocation6 + $0x53]]
        %v1935 = vstv %s1934
        %v1936 = vmul.f32 %v1935, %v935
        %v1937 = vmul.f32 %v1935, %v936
        %1940 = vrot.lane.b32.xlu0 %v1936, 126
        %v1941 = vpop.permute.xlu0 %1940
        %1942 = vrot.lane.b32.xlu0 %v1937, 126
        %v1943 = vpop.permute.xlu0 %1942
        %v1946 = vadd.f32 %v1932, %v1941
        %v1947 = vadd.f32 %v1933, %v1943
        %s1948 = sld [smem:[#allocation6 + $0x54]]
        %v1949 = vstv %s1948
        %v1950 = vmul.f32 %v1949, %v937
        %v1951 = vmul.f32 %v1949, %v938
        %v1952 = vadd.f32 %v1946, %v1950
        %v1953 = vadd.f32 %v1947, %v1951
        %s1954 = sld [smem:[#allocation6 + $0x55]]
        %v1955 = vstv %s1954
        %v1956 = vmul.f32 %v1955, %v937
        %v1957 = vmul.f32 %v1955, %v938
        %1960 = vrot.lane.b32.xlu0 %v1956, 127
        %v1961 = vpop.permute.xlu0 %1960
        %1962 = vrot.lane.b32.xlu0 %v1957, 127
        %v1963 = vpop.permute.xlu0 %1962
        %v1966 = vadd.f32 %v1952, %v1961
        %v1967 = vadd.f32 %v1953, %v1963
        %s1968 = sld [smem:[#allocation6 + $0x56]]
        %v1969 = vstv %s1968
        %v1970 = vmul.f32 %v1969, %v937
        %v1971 = vmul.f32 %v1969, %v938
        %1974 = vrot.lane.b32.xlu0 %v1970, 126
        %v1975 = vpop.permute.xlu0 %1974
        %1976 = vrot.lane.b32.xlu0 %v1971, 126
        %v1977 = vpop.permute.xlu0 %1976
        %v1980 = vadd.f32 %v1966, %v1975
        %v1981 = vadd.f32 %v1967, %v1977
        %s1982 = sld [smem:[#allocation6 + $0x57]]
        %v1983 = vstv %s1982
        %v1984 = vmul.f32 %v1983, %v939
        %v1985 = vmul.f32 %v1983, %v940
        %v1986 = vadd.f32 %v1980, %v1984
        %v1987 = vadd.f32 %v1981, %v1985
        %s1988 = sld [smem:[#allocation6 + $0x58]]
        %v1989 = vstv %s1988
        %v1990 = vmul.f32 %v1989, %v939
        %v1991 = vmul.f32 %v1989, %v940
        %1994 = vrot.lane.b32.xlu0 %v1990, 127
        %v1995 = vpop.permute.xlu0 %1994
        %1996 = vrot.lane.b32.xlu0 %v1991, 127
        %v1997 = vpop.permute.xlu0 %1996
        %v2000 = vadd.f32 %v1986, %v1995
        %v2001 = vadd.f32 %v1987, %v1997
        %s2002 = sld [smem:[#allocation6 + $0x59]]
        %v2003 = vstv %s2002
        %v2004 = vmul.f32 %v2003, %v939
        %v2005 = vmul.f32 %v2003, %v940
        %2008 = vrot.lane.b32.xlu0 %v2004, 126
        %v2009 = vpop.permute.xlu0 %2008
        %2010 = vrot.lane.b32.xlu0 %v2005, 126
        %v2011 = vpop.permute.xlu0 %2010
        %v2014 = vadd.f32 %v2000, %v2009
        %v2015 = vadd.f32 %v2001, %v2011
        %s2016 = sld [smem:[#allocation6 + $0x5a]]
        %v2017 = vstv %s2016
        %v2018 = vmul.f32 %v2017, %v941
        %v2019 = vmul.f32 %v2017, %v942
        %v2020 = vadd.f32 %v2014, %v2018
        %v2021 = vadd.f32 %v2015, %v2019
        %s2022 = sld [smem:[#allocation6 + $0x5b]]
        %v2023 = vstv %s2022
        %v2024 = vmul.f32 %v2023, %v941
        %v2025 = vmul.f32 %v2023, %v942
        %2028 = vrot.lane.b32.xlu0 %v2024, 127
        %v2029 = vpop.permute.xlu0 %2028
        %2030 = vrot.lane.b32.xlu0 %v2025, 127
        %v2031 = vpop.permute.xlu0 %2030
        %v2034 = vadd.f32 %v2020, %v2029
        %v2035 = vadd.f32 %v2021, %v2031
        %s2036 = sld [smem:[#allocation6 + $0x5c]]
        %v2037 = vstv %s2036
        %v2038 = vmul.f32 %v2037, %v941
        %v2039 = vmul.f32 %v2037, %v942
        %2042 = vrot.lane.b32.xlu0 %v2038, 126
        %v2043 = vpop.permute.xlu0 %2042
        %2044 = vrot.lane.b32.xlu0 %v2039, 126
        %v2045 = vpop.permute.xlu0 %2044
        %v2048 = vadd.f32 %v2034, %v2043
        %v2049 = vadd.f32 %v2035, %v2045
        %s2050 = sld [smem:[#allocation6 + $0x5d]]
        %v2051 = vstv %s2050
        %v2052 = vmul.f32 %v2051, %v943
        %v2053 = vmul.f32 %v2051, %v944
        %v2054 = vadd.f32 %v2048, %v2052
        %v2055 = vadd.f32 %v2049, %v2053
        %s2056 = sld [smem:[#allocation6 + $0x5e]]
        %v2057 = vstv %s2056
        %v2058 = vmul.f32 %v2057, %v943
        %v2059 = vmul.f32 %v2057, %v944
        %2062 = vrot.lane.b32.xlu0 %v2058, 127
        %v2063 = vpop.permute.xlu0 %2062
        %2064 = vrot.lane.b32.xlu0 %v2059, 127
        %v2065 = vpop.permute.xlu0 %2064
        %v2068 = vadd.f32 %v2054, %v2063
        %v2069 = vadd.f32 %v2055, %v2065
        %s2070 = sld [smem:[#allocation6 + $0x5f]]
        %v2071 = vstv %s2070
        %v2072 = vmul.f32 %v2071, %v943
        %v2073 = vmul.f32 %v2071, %v944
        %2076 = vrot.lane.b32.xlu0 %v2072, 126
        %v2077 = vpop.permute.xlu0 %2076
        %2078 = vrot.lane.b32.xlu0 %v2073, 126
        %v2079 = vpop.permute.xlu0 %2078
        %v2082 = vadd.f32 %v2068, %v2077
        %v2083 = vadd.f32 %v2069, %v2079
        %s2084 = sld [smem:[#allocation6 + $0x60]]
        %v2085 = vstv %s2084
        %v2086 = vmul.f32 %v2085, %v945
        %v2087 = vmul.f32 %v2085, %v946
        %v2088 = vadd.f32 %v2082, %v2086
        %v2089 = vadd.f32 %v2083, %v2087
        %s2090 = sld [smem:[#allocation6 + $0x61]]
        %v2091 = vstv %s2090
        %v2092 = vmul.f32 %v2091, %v945
        %v2093 = vmul.f32 %v2091, %v946
        %2096 = vrot.lane.b32.xlu0 %v2092, 127
        %v2097 = vpop.permute.xlu0 %2096
        %2098 = vrot.lane.b32.xlu0 %v2093, 127
        %v2099 = vpop.permute.xlu0 %2098
        %v2102 = vadd.f32 %v2088, %v2097
        %v2103 = vadd.f32 %v2089, %v2099
        %s2104 = sld [smem:[#allocation6 + $0x62]]
        %v2105 = vstv %s2104
        %v2106 = vmul.f32 %v2105, %v945
        %v2107 = vmul.f32 %v2105, %v946
        %2110 = vrot.lane.b32.xlu0 %v2106, 126
        %v2111 = vpop.permute.xlu0 %2110
        %2112 = vrot.lane.b32.xlu0 %v2107, 126
        %v2113 = vpop.permute.xlu0 %2112
        %v2116 = vadd.f32 %v2102, %v2111
        %v2117 = vadd.f32 %v2103, %v2113
        %s2118 = sld [smem:[#allocation6 + $0x63]]
        %v2119 = vstv %s2118
        %v2120 = vmul.f32 %v2119, %v947
        %v2121 = vmul.f32 %v2119, %v948
        %v2122 = vadd.f32 %v2116, %v2120
        %v2123 = vadd.f32 %v2117, %v2121
        %s2124 = sld [smem:[#allocation6 + $0x64]]
        %v2125 = vstv %s2124
        %v2126 = vmul.f32 %v2125, %v947
        %v2127 = vmul.f32 %v2125, %v948
        %2130 = vrot.lane.b32.xlu0 %v2126, 127
        %v2131 = vpop.permute.xlu0 %2130
        %2132 = vrot.lane.b32.xlu0 %v2127, 127
        %v2133 = vpop.permute.xlu0 %2132
        %v2136 = vadd.f32 %v2122, %v2131
        %v2137 = vadd.f32 %v2123, %v2133
        %s2138 = sld [smem:[#allocation6 + $0x65]]
        %v2139 = vstv %s2138
        %v2140 = vmul.f32 %v2139, %v947
        %v2141 = vmul.f32 %v2139, %v948
        %2144 = vrot.lane.b32.xlu0 %v2140, 126
        %v2145 = vpop.permute.xlu0 %2144
        %2146 = vrot.lane.b32.xlu0 %v2141, 126
        %v2147 = vpop.permute.xlu0 %2146
        %v2150 = vadd.f32 %v2136, %v2145
        %v2151 = vadd.f32 %v2137, %v2147
        %s2152 = sld [smem:[#allocation6 + $0x66]]
        %v2153 = vstv %s2152
        %v2154 = vmul.f32 %v2153, %v949
        %v2155 = vmul.f32 %v2153, %v950
        %v2156 = vadd.f32 %v2150, %v2154
        %v2157 = vadd.f32 %v2151, %v2155
        %s2158 = sld [smem:[#allocation6 + $0x67]]
        %v2159 = vstv %s2158
        %v2160 = vmul.f32 %v2159, %v949
        %v2161 = vmul.f32 %v2159, %v950
        %2164 = vrot.lane.b32.xlu0 %v2160, 127
        %v2165 = vpop.permute.xlu0 %2164
        %2166 = vrot.lane.b32.xlu0 %v2161, 127
        %v2167 = vpop.permute.xlu0 %2166
        %v2170 = vadd.f32 %v2156, %v2165
        %v2171 = vadd.f32 %v2157, %v2167
        %s2172 = sld [smem:[#allocation6 + $0x68]]
        %v2173 = vstv %s2172
        %v2174 = vmul.f32 %v2173, %v949
        %v2175 = vmul.f32 %v2173, %v950
        %2178 = vrot.lane.b32.xlu0 %v2174, 126
        %v2179 = vpop.permute.xlu0 %2178
        %2180 = vrot.lane.b32.xlu0 %v2175, 126
        %v2181 = vpop.permute.xlu0 %2180
        %v2184 = vadd.f32 %v2170, %v2179
        %v2185 = vadd.f32 %v2171, %v2181
        %s2186 = sld [smem:[#allocation6 + $0x69]]
        %v2187 = vstv %s2186
        %v2188 = vmul.f32 %v2187, %v951
        %v2189 = vmul.f32 %v2187, %v952
        %v2190 = vadd.f32 %v2184, %v2188
        %v2191 = vadd.f32 %v2185, %v2189
        %s2192 = sld [smem:[#allocation6 + $0x6a]]
        %v2193 = vstv %s2192
        %v2194 = vmul.f32 %v2193, %v951
        %v2195 = vmul.f32 %v2193, %v952
        %2198 = vrot.lane.b32.xlu0 %v2194, 127
        %v2199 = vpop.permute.xlu0 %2198
        %2200 = vrot.lane.b32.xlu0 %v2195, 127
        %v2201 = vpop.permute.xlu0 %2200
        %v2204 = vadd.f32 %v2190, %v2199
        %v2205 = vadd.f32 %v2191, %v2201
        %s2206 = sld [smem:[#allocation6 + $0x6b]]
        %v2207 = vstv %s2206
        %v2208 = vmul.f32 %v2207, %v951
        %v2209 = vmul.f32 %v2207, %v952
        %2212 = vrot.lane.b32.xlu0 %v2208, 126
        %v2213 = vpop.permute.xlu0 %2212
        %2214 = vrot.lane.b32.xlu0 %v2209, 126
        %v2215 = vpop.permute.xlu0 %2214
        %v2218 = vadd.f32 %v2204, %v2213
        %v2219 = vadd.f32 %v2205, %v2215
        %vm2220 = vcmp.ge.f32.partialorder %v2218, 0.0
        %vm2221 = vcmp.ge.f32.partialorder %v2219, 0.0
        %v2222 = vmul.f32 %v1366, %v2218
        %v2223 = vmul.f32 %v1366, %v2219
        %v2224 = vsel %vm2220, %v2218, %v2222
        %v2225 = vsel %vm2221, %v2219, %v2223
        %2228 = vrot.lane.b32.xlu0 %v2224, 1
        %v2229 = vpop.permute.xlu0 %2228
        %2230 = vrot.lane.b32.xlu0 %v2225, 1
        %v2231 = vpop.permute.xlu0 %2230
        %s2234 = scalar_lea.vmem [#allocation3], 48
        %2235 = vst.msk [vmem:[%s2234 + $0x1] sm:$0xff] %vm468, %v2229
        %2236 = vst.msk [vmem:[%s2234 + $0x9] sm:$0xff] %vm468, %v2231
        %s2237 = sld [smem:[#allocation9 + $0x3]]
        %v2238 = vstv %s2237
        %v2239 = vadd.f32 %v2238, 0.0
        %s2240 = sld [smem:[#allocation6 + $0x6c]]
        %v2241 = vstv %s2240
        %v2242 = vmul.f32 %v2241, %v929
        %v2243 = vmul.f32 %v2241, %v930
        %v2244 = vadd.f32 %v2239, %v2242
        %v2245 = vadd.f32 %v2239, %v2243
        %s2246 = sld [smem:[#allocation6 + $0x6d]]
        %v2247 = vstv %s2246
        %v2248 = vmul.f32 %v2247, %v929
        %v2249 = vmul.f32 %v2247, %v930
        %2252 = vrot.lane.b32.xlu0 %v2248, 127
        %v2253 = vpop.permute.xlu0 %2252
        %2254 = vrot.lane.b32.xlu0 %v2249, 127
        %v2255 = vpop.permute.xlu0 %2254
        %v2258 = vadd.f32 %v2244, %v2253
        %v2259 = vadd.f32 %v2245, %v2255
        %s2260 = sld [smem:[#allocation6 + $0x6e]]
        %v2261 = vstv %s2260
        %v2262 = vmul.f32 %v2261, %v929
        %v2263 = vmul.f32 %v2261, %v930
        %2266 = vrot.lane.b32.xlu0 %v2262, 126
        %v2267 = vpop.permute.xlu0 %2266
        %2268 = vrot.lane.b32.xlu0 %v2263, 126
        %v2269 = vpop.permute.xlu0 %2268
        %v2272 = vadd.f32 %v2258, %v2267
        %v2273 = vadd.f32 %v2259, %v2269
        %s2274 = sld [smem:[#allocation6 + $0x6f]]
        %v2275 = vstv %s2274
        %v2276 = vmul.f32 %v2275, %v931
        %v2277 = vmul.f32 %v2275, %v932
        %v2278 = vadd.f32 %v2272, %v2276
        %v2279 = vadd.f32 %v2273, %v2277
        %s2280 = sld [smem:[#allocation6 + $0x70]]
        %v2281 = vstv %s2280
        %v2282 = vmul.f32 %v2281, %v931
        %v2283 = vmul.f32 %v2281, %v932
        %2286 = vrot.lane.b32.xlu0 %v2282, 127
        %v2287 = vpop.permute.xlu0 %2286
        %2288 = vrot.lane.b32.xlu0 %v2283, 127
        %v2289 = vpop.permute.xlu0 %2288
        %v2292 = vadd.f32 %v2278, %v2287
        %v2293 = vadd.f32 %v2279, %v2289
        %s2294 = sld [smem:[#allocation6 + $0x71]]
        %v2295 = vstv %s2294
        %v2296 = vmul.f32 %v2295, %v931
        %v2297 = vmul.f32 %v2295, %v932
        %2300 = vrot.lane.b32.xlu0 %v2296, 126
        %v2301 = vpop.permute.xlu0 %2300
        %2302 = vrot.lane.b32.xlu0 %v2297, 126
        %v2303 = vpop.permute.xlu0 %2302
        %v2306 = vadd.f32 %v2292, %v2301
        %v2307 = vadd.f32 %v2293, %v2303
        %s2308 = sld [smem:[#allocation6 + $0x72]]
        %v2309 = vstv %s2308
        %v2310 = vmul.f32 %v2309, %v933
        %v2311 = vmul.f32 %v2309, %v934
        %v2312 = vadd.f32 %v2306, %v2310
        %v2313 = vadd.f32 %v2307, %v2311
        %s2314 = sld [smem:[#allocation6 + $0x73]]
        %v2315 = vstv %s2314
        %v2316 = vmul.f32 %v2315, %v933
        %v2317 = vmul.f32 %v2315, %v934
        %2320 = vrot.lane.b32.xlu0 %v2316, 127
        %v2321 = vpop.permute.xlu0 %2320
        %2322 = vrot.lane.b32.xlu0 %v2317, 127
        %v2323 = vpop.permute.xlu0 %2322
        %v2326 = vadd.f32 %v2312, %v2321
        %v2327 = vadd.f32 %v2313, %v2323
        %s2328 = sld [smem:[#allocation6 + $0x74]]
        %v2329 = vstv %s2328
        %v2330 = vmul.f32 %v2329, %v933
        %v2331 = vmul.f32 %v2329, %v934
        %2334 = vrot.lane.b32.xlu0 %v2330, 126
        %v2335 = vpop.permute.xlu0 %2334
        %2336 = vrot.lane.b32.xlu0 %v2331, 126
        %v2337 = vpop.permute.xlu0 %2336
        %v2340 = vadd.f32 %v2326, %v2335
        %v2341 = vadd.f32 %v2327, %v2337
        %s2342 = sld [smem:[#allocation6 + $0x75]]
        %v2343 = vstv %s2342
        %v2344 = vmul.f32 %v2343, %v935
        %v2345 = vmul.f32 %v2343, %v936
        %v2346 = vadd.f32 %v2340, %v2344
        %v2347 = vadd.f32 %v2341, %v2345
        %s2348 = sld [smem:[#allocation6 + $0x76]]
        %v2349 = vstv %s2348
        %v2350 = vmul.f32 %v2349, %v935
        %v2351 = vmul.f32 %v2349, %v936
        %2354 = vrot.lane.b32.xlu0 %v2350, 127
        %v2355 = vpop.permute.xlu0 %2354
        %2356 = vrot.lane.b32.xlu0 %v2351, 127
        %v2357 = vpop.permute.xlu0 %2356
        %v2360 = vadd.f32 %v2346, %v2355
        %v2361 = vadd.f32 %v2347, %v2357
        %s2362 = sld [smem:[#allocation6 + $0x77]]
        %v2363 = vstv %s2362
        %v2364 = vmul.f32 %v2363, %v935
        %v2365 = vmul.f32 %v2363, %v936
        %2368 = vrot.lane.b32.xlu0 %v2364, 126
        %v2369 = vpop.permute.xlu0 %2368
        %2370 = vrot.lane.b32.xlu0 %v2365, 126
        %v2371 = vpop.permute.xlu0 %2370
        %v2374 = vadd.f32 %v2360, %v2369
        %v2375 = vadd.f32 %v2361, %v2371
        %s2376 = sld [smem:[#allocation6 + $0x78]]
        %v2377 = vstv %s2376
        %v2378 = vmul.f32 %v2377, %v937
        %v2379 = vmul.f32 %v2377, %v938
        %v2380 = vadd.f32 %v2374, %v2378
        %v2381 = vadd.f32 %v2375, %v2379
        %s2382 = sld [smem:[#allocation6 + $0x79]]
        %v2383 = vstv %s2382
        %v2384 = vmul.f32 %v2383, %v937
        %v2385 = vmul.f32 %v2383, %v938
        %2388 = vrot.lane.b32.xlu0 %v2384, 127
        %v2389 = vpop.permute.xlu0 %2388
        %2390 = vrot.lane.b32.xlu0 %v2385, 127
        %v2391 = vpop.permute.xlu0 %2390
        %v2394 = vadd.f32 %v2380, %v2389
        %v2395 = vadd.f32 %v2381, %v2391
        %s2396 = sld [smem:[#allocation6 + $0x7a]]
        %v2397 = vstv %s2396
        %v2398 = vmul.f32 %v2397, %v937
        %v2399 = vmul.f32 %v2397, %v938
        %2402 = vrot.lane.b32.xlu0 %v2398, 126
        %v2403 = vpop.permute.xlu0 %2402
        %2404 = vrot.lane.b32.xlu0 %v2399, 126
        %v2405 = vpop.permute.xlu0 %2404
        %v2408 = vadd.f32 %v2394, %v2403
        %v2409 = vadd.f32 %v2395, %v2405
        %s2410 = sld [smem:[#allocation6 + $0x7b]]
        %v2411 = vstv %s2410
        %v2412 = vmul.f32 %v2411, %v939
        %v2413 = vmul.f32 %v2411, %v940
        %v2414 = vadd.f32 %v2408, %v2412
        %v2415 = vadd.f32 %v2409, %v2413
        %s2416 = sld [smem:[#allocation6 + $0x7c]]
        %v2417 = vstv %s2416
        %v2418 = vmul.f32 %v2417, %v939
        %v2419 = vmul.f32 %v2417, %v940
        %2422 = vrot.lane.b32.xlu0 %v2418, 127
        %v2423 = vpop.permute.xlu0 %2422
        %2424 = vrot.lane.b32.xlu0 %v2419, 127
        %v2425 = vpop.permute.xlu0 %2424
        %v2428 = vadd.f32 %v2414, %v2423
        %v2429 = vadd.f32 %v2415, %v2425
        %s2430 = sld [smem:[#allocation6 + $0x7d]]
        %v2431 = vstv %s2430
        %v2432 = vmul.f32 %v2431, %v939
        %v2433 = vmul.f32 %v2431, %v940
        %2436 = vrot.lane.b32.xlu0 %v2432, 126
        %v2437 = vpop.permute.xlu0 %2436
        %2438 = vrot.lane.b32.xlu0 %v2433, 126
        %v2439 = vpop.permute.xlu0 %2438
        %v2442 = vadd.f32 %v2428, %v2437
        %v2443 = vadd.f32 %v2429, %v2439
        %s2444 = sld [smem:[#allocation6 + $0x7e]]
        %v2445 = vstv %s2444
        %v2446 = vmul.f32 %v2445, %v941
        %v2447 = vmul.f32 %v2445, %v942
        %v2448 = vadd.f32 %v2442, %v2446
        %v2449 = vadd.f32 %v2443, %v2447
        %s2450 = sld [smem:[#allocation6 + $0x7f]]
        %v2451 = vstv %s2450
        %v2452 = vmul.f32 %v2451, %v941
        %v2453 = vmul.f32 %v2451, %v942
        %2456 = vrot.lane.b32.xlu0 %v2452, 127
        %v2457 = vpop.permute.xlu0 %2456
        %2458 = vrot.lane.b32.xlu0 %v2453, 127
        %v2459 = vpop.permute.xlu0 %2458
        %v2462 = vadd.f32 %v2448, %v2457
        %v2463 = vadd.f32 %v2449, %v2459
        %s2464 = sld [smem:[#allocation6 + $0x80]]
        %v2465 = vstv %s2464
        %v2466 = vmul.f32 %v2465, %v941
        %v2467 = vmul.f32 %v2465, %v942
        %2470 = vrot.lane.b32.xlu0 %v2466, 126
        %v2471 = vpop.permute.xlu0 %2470
        %2472 = vrot.lane.b32.xlu0 %v2467, 126
        %v2473 = vpop.permute.xlu0 %2472
        %v2476 = vadd.f32 %v2462, %v2471
        %v2477 = vadd.f32 %v2463, %v2473
        %s2478 = sld [smem:[#allocation6 + $0x81]]
        %v2479 = vstv %s2478
        %v2480 = vmul.f32 %v2479, %v943
        %v2481 = vmul.f32 %v2479, %v944
        %v2482 = vadd.f32 %v2476, %v2480
        %v2483 = vadd.f32 %v2477, %v2481
        %s2484 = sld [smem:[#allocation6 + $0x82]]
        %v2485 = vstv %s2484
        %v2486 = vmul.f32 %v2485, %v943
        %v2487 = vmul.f32 %v2485, %v944
        %2490 = vrot.lane.b32.xlu0 %v2486, 127
        %v2491 = vpop.permute.xlu0 %2490
        %2492 = vrot.lane.b32.xlu0 %v2487, 127
        %v2493 = vpop.permute.xlu0 %2492
        %v2496 = vadd.f32 %v2482, %v2491
        %v2497 = vadd.f32 %v2483, %v2493
        %s2498 = sld [smem:[#allocation6 + $0x83]]
        %v2499 = vstv %s2498
        %v2500 = vmul.f32 %v2499, %v943
        %v2501 = vmul.f32 %v2499, %v944
        %2504 = vrot.lane.b32.xlu0 %v2500, 126
        %v2505 = vpop.permute.xlu0 %2504
        %2506 = vrot.lane.b32.xlu0 %v2501, 126
        %v2507 = vpop.permute.xlu0 %2506
        %v2510 = vadd.f32 %v2496, %v2505
        %v2511 = vadd.f32 %v2497, %v2507
        %s2512 = sld [smem:[#allocation6 + $0x84]]
        %v2513 = vstv %s2512
        %v2514 = vmul.f32 %v2513, %v945
        %v2515 = vmul.f32 %v2513, %v946
        %v2516 = vadd.f32 %v2510, %v2514
        %v2517 = vadd.f32 %v2511, %v2515
        %s2518 = sld [smem:[#allocation6 + $0x85]]
        %v2519 = vstv %s2518
        %v2520 = vmul.f32 %v2519, %v945
        %v2521 = vmul.f32 %v2519, %v946
        %2524 = vrot.lane.b32.xlu0 %v2520, 127
        %v2525 = vpop.permute.xlu0 %2524
        %2526 = vrot.lane.b32.xlu0 %v2521, 127
        %v2527 = vpop.permute.xlu0 %2526
        %v2530 = vadd.f32 %v2516, %v2525
        %v2531 = vadd.f32 %v2517, %v2527
        %s2532 = sld [smem:[#allocation6 + $0x86]]
        %v2533 = vstv %s2532
        %v2534 = vmul.f32 %v2533, %v945
        %v2535 = vmul.f32 %v2533, %v946
        %2538 = vrot.lane.b32.xlu0 %v2534, 126
        %v2539 = vpop.permute.xlu0 %2538
        %2540 = vrot.lane.b32.xlu0 %v2535, 126
        %v2541 = vpop.permute.xlu0 %2540
        %v2544 = vadd.f32 %v2530, %v2539
        %v2545 = vadd.f32 %v2531, %v2541
        %s2546 = sld [smem:[#allocation6 + $0x87]]
        %v2547 = vstv %s2546
        %v2548 = vmul.f32 %v2547, %v947
        %v2549 = vmul.f32 %v2547, %v948
        %v2550 = vadd.f32 %v2544, %v2548
        %v2551 = vadd.f32 %v2545, %v2549
        %s2552 = sld [smem:[#allocation6 + $0x88]]
        %v2553 = vstv %s2552
        %v2554 = vmul.f32 %v2553, %v947
        %v2555 = vmul.f32 %v2553, %v948
        %2558 = vrot.lane.b32.xlu0 %v2554, 127
        %v2559 = vpop.permute.xlu0 %2558
        %2560 = vrot.lane.b32.xlu0 %v2555, 127
        %v2561 = vpop.permute.xlu0 %2560
        %v2564 = vadd.f32 %v2550, %v2559
        %v2565 = vadd.f32 %v2551, %v2561
        %s2566 = sld [smem:[#allocation6 + $0x89]]
        %v2567 = vstv %s2566
        %v2568 = vmul.f32 %v2567, %v947
        %v2569 = vmul.f32 %v2567, %v948
        %2572 = vrot.lane.b32.xlu0 %v2568, 126
        %v2573 = vpop.permute.xlu0 %2572
        %2574 = vrot.lane.b32.xlu0 %v2569, 126
        %v2575 = vpop.permute.xlu0 %2574
        %v2578 = vadd.f32 %v2564, %v2573
        %v2579 = vadd.f32 %v2565, %v2575
        %s2580 = sld [smem:[#allocation6 + $0x8a]]
        %v2581 = vstv %s2580
        %v2582 = vmul.f32 %v2581, %v949
        %v2583 = vmul.f32 %v2581, %v950
        %v2584 = vadd.f32 %v2578, %v2582
        %v2585 = vadd.f32 %v2579, %v2583
        %s2586 = sld [smem:[#allocation6 + $0x8b]]
        %v2587 = vstv %s2586
        %v2588 = vmul.f32 %v2587, %v949
        %v2589 = vmul.f32 %v2587, %v950
        %2592 = vrot.lane.b32.xlu0 %v2588, 127
        %v2593 = vpop.permute.xlu0 %2592
        %2594 = vrot.lane.b32.xlu0 %v2589, 127
        %v2595 = vpop.permute.xlu0 %2594
        %v2598 = vadd.f32 %v2584, %v2593
        %v2599 = vadd.f32 %v2585, %v2595
        %s2600 = sld [smem:[#allocation6 + $0x8c]]
        %v2601 = vstv %s2600
        %v2602 = vmul.f32 %v2601, %v949
        %v2603 = vmul.f32 %v2601, %v950
        %2606 = vrot.lane.b32.xlu0 %v2602, 126
        %v2607 = vpop.permute.xlu0 %2606
        %2608 = vrot.lane.b32.xlu0 %v2603, 126
        %v2609 = vpop.permute.xlu0 %2608
        %v2612 = vadd.f32 %v2598, %v2607
        %v2613 = vadd.f32 %v2599, %v2609
        %s2614 = sld [smem:[#allocation6 + $0x8d]]
        %v2615 = vstv %s2614
        %v2616 = vmul.f32 %v2615, %v951
        %v2617 = vmul.f32 %v2615, %v952
        %v2618 = vadd.f32 %v2612, %v2616
        %v2619 = vadd.f32 %v2613, %v2617
        %s2620 = sld [smem:[#allocation6 + $0x8e]]
        %v2621 = vstv %s2620
        %v2622 = vmul.f32 %v2621, %v951
        %v2623 = vmul.f32 %v2621, %v952
        %2626 = vrot.lane.b32.xlu0 %v2622, 127
        %v2627 = vpop.permute.xlu0 %2626
        %2628 = vrot.lane.b32.xlu0 %v2623, 127
        %v2629 = vpop.permute.xlu0 %2628
        %v2632 = vadd.f32 %v2618, %v2627
        %v2633 = vadd.f32 %v2619, %v2629
        %s2634 = sld [smem:[#allocation6 + $0x8f]]
        %v2635 = vstv %s2634
        %v2636 = vmul.f32 %v2635, %v951
        %v2637 = vmul.f32 %v2635, %v952
        %2640 = vrot.lane.b32.xlu0 %v2636, 126
        %v2641 = vpop.permute.xlu0 %2640
        %2642 = vrot.lane.b32.xlu0 %v2637, 126
        %v2643 = vpop.permute.xlu0 %2642
        %v2646 = vadd.f32 %v2632, %v2641
        %v2647 = vadd.f32 %v2633, %v2643
        %vm2648 = vcmp.ge.f32.partialorder %v2646, 0.0
        %vm2649 = vcmp.ge.f32.partialorder %v2647, 0.0
        %v2650 = vmul.f32 %v1366, %v2646
        %v2651 = vmul.f32 %v1366, %v2647
        %v2652 = vsel %vm2648, %v2646, %v2650
        %v2653 = vsel %vm2649, %v2647, %v2651
        %2656 = vrot.lane.b32.xlu0 %v2652, 1
        %v2657 = vpop.permute.xlu0 %2656
        %2658 = vrot.lane.b32.xlu0 %v2653, 1
        %v2659 = vpop.permute.xlu0 %2658
        %s2662 = scalar_lea.vmem [#allocation3], 72
        %2663 = vst.msk [vmem:[%s2662 + $0x1] sm:$0xff] %vm468, %v2657
        %2664 = vst.msk [vmem:[%s2662 + $0x9] sm:$0xff] %vm468, %v2659
        %v2665 = vld [vmem:[#allocation3] sm:$0xff]
        %v2666 = vld [vmem:[#allocation3 + $0x8] sm:$0xff]
        %v2667 = vld [vmem:[#allocation3 + $0x1] sm:$0xff]
        %v2668 = vld [vmem:[#allocation3 + $0x9] sm:$0xff]
        %v2669 = vld [vmem:[#allocation3 + $0x2] sm:$0xff]
        %v2670 = vld [vmem:[#allocation3 + $0xa] sm:$0xff]
        %v2671 = vld [vmem:[%s1806] sm:$0xff]
        %v2672 = vld [vmem:[%s1806 + $0x8] sm:$0xff]
        %v2673 = vld [vmem:[%s1806 + $0x1] sm:$0xff]
        %v2674 = vld [vmem:[%s1806 + $0x9] sm:$0xff]
        %v2675 = vld [vmem:[%s1806 + $0x2] sm:$0xff]
        %v2676 = vld [vmem:[%s1806 + $0xa] sm:$0xff]
        %v2677 = vld [vmem:[%s2234] sm:$0xff]
        %v2678 = vld [vmem:[%s2234 + $0x8] sm:$0xff]
        %v2679 = vld [vmem:[%s2234 + $0x1] sm:$0xff]
        %v2680 = vld [vmem:[%s2234 + $0x9] sm:$0xff]
        %v2681 = vld [vmem:[%s2234 + $0x2] sm:$0xff]
        %v2682 = vld [vmem:[%s2234 + $0xa] sm:$0xff]
        %v2683 = vld [vmem:[%s2662] sm:$0xff]
        %v2684 = vld [vmem:[%s2662 + $0x8] sm:$0xff]
        %v2685 = vld [vmem:[%s2662 + $0x1] sm:$0xff]
        %v2686 = vld [vmem:[%s2662 + $0x9] sm:$0xff]
        %v2687 = vld [vmem:[%s2662 + $0x2] sm:$0xff]
        %v2688 = vld [vmem:[%s2662 + $0xa] sm:$0xff]
        %s2689 = sld [smem:[#allocation12]]
        %v2690 = vstv %s2689
        %v2691 = vadd.f32 %v2690, 0.0
        %s2692 = sld [smem:[#allocation11]]
        %v2693 = vstv %s2692
        %v2694 = vmul.f32 %v2693, %v2665
        %v2695 = vmul.f32 %v2693, %v2666
        %v2696 = vadd.f32 %v2691, %v2694
        %v2697 = vadd.f32 %v2691, %v2695
        %s2698 = sld [smem:[#allocation11 + $0x1]]
        %v2699 = vstv %s2698
        %v2700 = vmul.f32 %v2699, %v2665
        %v2701 = vmul.f32 %v2699, %v2666
        %2704 = vrot.lane.b32.xlu0 %v2700, 127
        %v2705 = vpop.permute.xlu0 %2704
        %2706 = vrot.lane.b32.xlu0 %v2701, 127
        %v2707 = vpop.permute.xlu0 %2706
        %v2710 = vadd.f32 %v2696, %v2705
        %v2711 = vadd.f32 %v2697, %v2707
        %s2712 = sld [smem:[#allocation11 + $0x2]]
        %v2713 = vstv %s2712
        %v2714 = vmul.f32 %v2713, %v2665
        %v2715 = vmul.f32 %v2713, %v2666
        %2718 = vrot.lane.b32.xlu0 %v2714, 126
        %v2719 = vpop.permute.xlu0 %2718
        %2720 = vrot.lane.b32.xlu0 %v2715, 126
        %v2721 = vpop.permute.xlu0 %2720
        %v2724 = vadd.f32 %v2710, %v2719
        %v2725 = vadd.f32 %v2711, %v2721
        %s2726 = sld [smem:[#allocation11 + $0x3]]
        %v2727 = vstv %s2726
        %v2728 = vmul.f32 %v2727, %v2667
        %v2729 = vmul.f32 %v2727, %v2668
        %v2730 = vadd.f32 %v2724, %v2728
        %v2731 = vadd.f32 %v2725, %v2729
        %s2732 = sld [smem:[#allocation11 + $0x4]]
        %v2733 = vstv %s2732
        %v2734 = vmul.f32 %v2733, %v2667
        %v2735 = vmul.f32 %v2733, %v2668
        %2738 = vrot.lane.b32.xlu0 %v2734, 127
        %v2739 = vpop.permute.xlu0 %2738
        %2740 = vrot.lane.b32.xlu0 %v2735, 127
        %v2741 = vpop.permute.xlu0 %2740
        %v2744 = vadd.f32 %v2730, %v2739
        %v2745 = vadd.f32 %v2731, %v2741
        %s2746 = sld [smem:[#allocation11 + $0x5]]
        %v2747 = vstv %s2746
        %v2748 = vmul.f32 %v2747, %v2667
        %v2749 = vmul.f32 %v2747, %v2668
        %2752 = vrot.lane.b32.xlu0 %v2748, 126
        %v2753 = vpop.permute.xlu0 %2752
        %2754 = vrot.lane.b32.xlu0 %v2749, 126
        %v2755 = vpop.permute.xlu0 %2754
        %v2758 = vadd.f32 %v2744, %v2753
        %v2759 = vadd.f32 %v2745, %v2755
        %s2760 = sld [smem:[#allocation11 + $0x6]]
        %v2761 = vstv %s2760
        %v2762 = vmul.f32 %v2761, %v2669
        %v2763 = vmul.f32 %v2761, %v2670
        %v2764 = vadd.f32 %v2758, %v2762
        %v2765 = vadd.f32 %v2759, %v2763
        %s2766 = sld [smem:[#allocation11 + $0x7]]
        %v2767 = vstv %s2766
        %v2768 = vmul.f32 %v2767, %v2669
        %v2769 = vmul.f32 %v2767, %v2670
        %2772 = vrot.lane.b32.xlu0 %v2768, 127
        %v2773 = vpop.permute.xlu0 %2772
        %2774 = vrot.lane.b32.xlu0 %v2769, 127
        %v2775 = vpop.permute.xlu0 %2774
        %v2778 = vadd.f32 %v2764, %v2773
        %v2779 = vadd.f32 %v2765, %v2775
        %s2780 = sld [smem:[#allocation11 + $0x8]]
        %v2781 = vstv %s2780
        %v2782 = vmul.f32 %v2781, %v2669
        %v2783 = vmul.f32 %v2781, %v2670
        %2786 = vrot.lane.b32.xlu0 %v2782, 126
        %v2787 = vpop.permute.xlu0 %2786
        %2788 = vrot.lane.b32.xlu0 %v2783, 126
        %v2789 = vpop.permute.xlu0 %2788
        %v2792 = vadd.f32 %v2778, %v2787
        %v2793 = vadd.f32 %v2779, %v2789
        %s2794 = sld [smem:[#allocation11 + $0x9]]
        %v2795 = vstv %s2794
        %v2796 = vmul.f32 %v2795, %v2671
        %v2797 = vmul.f32 %v2795, %v2672
        %v2798 = vadd.f32 %v2792, %v2796
        %v2799 = vadd.f32 %v2793, %v2797
        %s2800 = sld [smem:[#allocation11 + $0xa]]
        %v2801 = vstv %s2800
        %v2802 = vmul.f32 %v2801, %v2671
        %v2803 = vmul.f32 %v2801, %v2672
        %2806 = vrot.lane.b32.xlu0 %v2802, 127
        %v2807 = vpop.permute.xlu0 %2806
        %2808 = vrot.lane.b32.xlu0 %v2803, 127
        %v2809 = vpop.permute.xlu0 %2808
        %v2812 = vadd.f32 %v2798, %v2807
        %v2813 = vadd.f32 %v2799, %v2809
        %s2814 = sld [smem:[#allocation11 + $0xb]]
        %v2815 = vstv %s2814
        %v2816 = vmul.f32 %v2815, %v2671
        %v2817 = vmul.f32 %v2815, %v2672
        %2820 = vrot.lane.b32.xlu0 %v2816, 126
        %v2821 = vpop.permute.xlu0 %2820
        %2822 = vrot.lane.b32.xlu0 %v2817, 126
        %v2823 = vpop.permute.xlu0 %2822
        %v2826 = vadd.f32 %v2812, %v2821
        %v2827 = vadd.f32 %v2813, %v2823
        %s2828 = sld [smem:[#allocation11 + $0xc]]
        %v2829 = vstv %s2828
        %v2830 = vmul.f32 %v2829, %v2673
        %v2831 = vmul.f32 %v2829, %v2674
        %v2832 = vadd.f32 %v2826, %v2830
        %v2833 = vadd.f32 %v2827, %v2831
        %s2834 = sld [smem:[#allocation11 + $0xd]]
        %v2835 = vstv %s2834
        %v2836 = vmul.f32 %v2835, %v2673
        %v2837 = vmul.f32 %v2835, %v2674
        %2840 = vrot.lane.b32.xlu0 %v2836, 127
        %v2841 = vpop.permute.xlu0 %2840
        %2842 = vrot.lane.b32.xlu0 %v2837, 127
        %v2843 = vpop.permute.xlu0 %2842
        %v2846 = vadd.f32 %v2832, %v2841
        %v2847 = vadd.f32 %v2833, %v2843
        %s2848 = sld [smem:[#allocation11 + $0xe]]
        %v2849 = vstv %s2848
        %v2850 = vmul.f32 %v2849, %v2673
        %v2851 = vmul.f32 %v2849, %v2674
        %2854 = vrot.lane.b32.xlu0 %v2850, 126
        %v2855 = vpop.permute.xlu0 %2854
        %2856 = vrot.lane.b32.xlu0 %v2851, 126
        %v2857 = vpop.permute.xlu0 %2856
        %v2860 = vadd.f32 %v2846, %v2855
        %v2861 = vadd.f32 %v2847, %v2857
        %s2862 = sld [smem:[#allocation11 + $0xf]]
        %v2863 = vstv %s2862
        %v2864 = vmul.f32 %v2863, %v2675
        %v2865 = vmul.f32 %v2863, %v2676
        %v2866 = vadd.f32 %v2860, %v2864
        %v2867 = vadd.f32 %v2861, %v2865
        %s2868 = sld [smem:[#allocation11 + $0x10]]
        %v2869 = vstv %s2868
        %v2870 = vmul.f32 %v2869, %v2675
        %v2871 = vmul.f32 %v2869, %v2676
        %2874 = vrot.lane.b32.xlu0 %v2870, 127
        %v2875 = vpop.permute.xlu0 %2874
        %2876 = vrot.lane.b32.xlu0 %v2871, 127
        %v2877 = vpop.permute.xlu0 %2876
        %v2880 = vadd.f32 %v2866, %v2875
        %v2881 = vadd.f32 %v2867, %v2877
        %s2882 = sld [smem:[#allocation11 + $0x11]]
        %v2883 = vstv %s2882
        %v2884 = vmul.f32 %v2883, %v2675
        %v2885 = vmul.f32 %v2883, %v2676
        %2888 = vrot.lane.b32.xlu0 %v2884, 126
        %v2889 = vpop.permute.xlu0 %2888
        %2890 = vrot.lane.b32.xlu0 %v2885, 126
        %v2891 = vpop.permute.xlu0 %2890
        %v2894 = vadd.f32 %v2880, %v2889
        %v2895 = vadd.f32 %v2881, %v2891
        %s2896 = sld [smem:[#allocation11 + $0x12]]
        %v2897 = vstv %s2896
        %v2898 = vmul.f32 %v2897, %v2677
        %v2899 = vmul.f32 %v2897, %v2678
        %v2900 = vadd.f32 %v2894, %v2898
        %v2901 = vadd.f32 %v2895, %v2899
        %s2902 = sld [smem:[#allocation11 + $0x13]]
        %v2903 = vstv %s2902
        %v2904 = vmul.f32 %v2903, %v2677
        %v2905 = vmul.f32 %v2903, %v2678
        %2908 = vrot.lane.b32.xlu0 %v2904, 127
        %v2909 = vpop.permute.xlu0 %2908
        %2910 = vrot.lane.b32.xlu0 %v2905, 127
        %v2911 = vpop.permute.xlu0 %2910
        %v2914 = vadd.f32 %v2900, %v2909
        %v2915 = vadd.f32 %v2901, %v2911
        %s2916 = sld [smem:[#allocation11 + $0x14]]
        %v2917 = vstv %s2916
        %v2918 = vmul.f32 %v2917, %v2677
        %v2919 = vmul.f32 %v2917, %v2678
        %2922 = vrot.lane.b32.xlu0 %v2918, 126
        %v2923 = vpop.permute.xlu0 %2922
        %2924 = vrot.lane.b32.xlu0 %v2919, 126
        %v2925 = vpop.permute.xlu0 %2924
        %v2928 = vadd.f32 %v2914, %v2923
        %v2929 = vadd.f32 %v2915, %v2925
        %s2930 = sld [smem:[#allocation11 + $0x15]]
        %v2931 = vstv %s2930
        %v2932 = vmul.f32 %v2931, %v2679
        %v2933 = vmul.f32 %v2931, %v2680
        %v2934 = vadd.f32 %v2928, %v2932
        %v2935 = vadd.f32 %v2929, %v2933
        %s2936 = sld [smem:[#allocation11 + $0x16]]
        %v2937 = vstv %s2936
        %v2938 = vmul.f32 %v2937, %v2679
        %v2939 = vmul.f32 %v2937, %v2680
        %2942 = vrot.lane.b32.xlu0 %v2938, 127
        %v2943 = vpop.permute.xlu0 %2942
        %2944 = vrot.lane.b32.xlu0 %v2939, 127
        %v2945 = vpop.permute.xlu0 %2944
        %v2948 = vadd.f32 %v2934, %v2943
        %v2949 = vadd.f32 %v2935, %v2945
        %s2950 = sld [smem:[#allocation11 + $0x17]]
        %v2951 = vstv %s2950
        %v2952 = vmul.f32 %v2951, %v2679
        %v2953 = vmul.f32 %v2951, %v2680
        %2956 = vrot.lane.b32.xlu0 %v2952, 126
        %v2957 = vpop.permute.xlu0 %2956
        %2958 = vrot.lane.b32.xlu0 %v2953, 126
        %v2959 = vpop.permute.xlu0 %2958
        %v2962 = vadd.f32 %v2948, %v2957
        %v2963 = vadd.f32 %v2949, %v2959
        %s2964 = sld [smem:[#allocation11 + $0x18]]
        %v2965 = vstv %s2964
        %v2966 = vmul.f32 %v2965, %v2681
        %v2967 = vmul.f32 %v2965, %v2682
        %v2968 = vadd.f32 %v2962, %v2966
        %v2969 = vadd.f32 %v2963, %v2967
        %s2970 = sld [smem:[#allocation11 + $0x19]]
        %v2971 = vstv %s2970
        %v2972 = vmul.f32 %v2971, %v2681
        %v2973 = vmul.f32 %v2971, %v2682
        %2976 = vrot.lane.b32.xlu0 %v2972, 127
        %v2977 = vpop.permute.xlu0 %2976
        %2978 = vrot.lane.b32.xlu0 %v2973, 127
        %v2979 = vpop.permute.xlu0 %2978
        %v2982 = vadd.f32 %v2968, %v2977
        %v2983 = vadd.f32 %v2969, %v2979
        %s2984 = sld [smem:[#allocation11 + $0x1a]]
        %v2985 = vstv %s2984
        %v2986 = vmul.f32 %v2985, %v2681
        %v2987 = vmul.f32 %v2985, %v2682
        %2990 = vrot.lane.b32.xlu0 %v2986, 126
        %v2991 = vpop.permute.xlu0 %2990
        %2992 = vrot.lane.b32.xlu0 %v2987, 126
        %v2993 = vpop.permute.xlu0 %2992
        %v2996 = vadd.f32 %v2982, %v2991
        %v2997 = vadd.f32 %v2983, %v2993
        %s2998 = sld [smem:[#allocation11 + $0x1b]]
        %v2999 = vstv %s2998
        %v3000 = vmul.f32 %v2999, %v2683
        %v3001 = vmul.f32 %v2999, %v2684
        %v3002 = vadd.f32 %v2996, %v3000
        %v3003 = vadd.f32 %v2997, %v3001
        %s3004 = sld [smem:[#allocation11 + $0x1c]]
        %v3005 = vstv %s3004
        %v3006 = vmul.f32 %v3005, %v2683
        %v3007 = vmul.f32 %v3005, %v2684
        %3010 = vrot.lane.b32.xlu0 %v3006, 127
        %v3011 = vpop.permute.xlu0 %3010
        %3012 = vrot.lane.b32.xlu0 %v3007, 127
        %v3013 = vpop.permute.xlu0 %3012
        %v3016 = vadd.f32 %v3002, %v3011
        %v3017 = vadd.f32 %v3003, %v3013
        %s3018 = sld [smem:[#allocation11 + $0x1d]]
        %v3019 = vstv %s3018
        %v3020 = vmul.f32 %v3019, %v2683
        %v3021 = vmul.f32 %v3019, %v2684
        %3024 = vrot.lane.b32.xlu0 %v3020, 126
        %v3025 = vpop.permute.xlu0 %3024
        %3026 = vrot.lane.b32.xlu0 %v3021, 126
        %v3027 = vpop.permute.xlu0 %3026
        %v3030 = vadd.f32 %v3016, %v3025
        %v3031 = vadd.f32 %v3017, %v3027
        %s3032 = sld [smem:[#allocation11 + $0x1e]]
        %v3033 = vstv %s3032
        %v3034 = vmul.f32 %v3033, %v2685
        %v3035 = vmul.f32 %v3033, %v2686
        %v3036 = vadd.f32 %v3030, %v3034
        %v3037 = vadd.f32 %v3031, %v3035
        %s3038 = sld [smem:[#allocation11 + $0x1f]]
        %v3039 = vstv %s3038
        %v3040 = vmul.f32 %v3039, %v2685
        %v3041 = vmul.f32 %v3039, %v2686
        %3044 = vrot.lane.b32.xlu0 %v3040, 127
        %v3045 = vpop.permute.xlu0 %3044
        %3046 = vrot.lane.b32.xlu0 %v3041, 127
        %v3047 = vpop.permute.xlu0 %3046
        %v3050 = vadd.f32 %v3036, %v3045
        %v3051 = vadd.f32 %v3037, %v3047
        %s3052 = sld [smem:[#allocation11 + $0x20]]
        %v3053 = vstv %s3052
        %v3054 = vmul.f32 %v3053, %v2685
        %v3055 = vmul.f32 %v3053, %v2686
        %3058 = vrot.lane.b32.xlu0 %v3054, 126
        %v3059 = vpop.permute.xlu0 %3058
        %3060 = vrot.lane.b32.xlu0 %v3055, 126
        %v3061 = vpop.permute.xlu0 %3060
        %v3064 = vadd.f32 %v3050, %v3059
        %v3065 = vadd.f32 %v3051, %v3061
        %s3066 = sld [smem:[#allocation11 + $0x21]]
        %v3067 = vstv %s3066
        %v3068 = vmul.f32 %v3067, %v2687
        %v3069 = vmul.f32 %v3067, %v2688
        %v3070 = vadd.f32 %v3064, %v3068
        %v3071 = vadd.f32 %v3065, %v3069
        %s3072 = sld [smem:[#allocation11 + $0x22]]
        %v3073 = vstv %s3072
        %v3074 = vmul.f32 %v3073, %v2687
        %v3075 = vmul.f32 %v3073, %v2688
        %3078 = vrot.lane.b32.xlu0 %v3074, 127
        %v3079 = vpop.permute.xlu0 %3078
        %3080 = vrot.lane.b32.xlu0 %v3075, 127
        %v3081 = vpop.permute.xlu0 %3080
        %v3084 = vadd.f32 %v3070, %v3079
        %v3085 = vadd.f32 %v3071, %v3081
        %s3086 = sld [smem:[#allocation11 + $0x23]]
        %v3087 = vstv %s3086
        %v3088 = vmul.f32 %v3087, %v2687
        %v3089 = vmul.f32 %v3087, %v2688
        %3092 = vrot.lane.b32.xlu0 %v3088, 126
        %v3093 = vpop.permute.xlu0 %3092
        %3094 = vrot.lane.b32.xlu0 %v3089, 126
        %v3095 = vpop.permute.xlu0 %3094
        %v3098 = vadd.f32 %v3084, %v3093
        %v3099 = vadd.f32 %v3085, %v3095
        %vm3100 = vcmp.ge.f32.partialorder %v3098, 0.0
        %vm3101 = vcmp.ge.f32.partialorder %v3099, 0.0
        %v3102 = vstv %s928
        %v3103 = vmul.f32 %v3102, %v3098
        %v3104 = vmul.f32 %v3102, %v3099
        %v3105 = vsel %vm3100, %v3098, %v3103
        %v3106 = vsel %vm3101, %v3099, %v3104
        %vm3107 = vcmask 130048
        %3108 = vst.msk [vmem:[%s421] sm:$0xff] %vm3107, %v3105
        %3109 = vst.msk [vmem:[%s421 + $0x8] sm:$0xff] %vm3107, %v3106
        %s3110 = sld [smem:[#allocation12 + $0x1]]
        %v3111 = vstv %s3110
        %v3112 = vadd.f32 %v3111, 0.0
        %s3113 = sld [smem:[#allocation11 + $0x24]]
        %v3114 = vstv %s3113
        %v3115 = vmul.f32 %v3114, %v2665
        %v3116 = vmul.f32 %v3114, %v2666
        %v3117 = vadd.f32 %v3112, %v3115
        %v3118 = vadd.f32 %v3112, %v3116
        %s3119 = sld [smem:[#allocation11 + $0x25]]
        %v3120 = vstv %s3119
        %v3121 = vmul.f32 %v3120, %v2665
        %v3122 = vmul.f32 %v3120, %v2666
        %3125 = vrot.lane.b32.xlu0 %v3121, 127
        %v3126 = vpop.permute.xlu0 %3125
        %3127 = vrot.lane.b32.xlu0 %v3122, 127
        %v3128 = vpop.permute.xlu0 %3127
        %v3131 = vadd.f32 %v3117, %v3126
        %v3132 = vadd.f32 %v3118, %v3128
        %s3133 = sld [smem:[#allocation11 + $0x26]]
        %v3134 = vstv %s3133
        %v3135 = vmul.f32 %v3134, %v2665
        %v3136 = vmul.f32 %v3134, %v2666
        %3139 = vrot.lane.b32.xlu0 %v3135, 126
        %v3140 = vpop.permute.xlu0 %3139
        %3141 = vrot.lane.b32.xlu0 %v3136, 126
        %v3142 = vpop.permute.xlu0 %3141
        %v3145 = vadd.f32 %v3131, %v3140
        %v3146 = vadd.f32 %v3132, %v3142
        %s3147 = sld [smem:[#allocation11 + $0x27]]
        %v3148 = vstv %s3147
        %v3149 = vmul.f32 %v3148, %v2667
        %v3150 = vmul.f32 %v3148, %v2668
        %v3151 = vadd.f32 %v3145, %v3149
        %v3152 = vadd.f32 %v3146, %v3150
        %s3153 = sld [smem:[#allocation11 + $0x28]]
        %v3154 = vstv %s3153
        %v3155 = vmul.f32 %v3154, %v2667
        %v3156 = vmul.f32 %v3154, %v2668
        %3159 = vrot.lane.b32.xlu0 %v3155, 127
        %v3160 = vpop.permute.xlu0 %3159
        %3161 = vrot.lane.b32.xlu0 %v3156, 127
        %v3162 = vpop.permute.xlu0 %3161
        %v3165 = vadd.f32 %v3151, %v3160
        %v3166 = vadd.f32 %v3152, %v3162
        %s3167 = sld [smem:[#allocation11 + $0x29]]
        %v3168 = vstv %s3167
        %v3169 = vmul.f32 %v3168, %v2667
        %v3170 = vmul.f32 %v3168, %v2668
        %3173 = vrot.lane.b32.xlu0 %v3169, 126
        %v3174 = vpop.permute.xlu0 %3173
        %3175 = vrot.lane.b32.xlu0 %v3170, 126
        %v3176 = vpop.permute.xlu0 %3175
        %v3179 = vadd.f32 %v3165, %v3174
        %v3180 = vadd.f32 %v3166, %v3176
        %s3181 = sld [smem:[#allocation11 + $0x2a]]
        %v3182 = vstv %s3181
        %v3183 = vmul.f32 %v3182, %v2669
        %v3184 = vmul.f32 %v3182, %v2670
        %v3185 = vadd.f32 %v3179, %v3183
        %v3186 = vadd.f32 %v3180, %v3184
        %s3187 = sld [smem:[#allocation11 + $0x2b]]
        %v3188 = vstv %s3187
        %v3189 = vmul.f32 %v3188, %v2669
        %v3190 = vmul.f32 %v3188, %v2670
        %3193 = vrot.lane.b32.xlu0 %v3189, 127
        %v3194 = vpop.permute.xlu0 %3193
        %3195 = vrot.lane.b32.xlu0 %v3190, 127
        %v3196 = vpop.permute.xlu0 %3195
        %v3199 = vadd.f32 %v3185, %v3194
        %v3200 = vadd.f32 %v3186, %v3196
        %s3201 = sld [smem:[#allocation11 + $0x2c]]
        %v3202 = vstv %s3201
        %v3203 = vmul.f32 %v3202, %v2669
        %v3204 = vmul.f32 %v3202, %v2670
        %3207 = vrot.lane.b32.xlu0 %v3203, 126
        %v3208 = vpop.permute.xlu0 %3207
        %3209 = vrot.lane.b32.xlu0 %v3204, 126
        %v3210 = vpop.permute.xlu0 %3209
        %v3213 = vadd.f32 %v3199, %v3208
        %v3214 = vadd.f32 %v3200, %v3210
        %s3215 = sld [smem:[#allocation11 + $0x2d]]
        %v3216 = vstv %s3215
        %v3217 = vmul.f32 %v3216, %v2671
        %v3218 = vmul.f32 %v3216, %v2672
        %v3219 = vadd.f32 %v3213, %v3217
        %v3220 = vadd.f32 %v3214, %v3218
        %s3221 = sld [smem:[#allocation11 + $0x2e]]
        %v3222 = vstv %s3221
        %v3223 = vmul.f32 %v3222, %v2671
        %v3224 = vmul.f32 %v3222, %v2672
        %3227 = vrot.lane.b32.xlu0 %v3223, 127
        %v3228 = vpop.permute.xlu0 %3227
        %3229 = vrot.lane.b32.xlu0 %v3224, 127
        %v3230 = vpop.permute.xlu0 %3229
        %v3233 = vadd.f32 %v3219, %v3228
        %v3234 = vadd.f32 %v3220, %v3230
        %s3235 = sld [smem:[#allocation11 + $0x2f]]
        %v3236 = vstv %s3235
        %v3237 = vmul.f32 %v3236, %v2671
        %v3238 = vmul.f32 %v3236, %v2672
        %3241 = vrot.lane.b32.xlu0 %v3237, 126
        %v3242 = vpop.permute.xlu0 %3241
        %3243 = vrot.lane.b32.xlu0 %v3238, 126
        %v3244 = vpop.permute.xlu0 %3243
        %v3247 = vadd.f32 %v3233, %v3242
        %v3248 = vadd.f32 %v3234, %v3244
        %s3249 = sld [smem:[#allocation11 + $0x30]]
        %v3250 = vstv %s3249
        %v3251 = vmul.f32 %v3250, %v2673
        %v3252 = vmul.f32 %v3250, %v2674
        %v3253 = vadd.f32 %v3247, %v3251
        %v3254 = vadd.f32 %v3248, %v3252
        %s3255 = sld [smem:[#allocation11 + $0x31]]
        %v3256 = vstv %s3255
        %v3257 = vmul.f32 %v3256, %v2673
        %v3258 = vmul.f32 %v3256, %v2674
        %3261 = vrot.lane.b32.xlu0 %v3257, 127
        %v3262 = vpop.permute.xlu0 %3261
        %3263 = vrot.lane.b32.xlu0 %v3258, 127
        %v3264 = vpop.permute.xlu0 %3263
        %v3267 = vadd.f32 %v3253, %v3262
        %v3268 = vadd.f32 %v3254, %v3264
        %s3269 = sld [smem:[#allocation11 + $0x32]]
        %v3270 = vstv %s3269
        %v3271 = vmul.f32 %v3270, %v2673
        %v3272 = vmul.f32 %v3270, %v2674
        %3275 = vrot.lane.b32.xlu0 %v3271, 126
        %v3276 = vpop.permute.xlu0 %3275
        %3277 = vrot.lane.b32.xlu0 %v3272, 126
        %v3278 = vpop.permute.xlu0 %3277
        %v3281 = vadd.f32 %v3267, %v3276
        %v3282 = vadd.f32 %v3268, %v3278
        %s3283 = sld [smem:[#allocation11 + $0x33]]
        %v3284 = vstv %s3283
        %v3285 = vmul.f32 %v3284, %v2675
        %v3286 = vmul.f32 %v3284, %v2676
        %v3287 = vadd.f32 %v3281, %v3285
        %v3288 = vadd.f32 %v3282, %v3286
        %s3289 = sld [smem:[#allocation11 + $0x34]]
        %v3290 = vstv %s3289
        %v3291 = vmul.f32 %v3290, %v2675
        %v3292 = vmul.f32 %v3290, %v2676
        %3295 = vrot.lane.b32.xlu0 %v3291, 127
        %v3296 = vpop.permute.xlu0 %3295
        %3297 = vrot.lane.b32.xlu0 %v3292, 127
        %v3298 = vpop.permute.xlu0 %3297
        %v3301 = vadd.f32 %v3287, %v3296
        %v3302 = vadd.f32 %v3288, %v3298
        %s3303 = sld [smem:[#allocation11 + $0x35]]
        %v3304 = vstv %s3303
        %v3305 = vmul.f32 %v3304, %v2675
        %v3306 = vmul.f32 %v3304, %v2676
        %3309 = vrot.lane.b32.xlu0 %v3305, 126
        %v3310 = vpop.permute.xlu0 %3309
        %3311 = vrot.lane.b32.xlu0 %v3306, 126
        %v3312 = vpop.permute.xlu0 %3311
        %v3315 = vadd.f32 %v3301, %v3310
        %v3316 = vadd.f32 %v3302, %v3312
        %s3317 = sld [smem:[#allocation11 + $0x36]]
        %v3318 = vstv %s3317
        %v3319 = vmul.f32 %v3318, %v2677
        %v3320 = vmul.f32 %v3318, %v2678
        %v3321 = vadd.f32 %v3315, %v3319
        %v3322 = vadd.f32 %v3316, %v3320
        %s3323 = sld [smem:[#allocation11 + $0x37]]
        %v3324 = vstv %s3323
        %v3325 = vmul.f32 %v3324, %v2677
        %v3326 = vmul.f32 %v3324, %v2678
        %3329 = vrot.lane.b32.xlu0 %v3325, 127
        %v3330 = vpop.permute.xlu0 %3329
        %3331 = vrot.lane.b32.xlu0 %v3326, 127
        %v3332 = vpop.permute.xlu0 %3331
        %v3335 = vadd.f32 %v3321, %v3330
        %v3336 = vadd.f32 %v3322, %v3332
        %s3337 = sld [smem:[#allocation11 + $0x38]]
        %v3338 = vstv %s3337
        %v3339 = vmul.f32 %v3338, %v2677
        %v3340 = vmul.f32 %v3338, %v2678
        %3343 = vrot.lane.b32.xlu0 %v3339, 126
        %v3344 = vpop.permute.xlu0 %3343
        %3345 = vrot.lane.b32.xlu0 %v3340, 126
        %v3346 = vpop.permute.xlu0 %3345
        %v3349 = vadd.f32 %v3335, %v3344
        %v3350 = vadd.f32 %v3336, %v3346
        %s3351 = sld [smem:[#allocation11 + $0x39]]
        %v3352 = vstv %s3351
        %v3353 = vmul.f32 %v3352, %v2679
        %v3354 = vmul.f32 %v3352, %v2680
        %v3355 = vadd.f32 %v3349, %v3353
        %v3356 = vadd.f32 %v3350, %v3354
        %s3357 = sld [smem:[#allocation11 + $0x3a]]
        %v3358 = vstv %s3357
        %v3359 = vmul.f32 %v3358, %v2679
        %v3360 = vmul.f32 %v3358, %v2680
        %3363 = vrot.lane.b32.xlu0 %v3359, 127
        %v3364 = vpop.permute.xlu0 %3363
        %3365 = vrot.lane.b32.xlu0 %v3360, 127
        %v3366 = vpop.permute.xlu0 %3365
        %v3369 = vadd.f32 %v3355, %v3364
        %v3370 = vadd.f32 %v3356, %v3366
        %s3371 = sld [smem:[#allocation11 + $0x3b]]
        %v3372 = vstv %s3371
        %v3373 = vmul.f32 %v3372, %v2679
        %v3374 = vmul.f32 %v3372, %v2680
        %3377 = vrot.lane.b32.xlu0 %v3373, 126
        %v3378 = vpop.permute.xlu0 %3377
        %3379 = vrot.lane.b32.xlu0 %v3374, 126
        %v3380 = vpop.permute.xlu0 %3379
        %v3383 = vadd.f32 %v3369, %v3378
        %v3384 = vadd.f32 %v3370, %v3380
        %s3385 = sld [smem:[#allocation11 + $0x3c]]
        %v3386 = vstv %s3385
        %v3387 = vmul.f32 %v3386, %v2681
        %v3388 = vmul.f32 %v3386, %v2682
        %v3389 = vadd.f32 %v3383, %v3387
        %v3390 = vadd.f32 %v3384, %v3388
        %s3391 = sld [smem:[#allocation11 + $0x3d]]
        %v3392 = vstv %s3391
        %v3393 = vmul.f32 %v3392, %v2681
        %v3394 = vmul.f32 %v3392, %v2682
        %3397 = vrot.lane.b32.xlu0 %v3393, 127
        %v3398 = vpop.permute.xlu0 %3397
        %3399 = vrot.lane.b32.xlu0 %v3394, 127
        %v3400 = vpop.permute.xlu0 %3399
        %v3403 = vadd.f32 %v3389, %v3398
        %v3404 = vadd.f32 %v3390, %v3400
        %s3405 = sld [smem:[#allocation11 + $0x3e]]
        %v3406 = vstv %s3405
        %v3407 = vmul.f32 %v3406, %v2681
        %v3408 = vmul.f32 %v3406, %v2682
        %3411 = vrot.lane.b32.xlu0 %v3407, 126
        %v3412 = vpop.permute.xlu0 %3411
        %3413 = vrot.lane.b32.xlu0 %v3408, 126
        %v3414 = vpop.permute.xlu0 %3413
        %v3417 = vadd.f32 %v3403, %v3412
        %v3418 = vadd.f32 %v3404, %v3414
        %s3419 = sld [smem:[#allocation11 + $0x3f]]
        %v3420 = vstv %s3419
        %v3421 = vmul.f32 %v3420, %v2683
        %v3422 = vmul.f32 %v3420, %v2684
        %v3423 = vadd.f32 %v3417, %v3421
        %v3424 = vadd.f32 %v3418, %v3422
        %s3425 = sld [smem:[#allocation11 + $0x40]]
        %v3426 = vstv %s3425
        %v3427 = vmul.f32 %v3426, %v2683
        %v3428 = vmul.f32 %v3426, %v2684
        %3431 = vrot.lane.b32.xlu0 %v3427, 127
        %v3432 = vpop.permute.xlu0 %3431
        %3433 = vrot.lane.b32.xlu0 %v3428, 127
        %v3434 = vpop.permute.xlu0 %3433
        %v3437 = vadd.f32 %v3423, %v3432
        %v3438 = vadd.f32 %v3424, %v3434
        %s3439 = sld [smem:[#allocation11 + $0x41]]
        %v3440 = vstv %s3439
        %v3441 = vmul.f32 %v3440, %v2683
        %v3442 = vmul.f32 %v3440, %v2684
        %3445 = vrot.lane.b32.xlu0 %v3441, 126
        %v3446 = vpop.permute.xlu0 %3445
        %3447 = vrot.lane.b32.xlu0 %v3442, 126
        %v3448 = vpop.permute.xlu0 %3447
        %v3451 = vadd.f32 %v3437, %v3446
        %v3452 = vadd.f32 %v3438, %v3448
        %s3453 = sld [smem:[#allocation11 + $0x42]]
        %v3454 = vstv %s3453
        %v3455 = vmul.f32 %v3454, %v2685
        %v3456 = vmul.f32 %v3454, %v2686
        %v3457 = vadd.f32 %v3451, %v3455
        %v3458 = vadd.f32 %v3452, %v3456
        %s3459 = sld [smem:[#allocation11 + $0x43]]
        %v3460 = vstv %s3459
        %v3461 = vmul.f32 %v3460, %v2685
        %v3462 = vmul.f32 %v3460, %v2686
        %3465 = vrot.lane.b32.xlu0 %v3461, 127
        %v3466 = vpop.permute.xlu0 %3465
        %3467 = vrot.lane.b32.xlu0 %v3462, 127
        %v3468 = vpop.permute.xlu0 %3467
        %v3471 = vadd.f32 %v3457, %v3466
        %v3472 = vadd.f32 %v3458, %v3468
        %s3473 = sld [smem:[#allocation11 + $0x44]]
        %v3474 = vstv %s3473
        %v3475 = vmul.f32 %v3474, %v2685
        %v3476 = vmul.f32 %v3474, %v2686
        %3479 = vrot.lane.b32.xlu0 %v3475, 126
        %v3480 = vpop.permute.xlu0 %3479
        %3481 = vrot.lane.b32.xlu0 %v3476, 126
        %v3482 = vpop.permute.xlu0 %3481
        %v3485 = vadd.f32 %v3471, %v3480
        %v3486 = vadd.f32 %v3472, %v3482
        %s3487 = sld [smem:[#allocation11 + $0x45]]
        %v3488 = vstv %s3487
        %v3489 = vmul.f32 %v3488, %v2687
        %v3490 = vmul.f32 %v3488, %v2688
        %v3491 = vadd.f32 %v3485, %v3489
        %v3492 = vadd.f32 %v3486, %v3490
        %s3493 = sld [smem:[#allocation11 + $0x46]]
        %v3494 = vstv %s3493
        %v3495 = vmul.f32 %v3494, %v2687
        %v3496 = vmul.f32 %v3494, %v2688
        %3499 = vrot.lane.b32.xlu0 %v3495, 127
        %v3500 = vpop.permute.xlu0 %3499
        %3501 = vrot.lane.b32.xlu0 %v3496, 127
        %v3502 = vpop.permute.xlu0 %3501
        %v3505 = vadd.f32 %v3491, %v3500
        %v3506 = vadd.f32 %v3492, %v3502
        %s3507 = sld [smem:[#allocation11 + $0x47]]
        %v3508 = vstv %s3507
        %v3509 = vmul.f32 %v3508, %v2687
        %v3510 = vmul.f32 %v3508, %v2688
        %3513 = vrot.lane.b32.xlu0 %v3509, 126
        %v3514 = vpop.permute.xlu0 %3513
        %3515 = vrot.lane.b32.xlu0 %v3510, 126
        %v3516 = vpop.permute.xlu0 %3515
        %v3519 = vadd.f32 %v3505, %v3514
        %v3520 = vadd.f32 %v3506, %v3516
        %vm3521 = vcmp.ge.f32.partialorder %v3519, 0.0
        %vm3522 = vcmp.ge.f32.partialorder %v3520, 0.0
        %v3523 = vmul.f32 %v3102, %v3519
        %v3524 = vmul.f32 %v3102, %v3520
        %v3525 = vsel %vm3521, %v3519, %v3523
        %v3526 = vsel %vm3522, %v3520, %v3524
        %s3527 = scalar_lea.vmem %s421, 16 [#allocation14]
        %3528 = vst.msk [vmem:[%s3527] sm:$0xff] %vm3107, %v3525
        %3529 = vst.msk [vmem:[%s3527 + $0x8] sm:$0xff] %vm3107, %v3526
        %s3530 = sld [smem:[#allocation12 + $0x2]]
        %v3531 = vstv %s3530
        %v3532 = vadd.f32 %v3531, 0.0
        %s3533 = sld [smem:[#allocation11 + $0x48]]
        %v3534 = vstv %s3533
        %v3535 = vmul.f32 %v3534, %v2665
        %v3536 = vmul.f32 %v3534, %v2666
        %v3537 = vadd.f32 %v3532, %v3535
        %v3538 = vadd.f32 %v3532, %v3536
        %s3539 = sld [smem:[#allocation11 + $0x49]]
        %v3540 = vstv %s3539
        %v3541 = vmul.f32 %v3540, %v2665
        %v3542 = vmul.f32 %v3540, %v2666
        %3545 = vrot.lane.b32.xlu0 %v3541, 127
        %v3546 = vpop.permute.xlu0 %3545
        %3547 = vrot.lane.b32.xlu0 %v3542, 127
        %v3548 = vpop.permute.xlu0 %3547
        %v3551 = vadd.f32 %v3537, %v3546
        %v3552 = vadd.f32 %v3538, %v3548
        %s3553 = sld [smem:[#allocation11 + $0x4a]]
        %v3554 = vstv %s3553
        %v3555 = vmul.f32 %v3554, %v2665
        %v3556 = vmul.f32 %v3554, %v2666
        %3559 = vrot.lane.b32.xlu0 %v3555, 126
        %v3560 = vpop.permute.xlu0 %3559
        %3561 = vrot.lane.b32.xlu0 %v3556, 126
        %v3562 = vpop.permute.xlu0 %3561
        %v3565 = vadd.f32 %v3551, %v3560
        %v3566 = vadd.f32 %v3552, %v3562
        %s3567 = sld [smem:[#allocation11 + $0x4b]]
        %v3568 = vstv %s3567
        %v3569 = vmul.f32 %v3568, %v2667
        %v3570 = vmul.f32 %v3568, %v2668
        %v3571 = vadd.f32 %v3565, %v3569
        %v3572 = vadd.f32 %v3566, %v3570
        %s3573 = sld [smem:[#allocation11 + $0x4c]]
        %v3574 = vstv %s3573
        %v3575 = vmul.f32 %v3574, %v2667
        %v3576 = vmul.f32 %v3574, %v2668
        %3579 = vrot.lane.b32.xlu0 %v3575, 127
        %v3580 = vpop.permute.xlu0 %3579
        %3581 = vrot.lane.b32.xlu0 %v3576, 127
        %v3582 = vpop.permute.xlu0 %3581
        %v3585 = vadd.f32 %v3571, %v3580
        %v3586 = vadd.f32 %v3572, %v3582
        %s3587 = sld [smem:[#allocation11 + $0x4d]]
        %v3588 = vstv %s3587
        %v3589 = vmul.f32 %v3588, %v2667
        %v3590 = vmul.f32 %v3588, %v2668
        %3593 = vrot.lane.b32.xlu0 %v3589, 126
        %v3594 = vpop.permute.xlu0 %3593
        %3595 = vrot.lane.b32.xlu0 %v3590, 126
        %v3596 = vpop.permute.xlu0 %3595
        %v3599 = vadd.f32 %v3585, %v3594
        %v3600 = vadd.f32 %v3586, %v3596
        %s3601 = sld [smem:[#allocation11 + $0x4e]]
        %v3602 = vstv %s3601
        %v3603 = vmul.f32 %v3602, %v2669
        %v3604 = vmul.f32 %v3602, %v2670
        %v3605 = vadd.f32 %v3599, %v3603
        %v3606 = vadd.f32 %v3600, %v3604
        %s3607 = sld [smem:[#allocation11 + $0x4f]]
        %v3608 = vstv %s3607
        %v3609 = vmul.f32 %v3608, %v2669
        %v3610 = vmul.f32 %v3608, %v2670
        %3613 = vrot.lane.b32.xlu0 %v3609, 127
        %v3614 = vpop.permute.xlu0 %3613
        %3615 = vrot.lane.b32.xlu0 %v3610, 127
        %v3616 = vpop.permute.xlu0 %3615
        %v3619 = vadd.f32 %v3605, %v3614
        %v3620 = vadd.f32 %v3606, %v3616
        %s3621 = sld [smem:[#allocation11 + $0x50]]
        %v3622 = vstv %s3621
        %v3623 = vmul.f32 %v3622, %v2669
        %v3624 = vmul.f32 %v3622, %v2670
        %3627 = vrot.lane.b32.xlu0 %v3623, 126
        %v3628 = vpop.permute.xlu0 %3627
        %3629 = vrot.lane.b32.xlu0 %v3624, 126
        %v3630 = vpop.permute.xlu0 %3629
        %v3633 = vadd.f32 %v3619, %v3628
        %v3634 = vadd.f32 %v3620, %v3630
        %s3635 = sld [smem:[#allocation11 + $0x51]]
        %v3636 = vstv %s3635
        %v3637 = vmul.f32 %v3636, %v2671
        %v3638 = vmul.f32 %v3636, %v2672
        %v3639 = vadd.f32 %v3633, %v3637
        %v3640 = vadd.f32 %v3634, %v3638
        %s3641 = sld [smem:[#allocation11 + $0x52]]
        %v3642 = vstv %s3641
        %v3643 = vmul.f32 %v3642, %v2671
        %v3644 = vmul.f32 %v3642, %v2672
        %3647 = vrot.lane.b32.xlu0 %v3643, 127
        %v3648 = vpop.permute.xlu0 %3647
        %3649 = vrot.lane.b32.xlu0 %v3644, 127
        %v3650 = vpop.permute.xlu0 %3649
        %v3653 = vadd.f32 %v3639, %v3648
        %v3654 = vadd.f32 %v3640, %v3650
        %s3655 = sld [smem:[#allocation11 + $0x53]]
        %v3656 = vstv %s3655
        %v3657 = vmul.f32 %v3656, %v2671
        %v3658 = vmul.f32 %v3656, %v2672
        %3661 = vrot.lane.b32.xlu0 %v3657, 126
        %v3662 = vpop.permute.xlu0 %3661
        %3663 = vrot.lane.b32.xlu0 %v3658, 126
        %v3664 = vpop.permute.xlu0 %3663
        %v3667 = vadd.f32 %v3653, %v3662
        %v3668 = vadd.f32 %v3654, %v3664
        %s3669 = sld [smem:[#allocation11 + $0x54]]
        %v3670 = vstv %s3669
        %v3671 = vmul.f32 %v3670, %v2673
        %v3672 = vmul.f32 %v3670, %v2674
        %v3673 = vadd.f32 %v3667, %v3671
        %v3674 = vadd.f32 %v3668, %v3672
        %s3675 = sld [smem:[#allocation11 + $0x55]]
        %v3676 = vstv %s3675
        %v3677 = vmul.f32 %v3676, %v2673
        %v3678 = vmul.f32 %v3676, %v2674
        %3681 = vrot.lane.b32.xlu0 %v3677, 127
        %v3682 = vpop.permute.xlu0 %3681
        %3683 = vrot.lane.b32.xlu0 %v3678, 127
        %v3684 = vpop.permute.xlu0 %3683
        %v3687 = vadd.f32 %v3673, %v3682
        %v3688 = vadd.f32 %v3674, %v3684
        %s3689 = sld [smem:[#allocation11 + $0x56]]
        %v3690 = vstv %s3689
        %v3691 = vmul.f32 %v3690, %v2673
        %v3692 = vmul.f32 %v3690, %v2674
        %3695 = vrot.lane.b32.xlu0 %v3691, 126
        %v3696 = vpop.permute.xlu0 %3695
        %3697 = vrot.lane.b32.xlu0 %v3692, 126
        %v3698 = vpop.permute.xlu0 %3697
        %v3701 = vadd.f32 %v3687, %v3696
        %v3702 = vadd.f32 %v3688, %v3698
        %s3703 = sld [smem:[#allocation11 + $0x57]]
        %v3704 = vstv %s3703
        %v3705 = vmul.f32 %v3704, %v2675
        %v3706 = vmul.f32 %v3704, %v2676
        %v3707 = vadd.f32 %v3701, %v3705
        %v3708 = vadd.f32 %v3702, %v3706
        %s3709 = sld [smem:[#allocation11 + $0x58]]
        %v3710 = vstv %s3709
        %v3711 = vmul.f32 %v3710, %v2675
        %v3712 = vmul.f32 %v3710, %v2676
        %3715 = vrot.lane.b32.xlu0 %v3711, 127
        %v3716 = vpop.permute.xlu0 %3715
        %3717 = vrot.lane.b32.xlu0 %v3712, 127
        %v3718 = vpop.permute.xlu0 %3717
        %v3721 = vadd.f32 %v3707, %v3716
        %v3722 = vadd.f32 %v3708, %v3718
        %s3723 = sld [smem:[#allocation11 + $0x59]]
        %v3724 = vstv %s3723
        %v3725 = vmul.f32 %v3724, %v2675
        %v3726 = vmul.f32 %v3724, %v2676
        %3729 = vrot.lane.b32.xlu0 %v3725, 126
        %v3730 = vpop.permute.xlu0 %3729
        %3731 = vrot.lane.b32.xlu0 %v3726, 126
        %v3732 = vpop.permute.xlu0 %3731
        %v3735 = vadd.f32 %v3721, %v3730
        %v3736 = vadd.f32 %v3722, %v3732
        %s3737 = sld [smem:[#allocation11 + $0x5a]]
        %v3738 = vstv %s3737
        %v3739 = vmul.f32 %v3738, %v2677
        %v3740 = vmul.f32 %v3738, %v2678
        %v3741 = vadd.f32 %v3735, %v3739
        %v3742 = vadd.f32 %v3736, %v3740
        %s3743 = sld [smem:[#allocation11 + $0x5b]]
        %v3744 = vstv %s3743
        %v3745 = vmul.f32 %v3744, %v2677
        %v3746 = vmul.f32 %v3744, %v2678
        %3749 = vrot.lane.b32.xlu0 %v3745, 127
        %v3750 = vpop.permute.xlu0 %3749
        %3751 = vrot.lane.b32.xlu0 %v3746, 127
        %v3752 = vpop.permute.xlu0 %3751
        %v3755 = vadd.f32 %v3741, %v3750
        %v3756 = vadd.f32 %v3742, %v3752
        %s3757 = sld [smem:[#allocation11 + $0x5c]]
        %v3758 = vstv %s3757
        %v3759 = vmul.f32 %v3758, %v2677
        %v3760 = vmul.f32 %v3758, %v2678
        %3763 = vrot.lane.b32.xlu0 %v3759, 126
        %v3764 = vpop.permute.xlu0 %3763
        %3765 = vrot.lane.b32.xlu0 %v3760, 126
        %v3766 = vpop.permute.xlu0 %3765
        %v3769 = vadd.f32 %v3755, %v3764
        %v3770 = vadd.f32 %v3756, %v3766
        %s3771 = sld [smem:[#allocation11 + $0x5d]]
        %v3772 = vstv %s3771
        %v3773 = vmul.f32 %v3772, %v2679
        %v3774 = vmul.f32 %v3772, %v2680
        %v3775 = vadd.f32 %v3769, %v3773
        %v3776 = vadd.f32 %v3770, %v3774
        %s3777 = sld [smem:[#allocation11 + $0x5e]]
        %v3778 = vstv %s3777
        %v3779 = vmul.f32 %v3778, %v2679
        %v3780 = vmul.f32 %v3778, %v2680
        %3783 = vrot.lane.b32.xlu0 %v3779, 127
        %v3784 = vpop.permute.xlu0 %3783
        %3785 = vrot.lane.b32.xlu0 %v3780, 127
        %v3786 = vpop.permute.xlu0 %3785
        %v3789 = vadd.f32 %v3775, %v3784
        %v3790 = vadd.f32 %v3776, %v3786
        %s3791 = sld [smem:[#allocation11 + $0x5f]]
        %v3792 = vstv %s3791
        %v3793 = vmul.f32 %v3792, %v2679
        %v3794 = vmul.f32 %v3792, %v2680
        %3797 = vrot.lane.b32.xlu0 %v3793, 126
        %v3798 = vpop.permute.xlu0 %3797
        %3799 = vrot.lane.b32.xlu0 %v3794, 126
        %v3800 = vpop.permute.xlu0 %3799
        %v3803 = vadd.f32 %v3789, %v3798
        %v3804 = vadd.f32 %v3790, %v3800
        %s3805 = sld [smem:[#allocation11 + $0x60]]
        %v3806 = vstv %s3805
        %v3807 = vmul.f32 %v3806, %v2681
        %v3808 = vmul.f32 %v3806, %v2682
        %v3809 = vadd.f32 %v3803, %v3807
        %v3810 = vadd.f32 %v3804, %v3808
        %s3811 = sld [smem:[#allocation11 + $0x61]]
        %v3812 = vstv %s3811
        %v3813 = vmul.f32 %v3812, %v2681
        %v3814 = vmul.f32 %v3812, %v2682
        %3817 = vrot.lane.b32.xlu0 %v3813, 127
        %v3818 = vpop.permute.xlu0 %3817
        %3819 = vrot.lane.b32.xlu0 %v3814, 127
        %v3820 = vpop.permute.xlu0 %3819
        %v3823 = vadd.f32 %v3809, %v3818
        %v3824 = vadd.f32 %v3810, %v3820
        %s3825 = sld [smem:[#allocation11 + $0x62]]
        %v3826 = vstv %s3825
        %v3827 = vmul.f32 %v3826, %v2681
        %v3828 = vmul.f32 %v3826, %v2682
        %3831 = vrot.lane.b32.xlu0 %v3827, 126
        %v3832 = vpop.permute.xlu0 %3831
        %3833 = vrot.lane.b32.xlu0 %v3828, 126
        %v3834 = vpop.permute.xlu0 %3833
        %v3837 = vadd.f32 %v3823, %v3832
        %v3838 = vadd.f32 %v3824, %v3834
        %s3839 = sld [smem:[#allocation11 + $0x63]]
        %v3840 = vstv %s3839
        %v3841 = vmul.f32 %v3840, %v2683
        %v3842 = vmul.f32 %v3840, %v2684
        %v3843 = vadd.f32 %v3837, %v3841
        %v3844 = vadd.f32 %v3838, %v3842
        %s3845 = sld [smem:[#allocation11 + $0x64]]
        %v3846 = vstv %s3845
        %v3847 = vmul.f32 %v3846, %v2683
        %v3848 = vmul.f32 %v3846, %v2684
        %3851 = vrot.lane.b32.xlu0 %v3847, 127
        %v3852 = vpop.permute.xlu0 %3851
        %3853 = vrot.lane.b32.xlu0 %v3848, 127
        %v3854 = vpop.permute.xlu0 %3853
        %v3857 = vadd.f32 %v3843, %v3852
        %v3858 = vadd.f32 %v3844, %v3854
        %s3859 = sld [smem:[#allocation11 + $0x65]]
        %v3860 = vstv %s3859
        %v3861 = vmul.f32 %v3860, %v2683
        %v3862 = vmul.f32 %v3860, %v2684
        %3865 = vrot.lane.b32.xlu0 %v3861, 126
        %v3866 = vpop.permute.xlu0 %3865
        %3867 = vrot.lane.b32.xlu0 %v3862, 126
        %v3868 = vpop.permute.xlu0 %3867
        %v3871 = vadd.f32 %v3857, %v3866
        %v3872 = vadd.f32 %v3858, %v3868
        %s3873 = sld [smem:[#allocation11 + $0x66]]
        %v3874 = vstv %s3873
        %v3875 = vmul.f32 %v3874, %v2685
        %v3876 = vmul.f32 %v3874, %v2686
        %v3877 = vadd.f32 %v3871, %v3875
        %v3878 = vadd.f32 %v3872, %v3876
        %s3879 = sld [smem:[#allocation11 + $0x67]]
        %v3880 = vstv %s3879
        %v3881 = vmul.f32 %v3880, %v2685
        %v3882 = vmul.f32 %v3880, %v2686
        %3885 = vrot.lane.b32.xlu0 %v3881, 127
        %v3886 = vpop.permute.xlu0 %3885
        %3887 = vrot.lane.b32.xlu0 %v3882, 127
        %v3888 = vpop.permute.xlu0 %3887
        %v3891 = vadd.f32 %v3877, %v3886
        %v3892 = vadd.f32 %v3878, %v3888
        %s3893 = sld [smem:[#allocation11 + $0x68]]
        %v3894 = vstv %s3893
        %v3895 = vmul.f32 %v3894, %v2685
        %v3896 = vmul.f32 %v3894, %v2686
        %3899 = vrot.lane.b32.xlu0 %v3895, 126
        %v3900 = vpop.permute.xlu0 %3899
        %3901 = vrot.lane.b32.xlu0 %v3896, 126
        %v3902 = vpop.permute.xlu0 %3901
        %v3905 = vadd.f32 %v3891, %v3900
        %v3906 = vadd.f32 %v3892, %v3902
        %s3907 = sld [smem:[#allocation11 + $0x69]]
        %v3908 = vstv %s3907
        %v3909 = vmul.f32 %v3908, %v2687
        %v3910 = vmul.f32 %v3908, %v2688
        %v3911 = vadd.f32 %v3905, %v3909
        %v3912 = vadd.f32 %v3906, %v3910
        %s3913 = sld [smem:[#allocation11 + $0x6a]]
        %v3914 = vstv %s3913
        %v3915 = vmul.f32 %v3914, %v2687
        %v3916 = vmul.f32 %v3914, %v2688
        %3919 = vrot.lane.b32.xlu0 %v3915, 127
        %v3920 = vpop.permute.xlu0 %3919
        %3921 = vrot.lane.b32.xlu0 %v3916, 127
        %v3922 = vpop.permute.xlu0 %3921
        %v3925 = vadd.f32 %v3911, %v3920
        %v3926 = vadd.f32 %v3912, %v3922
        %s3927 = sld [smem:[#allocation11 + $0x6b]]
        %v3928 = vstv %s3927
        %v3929 = vmul.f32 %v3928, %v2687
        %v3930 = vmul.f32 %v3928, %v2688
        %3933 = vrot.lane.b32.xlu0 %v3929, 126
        %v3934 = vpop.permute.xlu0 %3933
        %3935 = vrot.lane.b32.xlu0 %v3930, 126
        %v3936 = vpop.permute.xlu0 %3935
        %v3939 = vadd.f32 %v3925, %v3934
        %v3940 = vadd.f32 %v3926, %v3936
        %vm3941 = vcmp.ge.f32.partialorder %v3939, 0.0
        %vm3942 = vcmp.ge.f32.partialorder %v3940, 0.0
        %v3943 = vmul.f32 %v3102, %v3939
        %v3944 = vmul.f32 %v3102, %v3940
        %v3945 = vsel %vm3941, %v3939, %v3943
        %v3946 = vsel %vm3942, %v3940, %v3944
        %s3947 = scalar_lea.vmem %s421, 32 [#allocation14]
        %3948 = vst.msk [vmem:[%s3947] sm:$0xff] %vm3107, %v3945
        %3949 = vst.msk [vmem:[%s3947 + $0x8] sm:$0xff] %vm3107, %v3946
        %s3950 = sld [smem:[#allocation12 + $0x3]]
        %v3951 = vstv %s3950
        %v3952 = vadd.f32 %v3951, 0.0
        %s3953 = sld [smem:[#allocation11 + $0x6c]]
        %v3954 = vstv %s3953
        %v3955 = vmul.f32 %v3954, %v2665
        %v3956 = vmul.f32 %v3954, %v2666
        %v3957 = vadd.f32 %v3952, %v3955
        %v3958 = vadd.f32 %v3952, %v3956
        %s3959 = sld [smem:[#allocation11 + $0x6d]]
        %v3960 = vstv %s3959
        %v3961 = vmul.f32 %v3960, %v2665
        %v3962 = vmul.f32 %v3960, %v2666
        %3965 = vrot.lane.b32.xlu0 %v3961, 127
        %v3966 = vpop.permute.xlu0 %3965
        %3967 = vrot.lane.b32.xlu0 %v3962, 127
        %v3968 = vpop.permute.xlu0 %3967
        %v3971 = vadd.f32 %v3957, %v3966
        %v3972 = vadd.f32 %v3958, %v3968
        %s3973 = sld [smem:[#allocation11 + $0x6e]]
        %v3974 = vstv %s3973
        %v3975 = vmul.f32 %v3974, %v2665
        %v3976 = vmul.f32 %v3974, %v2666
        %3979 = vrot.lane.b32.xlu0 %v3975, 126
        %v3980 = vpop.permute.xlu0 %3979
        %3981 = vrot.lane.b32.xlu0 %v3976, 126
        %v3982 = vpop.permute.xlu0 %3981
        %v3985 = vadd.f32 %v3971, %v3980
        %v3986 = vadd.f32 %v3972, %v3982
        %s3987 = sld [smem:[#allocation11 + $0x6f]]
        %v3988 = vstv %s3987
        %v3989 = vmul.f32 %v3988, %v2667
        %v3990 = vmul.f32 %v3988, %v2668
        %v3991 = vadd.f32 %v3985, %v3989
        %v3992 = vadd.f32 %v3986, %v3990
        %s3993 = sld [smem:[#allocation11 + $0x70]]
        %v3994 = vstv %s3993
        %v3995 = vmul.f32 %v3994, %v2667
        %v3996 = vmul.f32 %v3994, %v2668
        %3999 = vrot.lane.b32.xlu0 %v3995, 127
        %v4000 = vpop.permute.xlu0 %3999
        %4001 = vrot.lane.b32.xlu0 %v3996, 127
        %v4002 = vpop.permute.xlu0 %4001
        %v4005 = vadd.f32 %v3991, %v4000
        %v4006 = vadd.f32 %v3992, %v4002
        %s4007 = sld [smem:[#allocation11 + $0x71]]
        %v4008 = vstv %s4007
        %v4009 = vmul.f32 %v4008, %v2667
        %v4010 = vmul.f32 %v4008, %v2668
        %4013 = vrot.lane.b32.xlu0 %v4009, 126
        %v4014 = vpop.permute.xlu0 %4013
        %4015 = vrot.lane.b32.xlu0 %v4010, 126
        %v4016 = vpop.permute.xlu0 %4015
        %v4019 = vadd.f32 %v4005, %v4014
        %v4020 = vadd.f32 %v4006, %v4016
        %s4021 = sld [smem:[#allocation11 + $0x72]]
        %v4022 = vstv %s4021
        %v4023 = vmul.f32 %v4022, %v2669
        %v4024 = vmul.f32 %v4022, %v2670
        %v4025 = vadd.f32 %v4019, %v4023
        %v4026 = vadd.f32 %v4020, %v4024
        %s4027 = sld [smem:[#allocation11 + $0x73]]
        %v4028 = vstv %s4027
        %v4029 = vmul.f32 %v4028, %v2669
        %v4030 = vmul.f32 %v4028, %v2670
        %4033 = vrot.lane.b32.xlu0 %v4029, 127
        %v4034 = vpop.permute.xlu0 %4033
        %4035 = vrot.lane.b32.xlu0 %v4030, 127
        %v4036 = vpop.permute.xlu0 %4035
        %v4039 = vadd.f32 %v4025, %v4034
        %v4040 = vadd.f32 %v4026, %v4036
        %s4041 = sld [smem:[#allocation11 + $0x74]]
        %v4042 = vstv %s4041
        %v4043 = vmul.f32 %v4042, %v2669
        %v4044 = vmul.f32 %v4042, %v2670
        %4047 = vrot.lane.b32.xlu0 %v4043, 126
        %v4048 = vpop.permute.xlu0 %4047
        %4049 = vrot.lane.b32.xlu0 %v4044, 126
        %v4050 = vpop.permute.xlu0 %4049
        %v4053 = vadd.f32 %v4039, %v4048
        %v4054 = vadd.f32 %v4040, %v4050
        %s4055 = sld [smem:[#allocation11 + $0x75]]
        %v4056 = vstv %s4055
        %v4057 = vmul.f32 %v4056, %v2671
        %v4058 = vmul.f32 %v4056, %v2672
        %v4059 = vadd.f32 %v4053, %v4057
        %v4060 = vadd.f32 %v4054, %v4058
        %s4061 = sld [smem:[#allocation11 + $0x76]]
        %v4062 = vstv %s4061
        %v4063 = vmul.f32 %v4062, %v2671
        %v4064 = vmul.f32 %v4062, %v2672
        %4067 = vrot.lane.b32.xlu0 %v4063, 127
        %v4068 = vpop.permute.xlu0 %4067
        %4069 = vrot.lane.b32.xlu0 %v4064, 127
        %v4070 = vpop.permute.xlu0 %4069
        %v4073 = vadd.f32 %v4059, %v4068
        %v4074 = vadd.f32 %v4060, %v4070
        %s4075 = sld [smem:[#allocation11 + $0x77]]
        %v4076 = vstv %s4075
        %v4077 = vmul.f32 %v4076, %v2671
        %v4078 = vmul.f32 %v4076, %v2672
        %4081 = vrot.lane.b32.xlu0 %v4077, 126
        %v4082 = vpop.permute.xlu0 %4081
        %4083 = vrot.lane.b32.xlu0 %v4078, 126
        %v4084 = vpop.permute.xlu0 %4083
        %v4087 = vadd.f32 %v4073, %v4082
        %v4088 = vadd.f32 %v4074, %v4084
        %s4089 = sld [smem:[#allocation11 + $0x78]]
        %v4090 = vstv %s4089
        %v4091 = vmul.f32 %v4090, %v2673
        %v4092 = vmul.f32 %v4090, %v2674
        %v4093 = vadd.f32 %v4087, %v4091
        %v4094 = vadd.f32 %v4088, %v4092
        %s4095 = sld [smem:[#allocation11 + $0x79]]
        %v4096 = vstv %s4095
        %v4097 = vmul.f32 %v4096, %v2673
        %v4098 = vmul.f32 %v4096, %v2674
        %4101 = vrot.lane.b32.xlu0 %v4097, 127
        %v4102 = vpop.permute.xlu0 %4101
        %4103 = vrot.lane.b32.xlu0 %v4098, 127
        %v4104 = vpop.permute.xlu0 %4103
        %v4107 = vadd.f32 %v4093, %v4102
        %v4108 = vadd.f32 %v4094, %v4104
        %s4109 = sld [smem:[#allocation11 + $0x7a]]
        %v4110 = vstv %s4109
        %v4111 = vmul.f32 %v4110, %v2673
        %v4112 = vmul.f32 %v4110, %v2674
        %4115 = vrot.lane.b32.xlu0 %v4111, 126
        %v4116 = vpop.permute.xlu0 %4115
        %4117 = vrot.lane.b32.xlu0 %v4112, 126
        %v4118 = vpop.permute.xlu0 %4117
        %v4121 = vadd.f32 %v4107, %v4116
        %v4122 = vadd.f32 %v4108, %v4118
        %s4123 = sld [smem:[#allocation11 + $0x7b]]
        %v4124 = vstv %s4123
        %v4125 = vmul.f32 %v4124, %v2675
        %v4126 = vmul.f32 %v4124, %v2676
        %v4127 = vadd.f32 %v4121, %v4125
        %v4128 = vadd.f32 %v4122, %v4126
        %s4129 = sld [smem:[#allocation11 + $0x7c]]
        %v4130 = vstv %s4129
        %v4131 = vmul.f32 %v4130, %v2675
        %v4132 = vmul.f32 %v4130, %v2676
        %4135 = vrot.lane.b32.xlu0 %v4131, 127
        %v4136 = vpop.permute.xlu0 %4135
        %4137 = vrot.lane.b32.xlu0 %v4132, 127
        %v4138 = vpop.permute.xlu0 %4137
        %v4141 = vadd.f32 %v4127, %v4136
        %v4142 = vadd.f32 %v4128, %v4138
        %s4143 = sld [smem:[#allocation11 + $0x7d]]
        %v4144 = vstv %s4143
        %v4145 = vmul.f32 %v4144, %v2675
        %v4146 = vmul.f32 %v4144, %v2676
        %4149 = vrot.lane.b32.xlu0 %v4145, 126
        %v4150 = vpop.permute.xlu0 %4149
        %4151 = vrot.lane.b32.xlu0 %v4146, 126
        %v4152 = vpop.permute.xlu0 %4151
        %v4155 = vadd.f32 %v4141, %v4150
        %v4156 = vadd.f32 %v4142, %v4152
        %s4157 = sld [smem:[#allocation11 + $0x7e]]
        %v4158 = vstv %s4157
        %v4159 = vmul.f32 %v4158, %v2677
        %v4160 = vmul.f32 %v4158, %v2678
        %v4161 = vadd.f32 %v4155, %v4159
        %v4162 = vadd.f32 %v4156, %v4160
        %s4163 = sld [smem:[#allocation11 + $0x7f]]
        %v4164 = vstv %s4163
        %v4165 = vmul.f32 %v4164, %v2677
        %v4166 = vmul.f32 %v4164, %v2678
        %4169 = vrot.lane.b32.xlu0 %v4165, 127
        %v4170 = vpop.permute.xlu0 %4169
        %4171 = vrot.lane.b32.xlu0 %v4166, 127
        %v4172 = vpop.permute.xlu0 %4171
        %v4175 = vadd.f32 %v4161, %v4170
        %v4176 = vadd.f32 %v4162, %v4172
        %s4177 = sld [smem:[#allocation11 + $0x80]]
        %v4178 = vstv %s4177
        %v4179 = vmul.f32 %v4178, %v2677
        %v4180 = vmul.f32 %v4178, %v2678
        %4183 = vrot.lane.b32.xlu0 %v4179, 126
        %v4184 = vpop.permute.xlu0 %4183
        %4185 = vrot.lane.b32.xlu0 %v4180, 126
        %v4186 = vpop.permute.xlu0 %4185
        %v4189 = vadd.f32 %v4175, %v4184
        %v4190 = vadd.f32 %v4176, %v4186
        %s4191 = sld [smem:[#allocation11 + $0x81]]
        %v4192 = vstv %s4191
        %v4193 = vmul.f32 %v4192, %v2679
        %v4194 = vmul.f32 %v4192, %v2680
        %v4195 = vadd.f32 %v4189, %v4193
        %v4196 = vadd.f32 %v4190, %v4194
        %s4197 = sld [smem:[#allocation11 + $0x82]]
        %v4198 = vstv %s4197
        %v4199 = vmul.f32 %v4198, %v2679
        %v4200 = vmul.f32 %v4198, %v2680
        %4203 = vrot.lane.b32.xlu0 %v4199, 127
        %v4204 = vpop.permute.xlu0 %4203
        %4205 = vrot.lane.b32.xlu0 %v4200, 127
        %v4206 = vpop.permute.xlu0 %4205
        %v4209 = vadd.f32 %v4195, %v4204
        %v4210 = vadd.f32 %v4196, %v4206
        %s4211 = sld [smem:[#allocation11 + $0x83]]
        %v4212 = vstv %s4211
        %v4213 = vmul.f32 %v4212, %v2679
        %v4214 = vmul.f32 %v4212, %v2680
        %4217 = vrot.lane.b32.xlu0 %v4213, 126
        %v4218 = vpop.permute.xlu0 %4217
        %4219 = vrot.lane.b32.xlu0 %v4214, 126
        %v4220 = vpop.permute.xlu0 %4219
        %v4223 = vadd.f32 %v4209, %v4218
        %v4224 = vadd.f32 %v4210, %v4220
        %s4225 = sld [smem:[#allocation11 + $0x84]]
        %v4226 = vstv %s4225
        %v4227 = vmul.f32 %v4226, %v2681
        %v4228 = vmul.f32 %v4226, %v2682
        %v4229 = vadd.f32 %v4223, %v4227
        %v4230 = vadd.f32 %v4224, %v4228
        %s4231 = sld [smem:[#allocation11 + $0x85]]
        %v4232 = vstv %s4231
        %v4233 = vmul.f32 %v4232, %v2681
        %v4234 = vmul.f32 %v4232, %v2682
        %4237 = vrot.lane.b32.xlu0 %v4233, 127
        %v4238 = vpop.permute.xlu0 %4237
        %4239 = vrot.lane.b32.xlu0 %v4234, 127
        %v4240 = vpop.permute.xlu0 %4239
        %v4243 = vadd.f32 %v4229, %v4238
        %v4244 = vadd.f32 %v4230, %v4240
        %s4245 = sld [smem:[#allocation11 + $0x86]]
        %v4246 = vstv %s4245
        %v4247 = vmul.f32 %v4246, %v2681
        %v4248 = vmul.f32 %v4246, %v2682
        %4251 = vrot.lane.b32.xlu0 %v4247, 126
        %v4252 = vpop.permute.xlu0 %4251
        %4253 = vrot.lane.b32.xlu0 %v4248, 126
        %v4254 = vpop.permute.xlu0 %4253
        %v4257 = vadd.f32 %v4243, %v4252
        %v4258 = vadd.f32 %v4244, %v4254
        %s4259 = sld [smem:[#allocation11 + $0x87]]
        %v4260 = vstv %s4259
        %v4261 = vmul.f32 %v4260, %v2683
        %v4262 = vmul.f32 %v4260, %v2684
        %v4263 = vadd.f32 %v4257, %v4261
        %v4264 = vadd.f32 %v4258, %v4262
        %s4265 = sld [smem:[#allocation11 + $0x88]]
        %v4266 = vstv %s4265
        %v4267 = vmul.f32 %v4266, %v2683
        %v4268 = vmul.f32 %v4266, %v2684
        %4271 = vrot.lane.b32.xlu0 %v4267, 127
        %v4272 = vpop.permute.xlu0 %4271
        %4273 = vrot.lane.b32.xlu0 %v4268, 127
        %v4274 = vpop.permute.xlu0 %4273
        %v4277 = vadd.f32 %v4263, %v4272
        %v4278 = vadd.f32 %v4264, %v4274
        %s4279 = sld [smem:[#allocation11 + $0x89]]
        %v4280 = vstv %s4279
        %v4281 = vmul.f32 %v4280, %v2683
        %v4282 = vmul.f32 %v4280, %v2684
        %4285 = vrot.lane.b32.xlu0 %v4281, 126
        %v4286 = vpop.permute.xlu0 %4285
        %4287 = vrot.lane.b32.xlu0 %v4282, 126
        %v4288 = vpop.permute.xlu0 %4287
        %v4291 = vadd.f32 %v4277, %v4286
        %v4292 = vadd.f32 %v4278, %v4288
        %s4293 = sld [smem:[#allocation11 + $0x8a]]
        %v4294 = vstv %s4293
        %v4295 = vmul.f32 %v4294, %v2685
        %v4296 = vmul.f32 %v4294, %v2686
        %v4297 = vadd.f32 %v4291, %v4295
        %v4298 = vadd.f32 %v4292, %v4296
        %s4299 = sld [smem:[#allocation11 + $0x8b]]
        %v4300 = vstv %s4299
        %v4301 = vmul.f32 %v4300, %v2685
        %v4302 = vmul.f32 %v4300, %v2686
        %4305 = vrot.lane.b32.xlu0 %v4301, 127
        %v4306 = vpop.permute.xlu0 %4305
        %4307 = vrot.lane.b32.xlu0 %v4302, 127
        %v4308 = vpop.permute.xlu0 %4307
        %v4311 = vadd.f32 %v4297, %v4306
        %v4312 = vadd.f32 %v4298, %v4308
        %s4313 = sld [smem:[#allocation11 + $0x8c]]
        %v4314 = vstv %s4313
        %v4315 = vmul.f32 %v4314, %v2685
        %v4316 = vmul.f32 %v4314, %v2686
        %4319 = vrot.lane.b32.xlu0 %v4315, 126
        %v4320 = vpop.permute.xlu0 %4319
        %4321 = vrot.lane.b32.xlu0 %v4316, 126
        %v4322 = vpop.permute.xlu0 %4321
        %v4325 = vadd.f32 %v4311, %v4320
        %v4326 = vadd.f32 %v4312, %v4322
        %s4327 = sld [smem:[#allocation11 + $0x8d]]
        %v4328 = vstv %s4327
        %v4329 = vmul.f32 %v4328, %v2687
        %v4330 = vmul.f32 %v4328, %v2688
        %v4331 = vadd.f32 %v4325, %v4329
        %v4332 = vadd.f32 %v4326, %v4330
        %s4333 = sld [smem:[#allocation11 + $0x8e]]
        %v4334 = vstv %s4333
        %v4335 = vmul.f32 %v4334, %v2687
        %v4336 = vmul.f32 %v4334, %v2688
        %4339 = vrot.lane.b32.xlu0 %v4335, 127
        %v4340 = vpop.permute.xlu0 %4339
        %4341 = vrot.lane.b32.xlu0 %v4336, 127
        %v4342 = vpop.permute.xlu0 %4341
        %v4345 = vadd.f32 %v4331, %v4340
        %v4346 = vadd.f32 %v4332, %v4342
        %s4347 = sld [smem:[#allocation11 + $0x8f]]
        %v4348 = vstv %s4347
        %v4349 = vmul.f32 %v4348, %v2687
        %v4350 = vmul.f32 %v4348, %v2688
        %4353 = vrot.lane.b32.xlu0 %v4349, 126
        %v4354 = vpop.permute.xlu0 %4353
        %4355 = vrot.lane.b32.xlu0 %v4350, 126
        %v4356 = vpop.permute.xlu0 %4355
        %v4359 = vadd.f32 %v4345, %v4354
        %v4360 = vadd.f32 %v4346, %v4356
        %vm4361 = vcmp.ge.f32.partialorder %v4359, 0.0
        %vm4362 = vcmp.ge.f32.partialorder %v4360, 0.0
        %v4363 = vmul.f32 %v3102, %v4359
        %v4364 = vmul.f32 %v3102, %v4360
        %v4365 = vsel %vm4361, %v4359, %v4363
        %v4366 = vsel %vm4362, %v4360, %v4364
        %s4367 = scalar_lea.vmem %s421, 48 [#allocation14]
        %4368 = vst.msk [vmem:[%s4367] sm:$0xff] %vm3107, %v4365
        %4369 = vst.msk [vmem:[%s4367 + $0x8] sm:$0xff] %vm3107, %v4366
        %s4370 = sand.u32 %s257, 1
        %s4371 = scalar_lea.sflag [#allocation7], %s4370
        %s4372 = sand.u32 %s257, 1
        %s4373 = smul.addr %s4372, 64
        %s4374 = scalar_lea.vmem [#allocation14], %s4373
        // Predicated region
        $region77: #{up_forward.1} parent=59 // pred_check
          %p4375 = pneg %p267
        $region78: #{up_forward.1} parent=59 // pred_check_branch
          %4377 = sbr.rel (%p4375) target = $region80
        $region79: #{up_forward.1} parent=59 // pred_region
          %s4379 = ssub.s32 1024, 1024
          %4380 = vsyncadd %s4371, %s4379
          %s4381 = smul.addr %s29, 8
          %s4382 = smul.addr %s4381, 128
          %s4383 = scalar_lea.hbm %s10, %s4382
          %s4384 = sshll.u32 %s4374, 4
          %s4385 = int_to_ptr.vmem [resolvable:$true] %s4384
          %4390 = dma.vmem_to_hbm [thread:$0]  %s4385, 1024, %s4383, %s4371, 128, 128, 8
        $region80: #{up_forward.1} parent=59 // pred_fallthru
          _
      $region60: #{up_forward.1} parent=5 // pred_fallthru
        _
      %p4391 = scmp.le.s32.totalorder 2, %s24
      // Predicated region
      $region81: #{up_forward.1} parent=5 // pred_check
        %p4392 = pneg %p4391
      $region82: #{up_forward.1} parent=5 // pred_check_branch
        %4394 = sbr.rel (%p4392) target = $region84
      $region83: #{up_forward.1} parent=5 // pred_region
        %s4395 = ssub.s32 %s24, 2
        // Predicated region
        $region85: #{up_forward.1} parent=83 // pred_check
          %p4396 = pneg %p273
        $region86: #{up_forward.1} parent=83 // pred_check_branch
          %4398 = sbr.rel (%p4396) target = $region88
        $region87: #{up_forward.1} parent=83 // pred_region
          %s4399 = sand.u32 %s258, 1
          %s4400 = scalar_lea.sflag [#allocation7], %s4399
          %s4401 = sand.u32 %s258, 1
          %s4402 = smul.addr %s4401, 64
          %s4403 = scalar_lea.vmem [#allocation14], %s4402
          %4404 = dma.done %s4400, 1024
        $region88: #{up_forward.1} parent=83 // pred_fallthru
          _
      $region84: #{up_forward.1} parent=5 // pred_fallthru
        _
    $region6: #{up_forward.1} parent=1 // loop_footer
      %s28 = sadd.s32 1, %s24
    $region7: #{up_forward.1} parent=1 // loop_footer_branch
      %23 = sbr.rel target = $region3
    $region8: #{up_forward.1} parent=1 // loop_exit
      _
    %4405 = vsyncpa [#allocation7], 1
    %s4406 = scalar_lea.sflag [#allocation7], 1
    %4407 = vsyncpa %s4406, 1
    %4408 = vsyncpa [#allocation8], 1
    %s4409 = scalar_lea.sflag [#allocation8], 1
    %4410 = vsyncpa %s4409, 1
    %4411 = vsyncpa [#allocation10], 1
    %4412 = vsyncpa [#allocation13], 1

</llo_original>
